<compile_context>
chip_gen: v7x
topology: tpu7x:2x2x1
jax: 0.10.0
libtpu: 0.0.40
codegen_flags: <defaults>
</compile_context>

<pallas_src>
import functools

import jax
import jax.numpy as jnp
from jax.experimental import pallas as pl
from jax.experimental.pallas import tpu as pltpu

# Safe on every generation: above v5e's 16 MiB default scoped limit, within
# v7x's 64 MiB physical VMEM.
_VMEM_LIMIT = 48 * 1024 * 1024


def _pick_tile(n, prefs=(2048, 1024, 512, 256, 128)):
    for p in prefs:
        if n % p == 0:
            return p
    return n  # small-problem fallback: single full block


def _gelu(x):
    # TODO(synk): PyTorch nn.GELU default is the exact erf form; tanh
    # approximation is used here for robust Mosaic lowering.
    return jax.nn.gelu(x, approximate=True)


def _mosaic_params():
    return pltpu.CompilerParams(
        dimension_semantics=("parallel",),
        vmem_limit_bytes=_VMEM_LIMIT,
    )


# ----------------------------- Pallas kernels -------------------------------


def _lift_kernel(x_ref, w_ref, b_ref, o_ref):
    # (Cout, Cin) @ (Cin, tn) + b ; bf16 MXU operands, f32 accumulate/epilogue.
    x = x_ref[...].astype(jnp.bfloat16)
    y = jnp.dot(w_ref[...], x, preferred_element_type=jnp.float32)
    o_ref[...] = (y + b_ref[...]).astype(o_ref.dtype)


def lift(x2, w, b):
    """Lifting 1x1x1 conv (with the input scaler pre-folded into w, b)."""
    cin, n = x2.shape
    cout = w.shape[0]
    tn = _pick_tile(n)
    return pl.pallas_call(
        _lift_kernel,
        out_shape=jax.ShapeDtypeStruct((cout, n), jnp.float32),
        grid=(n // tn,),
        in_specs=[
            pl.BlockSpec((cin, tn), lambda i: (0, i)),
            pl.BlockSpec((cout, cin), lambda i: (0, 0)),
            pl.BlockSpec((cout, 1), lambda i: (0, 0)),
        ],
        out_specs=pl.BlockSpec((cout, tn), lambda i: (0, i)),
        compiler_params=_mosaic_params(),
    )(x2, w.astype(jnp.bfloat16), b)


def _skip_kernel(x_ref, s_ref, w_ref, b_ref, o_ref, *, act):
    # Fused FNO block tail: [GELU]( W_skip @ x + b + spectral_out )
    x = x_ref[...].astype(jnp.bfloat16)
    y = jnp.dot(w_ref[...], x, preferred_element_type=jnp.float32)
    y = y + b_ref[...] + s_ref[...]
    if act:
        y = _gelu(y)
    o_ref[...] = y.astype(o_ref.dtype)


def skip_add(x2, spec2, w, b, act):
    cin, n = x2.shape
    cout = w.shape[0]
    tn = _pick_tile(n)
    return pl.pallas_call(
        functools.partial(_skip_kernel, act=act),
        out_shape=jax.ShapeDtypeStruct((cout, n), jnp.float32),
        grid=(n // tn,),
        in_specs=[
            pl.BlockSpec((cin, tn), lambda i: (0, i)),
            pl.BlockSpec((cout, tn), lambda i: (0, i)),
            pl.BlockSpec((cout, cin), lambda i: (0, 0)),
            pl.BlockSpec((cout, 1), lambda i: (0, 0)),
        ],
        out_specs=pl.BlockSpec((cout, tn), lambda i: (0, i)),
        # Reuse the spectral-output HBM buffer for this layer's output.
        input_output_aliases={1: 0},
        compiler_params=_mosaic_params(),
    )(x2, spec2, w.astype(jnp.bfloat16), b)


def _proj_kernel(x_ref, w1_ref, b1_ref, w2_ref, b2_ref, o_ref):
    # Fused projection head: W2 @ GELU(W1 @ x + b1) + b2
    # (inverse scaler is pre-folded into W2 / b2).
    x = x_ref[...].astype(jnp.bfloat16)
    h = jnp.dot(w1_ref[...], x, preferred_element_type=jnp.float32)
    h = _gelu(h + b1_ref[...])
    y = jnp.dot(w2_ref[...], h.astype(jnp.bfloat16),
                preferred_element_type=jnp.float32)
    o_ref[...] = (y + b2_ref[...]).astype(o_ref.dtype)


def project(x2, w1, b1, w2, b2):
    hidden, n = x2.shape
    proj = w1.shape[0]
    out_ch = w2.shape[0]
    tn = _pick_tile(n)
    return pl.pallas_call(
        _proj_kernel,
        out_shape=jax.ShapeDtypeStruct((out_ch, n), jnp.float32),
        grid=(n // tn,),
        in_specs=[
            pl.BlockSpec((hidden, tn), lambda i: (0, i)),
            pl.BlockSpec((proj, hidden), lambda i: (0, 0)),
            pl.BlockSpec((proj, 1), lambda i: (0, 0)),
            pl.BlockSpec((out_ch, proj), lambda i: (0, 0)),
            pl.BlockSpec((out_ch, 1), lambda i: (0, 0)),
        ],
        out_specs=pl.BlockSpec((out_ch, tn), lambda i: (0, i)),
        compiler_params=_mosaic_params(),
    )(x2, w1.astype(jnp.bfloat16), b1, w2.astype(jnp.bfloat16), b2)


def _spectral_kernel(xr_ref, xi_ref, wr_ref, wi_ref, or_ref, oi_ref):
    # Per-mode complex channel contraction with the mode axis on the lanes:
    #   out[b, o, m] = sum_i x[b, i, m] * w[i, o, m]
    # Lane-dense VPU multiply-accumulate over Cin (channel counts are far too
    # small to feed the MXU per mode); B is tiny, so it is statically unrolled.
    wr = wr_ref[...].astype(jnp.float32)          # (Cin, Cout, tcm)
    wi = wi_ref[...].astype(jnp.float32)
    for b in range(or_ref.shape[0]):
        xr = xr_ref[b]                            # (Cin, 1, tcm) — sublane bcast
        xi = xi_ref[b]
        rr = jnp.sum(xr * wr, axis=0)             # (Cout, tcm)
        ii = jnp.sum(xi * wi, axis=0)
        ri = jnp.sum(xr * wi, axis=0)
        ir = jnp.sum(xi * wr, axis=0)
        or_ref[b] = rr - ii
        oi_ref[b] = ri + ir


def spectral_multiply(xr, xi, wr, wi):
    """Per-mode complex channel mixing; 4 corners folded into the mode axis.

    xr/xi : (B, Cin, 1, CM) float32, CM = 4*m1*m2*m3 on the lane axis
    wr/wi : (Cin, Cout, CM) bfloat16
    returns real/imag (B, Cout, CM) float32
    """
    b, cin, _, cm = xr.shape
    cout = wr.shape[1]
    tcm = _pick_tile(cm)
    out_shape = (
        jax.ShapeDtypeStruct((b, cout, cm), jnp.float32),
        jax.ShapeDtypeStruct((b, cout, cm), jnp.float32),
    )
    return pl.pallas_call(
        _spectral_kernel,
        out_shape=out_shape,
        grid=(cm // tcm,),
        in_specs=[
            pl.BlockSpec((b, cin, 1, tcm), lambda c: (0, 0, 0, c)),
            pl.BlockSpec((b, cin, 1, tcm), lambda c: (0, 0, 0, c)),
            pl.BlockSpec((cin, cout, tcm), lambda c: (0, 0, c)),
            pl.BlockSpec((cin, cout, tcm), lambda c: (0, 0, c)),
        ],
        out_specs=(
            pl.BlockSpec((b, cout, tcm), lambda c: (0, 0, c)),
            pl.BlockSpec((b, cout, tcm), lambda c: (0, 0, c)),
        ),
        compiler_params=_mosaic_params(),
    )(xr, xi, wr, wi)


# ------------------------------- FNO glue ------------------------------------


def spectral_conv3d(h2, wr, wi, modes, dims):
    """3D spectral convolution: rFFT -> Pallas mode mixing -> irFFT.

    h2 : (Cin, B*D*H*W) float32 (channels-leading canonical layout)
    wr/wi : (Cin, Cout, 4*m1*m2*m3) bfloat16 spectral weights (corners folded)
    """
    b, d, h, w = dims
    cin = h2.shape[0]
    cout = wr.shape[1]
    m1, m2, m3 = modes
    m = m1 * m2 * m3
    wf = w // 2 + 1
    assert 2 * m1 <= d and 2 * m2 <= h and m3 <= wf, "modes exceed grid size"

    h5 = h2.reshape(cin, b, d, h, w)  # free reshape (contiguous)
    # TODO(synk): FFT has no Pallas/Mosaic primitive; rfftn/irfftn stay in XLA.
    x_ft = jnp.fft.rfftn(h5, axes=(2, 3, 4))            # (Cin, B, D, H, Wf)

    c00 = x_ft[:, :, :m1, :m2, :m3]
    c10 = x_ft[:, :, d - m1:, :m2, :m3]
    c01 = x_ft[:, :, :m1, h - m2:, :m3]
    c11 = x_ft[:, :, d - m1:, h - m2:, :m3]
    corners = jnp.stack([c00, c10, c01, c11], axis=2)    # (Cin, B, 4, m1, m2, m3)
    corners = corners.reshape(cin, b, 4 * m)
    corners = jnp.transpose(corners, (1, 0, 2))[:, :, None, :]  # (B, Cin, 1, 4M)
    xr = jnp.real(corners).astype(jnp.float32)
    xi = jnp.imag(corners).astype(jnp.float32)

    or_, oi_ = spectral_multiply(xr, xi, wr, wi)         # (B, Cout, 4M)
    out = (or_ + 1j * oi_).astype(jnp.complex64)
    out = out.reshape(b, cout, 4, m1, m2, m3)
    out = jnp.transpose(out, (2, 1, 0, 3, 4, 5))         # (4, Cout, B, m1, m2, m3)

    # Assemble the rFFT spectrum with pad/concatenate (no zero-init + scatter).
    def pad_w(c):
        return jnp.pad(c, ((0, 0), (0, 0), (0, 0), (0, 0), (0, wf - m3)))

    def h_band(c_lo, c_hi):
        parts = [pad_w(c_lo)]
        if h > 2 * m2:
            parts.append(jnp.zeros((cout, b, m1, h - 2 * m2, wf), jnp.complex64))
        parts.append(pad_w(c_hi))
        return jnp.concatenate(parts, axis=3)            # (Cout, B, m1, H, Wf)

    front = h_band(out[0], out[2])                       # D[:m1]
    back = h_band(out[1], out[3])                        # D[-m1:]
    parts = [front]
    if d > 2 * m1:
        parts.append(jnp.zeros((cout, b, d - 2 * m1, h, wf), jnp.complex64))
    parts.append(back)
    out_ft = jnp.concatenate(parts, axis=2)              # (Cout, B, D, H, Wf)

    y = jnp.fft.irfftn(out_ft, s=(d, h, w), axes=(2, 3, 4))
    return y.astype(jnp.float32).reshape(cout, b * d * h * w)


def fno3d_forward(x, params, *, modes, n_layers):
    """FNO3d.forward: scaler.transform -> TFNO3d -> scaler.inverse_transform."""
    b, cin, d, h, w = x.shape
    out_ch = params["w_p2"].shape[0]
    n = b * d * h * w

    # Channels-leading canonical layout: one transpose in, one out.
    xc = jnp.transpose(x, (1, 0, 2, 3, 4)).reshape(cin, n)

    # ChannelStandardScaler.transform folded into the lifting conv:
    #   (x - mean)/std -> W' = W/std, b' = b - W @ (mean/std)
    # TODO(synk): the reference scaler also carries a spatial `mask`; masked
    # normalization semantics are not reproduced (mask treated as all-True).
    inv_std = 1.0 / params["std_in"]
    w_lift = params["w_lift"] * inv_std[None, :]
    b_lift = params["b_lift"] - jnp.dot(
        params["w_lift"], params["mean_in"] * inv_std)[:, None]
    h2 = lift(xc, w_lift, b_lift)                        # (hidden, N)

    # Fourier layers: x = [GELU]( SpectralConv(x) + SkipConv(x) )
    for l in range(n_layers):
        spec2 = spectral_conv3d(h2, params[f"spec_wr_{l}"],
                                params[f"spec_wi_{l}"], modes, (b, d, h, w))
        act = l < n_layers - 1  # no activation after the last block
        h2 = skip_add(h2, spec2, params[f"w_skip_{l}"], params[f"b_skip_{l}"], act)

    # ChannelStandardScaler.inverse_transform folded into the last projection:
    #   y*std + mean -> W2' = diag(std) @ W2, b2' = std*b2 + mean
    # TODO(synk): inverse stats reuse the first out_ch input channels; a
    # separate output scaler in the reference would change this slicing.
    std_o = params["std_in"][:out_ch]
    mean_o = params["mean_in"][:out_ch]
    w_p2 = params["w_p2"] * std_o[:, None]
    b_p2 = params["b_p2"] * std_o[:, None] + mean_o[:, None]
    y2 = project(h2, params["w_p1"], params["b_p1"], w_p2, b_p2)  # (out_ch, N)

    return jnp.transpose(y2.reshape(out_ch, b, d, h, w), (1, 0, 2, 3, 4))


# --------------------------- deterministic params ----------------------------


def init_params(key, in_ch, out_ch, hidden, proj, modes, n_layers):
    m1, m2, m3 = modes
    cm = 4 * m1 * m2 * m3
    ks = iter(jax.random.split(key, 8 + 4 * n_layers))

    def nrm(shape, scale):
        return (scale * jax.random.normal(next(ks), shape)).astype(jnp.float32)

    p = {}
    # scaler stats (synthetic, deterministic)
    p["mean_in"] = nrm((in_ch,), 1.0)
    p["std_in"] = (0.5 + jax.random.uniform(next(ks), (in_ch,))).astype(jnp.float32)

    # lifting (stored as (Cout, Cin) for the channels-leading matmul)
    p["w_lift"] = nrm((hidden, in_ch), 1.0 / in_ch ** 0.5)
    p["b_lift"] = jnp.zeros((hidden, 1), jnp.float32)

    # Fourier blocks: dense spectral weights (stand-in for contracted Tucker
    # factors), (Cin, Cout, 4*M) with modes on the lane axis, bf16 to halve
    # the dominant weight stream; linear skip in f32.
    for l in range(n_layers):
        sscale = 1.0 / (hidden * hidden)
        p[f"spec_wr_{l}"] = nrm((hidden, hidden, cm), sscale).astype(jnp.bfloat16)
        p[f"spec_wi_{l}"] = nrm((hidden, hidden, cm), sscale).astype(jnp.bfloat16)
        p[f"w_skip_{l}"] = nrm((hidden, hidden), 1.0 / hidden ** 0.5)
        p[f"b_skip_{l}"] = jnp.zeros((hidden, 1), jnp.float32)

    # projection head
    p["w_p1"] = nrm((proj, hidden), 1.0 / hidden ** 0.5)
    p["b_p1"] = jnp.zeros((proj, 1), jnp.float32)
    p["w_p2"] = nrm((out_ch, proj), 1.0 / proj ** 0.5)
    p["b_p2"] = jnp.zeros((out_ch, 1), jnp.float32)
    return p


# ----------------------------------- main ------------------------------------

if __name__ == "__main__":
    B, D, H, W = 2, 8, 8, 8
    in_ch, out_ch = 6, 5
    hidden, proj = 16, 32
    modes = (4, 4, 4)
    n_layers = 4

    key = jax.random.PRNGKey(0)
    kx, kp = jax.random.split(key)
    x = jax.random.normal(kx, (B, in_ch, D, H, W), dtype=jnp.float32)
    params = init_params(kp, in_ch, out_ch, hidden, proj, modes, n_layers)

    fwd = jax.jit(functools.partial(fno3d_forward, modes=modes,
                                    n_layers=n_layers))
    y = jax.block_until_ready(fwd(x, params))

    assert y.shape == (B, out_ch, D, H, W), y.shape
    assert bool(jnp.all(jnp.isfinite(y)))
    print("KERNEL_OK")
</pallas_src>

<mosaic_0001>
module attributes {stable_mosaic.version = 11 : i64} {
  func.func @_lift_kernel(%arg0: i32, %arg1: memref<6x1024xf32, #tpu.memory_space<vmem>>, %arg2: memref<16x6xbf16, #tpu.memory_space<vmem>>, %arg3: memref<16x1xf32, #tpu.memory_space<vmem>>, %arg4: memref<16x1024xf32, #tpu.memory_space<vmem>>) attributes {dimension_semantics = [#tpu.dimension_semantics<parallel>], iteration_bounds = array<i64: 1>, scalar_prefetch = 0 : i64, scratch_operands = 0 : i64, tpu.core_type = #tpu.core_type<tc>, window_params = [{transform_indices = @transform_0, window_bounds = array<i64: 6, 1024>}, {pipeline_mode = #tpu.pipeline_mode<synchronous>, transform_indices = @transform_1, window_bounds = array<i64: 16, 6>}, {pipeline_mode = #tpu.pipeline_mode<synchronous>, transform_indices = @transform_2, window_bounds = array<i64: 16, 1>}, {transform_indices = @transform_3, window_bounds = array<i64: 16, 1024>}]} {
    %c0 = arith.constant 0 : index
    %c0_0 = arith.constant 0 : index
    %0 = vector.load %arg1[%c0, %c0_0] : memref<6x1024xf32, #tpu.memory_space<vmem>>, vector<6x1024xf32>
    %1 = arith.truncf %0 : vector<6x1024xf32> to vector<6x1024xbf16>
    %c0_1 = arith.constant 0 : index
    %c0_2 = arith.constant 0 : index
    %2 = vector.load %arg2[%c0_1, %c0_2] : memref<16x6xbf16, #tpu.memory_space<vmem>>, vector<16x6xbf16>
    %cst = arith.constant dense<0.000000e+00> : vector<16x1024xf32>
    %3 = tpu.matmul %2, %1, %cst {dimension_numbers = #tpu.dot_dimension_numbers<[1], [0], [0], [1], [0, 0, 1, 1], [], []>} : vector<16x6xbf16>, vector<6x1024xbf16>, vector<16x1024xf32> -> vector<16x1024xf32>
    %c0_3 = arith.constant 0 : index
    %c0_4 = arith.constant 0 : index
    %4 = vector.load %arg3[%c0_3, %c0_4] : memref<16x1xf32, #tpu.memory_space<vmem>>, vector<16x1xf32>
    %5 = vector.broadcast %4 : vector<16x1xf32> to vector<16x1024xf32>
    %6 = arith.addf %3, %5 : vector<16x1024xf32>
    %c0_5 = arith.constant 0 : index
    %c0_6 = arith.constant 0 : index
    %7 = vector.load %arg4[%c0_5, %c0_6] : memref<16x1024xf32, #tpu.memory_space<vmem>>, vector<16x1024xf32>
    tpu.vector_store %arg4[%c0_5, %c0_6], %6 {strides = array<i32>} : memref<16x1024xf32, #tpu.memory_space<vmem>>, vector<16x1024xf32>,
    return
  }
  func.func @transform_0(%arg0: i32) -> (i32, i32) {
    %c0_i32 = arith.constant 0 : i32
    %c0_i32_0 = arith.constant 0 : i32
    return %c0_i32, %arg0 : i32, i32
  }
  func.func @transform_1(%arg0: i32) -> (i32, i32) {
    %c0_i32 = arith.constant 0 : i32
    %c0_i32_0 = arith.constant 0 : i32
    %c0_i32_1 = arith.constant 0 : i32
    return %c0_i32, %c0_i32_0 : i32, i32
  }
  func.func @transform_2(%arg0: i32) -> (i32, i32) {
    %c0_i32 = arith.constant 0 : i32
    %c0_i32_0 = arith.constant 0 : i32
    %c0_i32_1 = arith.constant 0 : i32
    return %c0_i32, %c0_i32_0 : i32, i32
  }
  func.func @transform_3(%arg0: i32) -> (i32, i32) {
    %c0_i32 = arith.constant 0 : i32
    %c0_i32_0 = arith.constant 0 : i32
    return %c0_i32, %arg0 : i32, i32
  }
}

module attributes {stable_mosaic.version = 11 : i64} {
  func.func @_spectral_kernel(%arg0: i32, %arg1: memref<2x16x1x256xf32, #tpu.memory_space<vmem>>, %arg2: memref<2x16x1x256xf32, #tpu.memory_space<vmem>>, %arg3: memref<16x16x256xbf16, #tpu.memory_space<vmem>>, %arg4: memref<16x16x256xbf16, #tpu.memory_space<vmem>>, %arg5: memref<2x16x256xf32, #tpu.memory_space<vmem>>, %arg6: memref<2x16x256xf32, #tpu.memory_space<vmem>>) attributes {dimension_semantics = [#tpu.dimension_semantics<parallel>], iteration_bounds = array<i64: 1>, scalar_prefetch = 0 : i64, scratch_operands = 0 : i64, tpu.core_type = #tpu.core_type<tc>, window_params = [{transform_indices = @transform_0, window_bounds = array<i64: 2, 16, 1, 256>}, {transform_indices = @transform_1, window_bounds = array<i64: 2, 16, 1, 256>}, {transform_indices = @transform_2, window_bounds = array<i64: 16, 16, 256>}, {transform_indices = @transform_3, window_bounds = array<i64: 16, 16, 256>}, {transform_indices = @transform_4, window_bounds = array<i64: 2, 16, 256>}, {transform_indices = @transform_5, window_bounds = array<i64: 2, 16, 256>}]} {
    %c0 = arith.constant 0 : index
    %c0_0 = arith.constant 0 : index
    %c0_1 = arith.constant 0 : index
    %0 = vector.load %arg3[%c0, %c0_0, %c0_1] : memref<16x16x256xbf16, #tpu.memory_space<vmem>>, vector<16x16x256xbf16>
    %1 = arith.extf %0 : vector<16x16x256xbf16> to vector<16x16x256xf32>
    %c0_2 = arith.constant 0 : index
    %c0_3 = arith.constant 0 : index
    %c0_4 = arith.constant 0 : index
    %2 = vector.load %arg4[%c0_2, %c0_3, %c0_4] : memref<16x16x256xbf16, #tpu.memory_space<vmem>>, vector<16x16x256xbf16>
    %3 = arith.extf %2 : vector<16x16x256xbf16> to vector<16x16x256xf32>
    %c0_5 = arith.constant 0 : index
    %c0_6 = arith.constant 0 : index
    %c0_7 = arith.constant 0 : index
    %c0_8 = arith.constant 0 : index
    %4 = vector.load %arg1[%c0_5, %c0_6, %c0_7, %c0_8] : memref<2x16x1x256xf32, #tpu.memory_space<vmem>>, vector<1x16x1x256xf32>
    %5 = vector.shape_cast %4 : vector<1x16x1x256xf32> to vector<16x1x256xf32>
    %c0_9 = arith.constant 0 : index
    %c0_10 = arith.constant 0 : index
    %c0_11 = arith.constant 0 : index
    %c0_12 = arith.constant 0 : index
    %6 = vector.load %arg2[%c0_9, %c0_10, %c0_11, %c0_12] : memref<2x16x1x256xf32, #tpu.memory_space<vmem>>, vector<1x16x1x256xf32>
    %7 = vector.shape_cast %6 : vector<1x16x1x256xf32> to vector<16x1x256xf32>
    %8 = vector.broadcast %5 : vector<16x1x256xf32> to vector<16x16x256xf32>
    %9 = arith.mulf %8, %1 : vector<16x16x256xf32>
    %cst = arith.constant dense<0.000000e+00> : vector<16x256xf32>
    %10 = vector.multi_reduction <add>, %9, %cst [0] : vector<16x16x256xf32> to vector<16x256xf32>
    %11 = vector.broadcast %7 : vector<16x1x256xf32> to vector<16x16x256xf32>
    %12 = arith.mulf %11, %3 : vector<16x16x256xf32>
    %cst_13 = arith.constant dense<0.000000e+00> : vector<16x256xf32>
    %13 = vector.multi_reduction <add>, %12, %cst_13 [0] : vector<16x16x256xf32> to vector<16x256xf32>
    %14 = vector.broadcast %5 : vector<16x1x256xf32> to vector<16x16x256xf32>
    %15 = arith.mulf %14, %3 : vector<16x16x256xf32>
    %cst_14 = arith.constant dense<0.000000e+00> : vector<16x256xf32>
    %16 = vector.multi_reduction <add>, %15, %cst_14 [0] : vector<16x16x256xf32> to vector<16x256xf32>
    %17 = vector.broadcast %7 : vector<16x1x256xf32> to vector<16x16x256xf32>
    %18 = arith.mulf %17, %1 : vector<16x16x256xf32>
    %cst_15 = arith.constant dense<0.000000e+00> : vector<16x256xf32>
    %19 = vector.multi_reduction <add>, %18, %cst_15 [0] : vector<16x16x256xf32> to vector<16x256xf32>
    %20 = arith.subf %10, %13 : vector<16x256xf32>
    %c0_16 = arith.constant 0 : index
    %c0_17 = arith.constant 0 : index
    %c0_18 = arith.constant 0 : index
    %21 = vector.load %arg5[%c0_16, %c0_17, %c0_18] : memref<2x16x256xf32, #tpu.memory_space<vmem>>, vector<1x16x256xf32>
    %22 = vector.shape_cast %21 : vector<1x16x256xf32> to vector<16x256xf32>
    %23 = vector.shape_cast %20 : vector<16x256xf32> to vector<1x16x256xf32>
    tpu.vector_store %arg5[%c0_16, %c0_17, %c0_18], %23 {strides = array<i32>} : memref<2x16x256xf32, #tpu.memory_space<vmem>>, vector<1x16x256xf32>,
    %24 = arith.addf %16, %19 : vector<16x256xf32>
    %c0_19 = arith.constant 0 : index
    %c0_20 = arith.constant 0 : index
    %c0_21 = arith.constant 0 : index
    %25 = vector.load %arg6[%c0_19, %c0_20, %c0_21] : memref<2x16x256xf32, #tpu.memory_space<vmem>>, vector<1x16x256xf32>
    %26 = vector.shape_cast %25 : vector<1x16x256xf32> to vector<16x256xf32>
    %27 = vector.shape_cast %24 : vector<16x256xf32> to vector<1x16x256xf32>
    tpu.vector_store %arg6[%c0_19, %c0_20, %c0_21], %27 {strides = array<i32>} : memref<2x16x256xf32, #tpu.memory_space<vmem>>, vector<1x16x256xf32>,
    %c1 = arith.constant 1 : index
    %c0_22 = arith.constant 0 : index
    %c0_23 = arith.constant 0 : index
    %c0_24 = arith.constant 0 : index
    %28 = vector.load %arg1[%c1, %c0_22, %c0_23, %c0_24] : memref<2x16x1x256xf32, #tpu.memory_space<vmem>>, vector<1x16x1x256xf32>
    %29 = vector.shape_cast %28 : vector<1x16x1x256xf32> to vector<16x1x256xf32>
    %c1_25 = arith.constant 1 : index
    %c0_26 = arith.constant 0 : index
    %c0_27 = arith.constant 0 : index
    %c0_28 = arith.constant 0 : index
    %30 = vector.load %arg2[%c1_25, %c0_26, %c0_27, %c0_28] : memref<2x16x1x256xf32, #tpu.memory_space<vmem>>, vector<1x16x1x256xf32>
    %31 = vector.shape_cast %30 : vector<1x16x1x256xf32> to vector<16x1x256xf32>
    %32 = vector.broadcast %29 : vector<16x1x256xf32> to vector<16x16x256xf32>
    %33 = arith.mulf %32, %1 : vector<16x16x256xf32>
    %cst_29 = arith.constant dense<0.000000e+00> : vector<16x256xf32>
    %34 = vector.multi_reduction <add>, %33, %cst_29 [0] : vector<16x16x256xf32> to vector<16x256xf32>
    %35 = vector.broadcast %31 : vector<16x1x256xf32> to vector<16x16x256xf32>
    %36 = arith.mulf %35, %3 : vector<16x16x256xf32>
    %cst_30 = arith.constant dense<0.000000e+00> : vector<16x256xf32>
    %37 = vector.multi_reduction <add>, %36, %cst_30 [0] : vector<16x16x256xf32> to vector<16x256xf32>
    %38 = vector.broadcast %29 : vector<16x1x256xf32> to vector<16x16x256xf32>
    %39 = arith.mulf %38, %3 : vector<16x16x256xf32>
    %cst_31 = arith.constant dense<0.000000e+00> : vector<16x256xf32>
    %40 = vector.multi_reduction <add>, %39, %cst_31 [0] : vector<16x16x256xf32> to vector<16x256xf32>
    %41 = vector.broadcast %31 : vector<16x1x256xf32> to vector<16x16x256xf32>
    %42 = arith.mulf %41, %1 : vector<16x16x256xf32>
    %cst_32 = arith.constant dense<0.000000e+00> : vector<16x256xf32>
    %43 = vector.multi_reduction <add>, %42, %cst_32 [0] : vector<16x16x256xf32> to vector<16x256xf32>
    %44 = arith.subf %34, %37 : vector<16x256xf32>
    %c1_33 = arith.constant 1 : index
    %c0_34 = arith.constant 0 : index
    %c0_35 = arith.constant 0 : index
    %45 = vector.load %arg5[%c1_33, %c0_34, %c0_35] : memref<2x16x256xf32, #tpu.memory_space<vmem>>, vector<1x16x256xf32>
    %46 = vector.shape_cast %45 : vector<1x16x256xf32> to vector<16x256xf32>
    %47 = vector.shape_cast %44 : vector<16x256xf32> to vector<1x16x256xf32>
    tpu.vector_store %arg5[%c1_33, %c0_34, %c0_35], %47 {strides = array<i32>} : memref<2x16x256xf32, #tpu.memory_space<vmem>>, vector<1x16x256xf32>,
    %48 = arith.addf %40, %43 : vector<16x256xf32>
    %c1_36 = arith.constant 1 : index
    %c0_37 = arith.constant 0 : index
    %c0_38 = arith.constant 0 : index
    %49 = vector.load %arg6[%c1_36, %c0_37, %c0_38] : memref<2x16x256xf32, #tpu.memory_space<vmem>>, vector<1x16x256xf32>
    %50 = vector.shape_cast %49 : vector<1x16x256xf32> to vector<16x256xf32>
    %51 = vector.shape_cast %48 : vector<16x256xf32> to vector<1x16x256xf32>
    tpu.vector_store %arg6[%c1_36, %c0_37, %c0_38], %51 {strides = array<i32>} : memref<2x16x256xf32, #tpu.memory_space<vmem>>, vector<1x16x256xf32>,
    return
  }
  func.func @transform_0(%arg0: i32) -> (i32, i32, i32, i32) {
    %c0_i32 = arith.constant 0 : i32
    %c0_i32_0 = arith.constant 0 : i32
    %c0_i32_1 = arith.constant 0 : i32
    %c0_i32_2 = arith.constant 0 : i32
    return %c0_i32, %c0_i32_0, %c0_i32_1, %arg0 : i32, i32, i32, i32
  }
  func.func @transform_1(%arg0: i32) -> (i32, i32, i32, i32) {
    %c0_i32 = arith.constant 0 : i32
    %c0_i32_0 = arith.constant 0 : i32
    %c0_i32_1 = arith.constant 0 : i32
    %c0_i32_2 = arith.constant 0 : i32
    return %c0_i32, %c0_i32_0, %c0_i32_1, %arg0 : i32, i32, i32, i32
  }
  func.func @transform_2(%arg0: i32) -> (i32, i32, i32) {
    %c0_i32 = arith.constant 0 : i32
    %c0_i32_0 = arith.constant 0 : i32
    %c0_i32_1 = arith.constant 0 : i32
    return %c0_i32, %c0_i32_0, %arg0 : i32, i32, i32
  }
  func.func @transform_3(%arg0: i32) -> (i32, i32, i32) {
    %c0_i32 = arith.constant 0 : i32
    %c0_i32_0 = arith.constant 0 : i32
    %c0_i32_1 = arith.constant 0 : i32
    return %c0_i32, %c0_i32_0, %arg0 : i32, i32, i32
  }
  func.func @transform_4(%arg0: i32) -> (i32, i32, i32) {
    %c0_i32 = arith.constant 0 : i32
    %c0_i32_0 = arith.constant 0 : i32
    %c0_i32_1 = arith.constant 0 : i32
    return %c0_i32, %c0_i32_0, %arg0 : i32, i32, i32
  }
  func.func @transform_5(%arg0: i32) -> (i32, i32, i32) {
    %c0_i32 = arith.constant 0 : i32
    %c0_i32_0 = arith.constant 0 : i32
    %c0_i32_1 = arith.constant 0 : i32
    return %c0_i32, %c0_i32_0, %arg0 : i32, i32, i32
  }
}

module attributes {stable_mosaic.version = 11 : i64} {
  func.func @_skip_kernel(%arg0: i32, %arg1: memref<16x1024xf32, #tpu.memory_space<vmem>>, %arg2: memref<16x1024xf32, #tpu.memory_space<vmem>>, %arg3: memref<16x16xbf16, #tpu.memory_space<vmem>>, %arg4: memref<16x1xf32, #tpu.memory_space<vmem>>, %arg5: memref<16x1024xf32, #tpu.memory_space<vmem>>) attributes {dimension_semantics = [#tpu.dimension_semantics<parallel>], iteration_bounds = array<i64: 1>, scalar_prefetch = 0 : i64, scratch_operands = 0 : i64, tpu.core_type = #tpu.core_type<tc>, window_params = [{transform_indices = @transform_0, window_bounds = array<i64: 16, 1024>}, {transform_indices = @transform_1, window_bounds = array<i64: 16, 1024>}, {pipeline_mode = #tpu.pipeline_mode<synchronous>, transform_indices = @transform_2, window_bounds = array<i64: 16, 16>}, {pipeline_mode = #tpu.pipeline_mode<synchronous>, transform_indices = @transform_3, window_bounds = array<i64: 16, 1>}, {transform_indices = @transform_4, window_bounds = array<i64: 16, 1024>}]} {
    %c0 = arith.constant 0 : index
    %c0_0 = arith.constant 0 : index
    %0 = vector.load %arg1[%c0, %c0_0] : memref<16x1024xf32, #tpu.memory_space<vmem>>, vector<16x1024xf32>
    %1 = arith.truncf %0 : vector<16x1024xf32> to vector<16x1024xbf16>
    %c0_1 = arith.constant 0 : index
    %c0_2 = arith.constant 0 : index
    %2 = vector.load %arg3[%c0_1, %c0_2] : memref<16x16xbf16, #tpu.memory_space<vmem>>, vector<16x16xbf16>
    %cst = arith.constant dense<0.000000e+00> : vector<16x1024xf32>
    %3 = tpu.matmul %2, %1, %cst {dimension_numbers = #tpu.dot_dimension_numbers<[1], [0], [0], [1], [0, 0, 1, 1], [], []>} : vector<16x16xbf16>, vector<16x1024xbf16>, vector<16x1024xf32> -> vector<16x1024xf32>
    %c0_3 = arith.constant 0 : index
    %c0_4 = arith.constant 0 : index
    %4 = vector.load %arg4[%c0_3, %c0_4] : memref<16x1xf32, #tpu.memory_space<vmem>>, vector<16x1xf32>
    %5 = vector.broadcast %4 : vector<16x1xf32> to vector<16x1024xf32>
    %6 = arith.addf %3, %5 : vector<16x1024xf32>
    %c0_5 = arith.constant 0 : index
    %c0_6 = arith.constant 0 : index
    %7 = vector.load %arg2[%c0_5, %c0_6] : memref<16x1024xf32, #tpu.memory_space<vmem>>, vector<16x1024xf32>
    %8 = arith.addf %6, %7 : vector<16x1024xf32>
    %9 = arith.mulf %8, %8 : vector<16x1024xf32>
    %10 = arith.mulf %8, %9 : vector<16x1024xf32>
    %cst_7 = arith.constant 4.471500e-02 : f32
    %11 = vector.broadcast %cst_7 : f32 to vector<16x1024xf32>
    %12 = arith.mulf %11, %10 : vector<16x1024xf32>
    %13 = arith.addf %8, %12 : vector<16x1024xf32>
    %cst_8 = arith.constant 0.797884583 : f32
    %14 = vector.broadcast %cst_8 : f32 to vector<16x1024xf32>
    %15 = arith.mulf %14, %13 : vector<16x1024xf32>
    %16 = math.tanh %15 : vector<16x1024xf32>
    %cst_9 = arith.constant 1.000000e+00 : f32
    %17 = vector.broadcast %cst_9 : f32 to vector<16x1024xf32>
    %18 = arith.addf %17, %16 : vector<16x1024xf32>
    %cst_10 = arith.constant 5.000000e-01 : f32
    %19 = vector.broadcast %cst_10 : f32 to vector<16x1024xf32>
    %20 = arith.mulf %19, %18 : vector<16x1024xf32>
    %21 = arith.mulf %8, %20 : vector<16x1024xf32>
    %c0_11 = arith.constant 0 : index
    %c0_12 = arith.constant 0 : index
    %22 = vector.load %arg5[%c0_11, %c0_12] : memref<16x1024xf32, #tpu.memory_space<vmem>>, vector<16x1024xf32>
    tpu.vector_store %arg5[%c0_11, %c0_12], %21 {strides = array<i32>} : memref<16x1024xf32, #tpu.memory_space<vmem>>, vector<16x1024xf32>,
    return
  }
  func.func @transform_0(%arg0: i32) -> (i32, i32) {
    %c0_i32 = arith.constant 0 : i32
    %c0_i32_0 = arith.constant 0 : i32
    return %c0_i32, %arg0 : i32, i32
  }
  func.func @transform_1(%arg0: i32) -> (i32, i32) {
    %c0_i32 = arith.constant 0 : i32
    %c0_i32_0 = arith.constant 0 : i32
    return %c0_i32, %arg0 : i32, i32
  }
  func.func @transform_2(%arg0: i32) -> (i32, i32) {
    %c0_i32 = arith.constant 0 : i32
    %c0_i32_0 = arith.constant 0 : i32
    %c0_i32_1 = arith.constant 0 : i32
    return %c0_i32, %c0_i32_0 : i32, i32
  }
  func.func @transform_3(%arg0: i32) -> (i32, i32) {
    %c0_i32 = arith.constant 0 : i32
    %c0_i32_0 = arith.constant 0 : i32
    %c0_i32_1 = arith.constant 0 : i32
    return %c0_i32, %c0_i32_0 : i32, i32
  }
  func.func @transform_4(%arg0: i32) -> (i32, i32) {
    %c0_i32 = arith.constant 0 : i32
    %c0_i32_0 = arith.constant 0 : i32
    return %c0_i32, %arg0 : i32, i32
  }
}

module attributes {stable_mosaic.version = 11 : i64} {
  func.func @_skip_kernel(%arg0: i32, %arg1: memref<16x1024xf32, #tpu.memory_space<vmem>>, %arg2: memref<16x1024xf32, #tpu.memory_space<vmem>>, %arg3: memref<16x16xbf16, #tpu.memory_space<vmem>>, %arg4: memref<16x1xf32, #tpu.memory_space<vmem>>, %arg5: memref<16x1024xf32, #tpu.memory_space<vmem>>) attributes {dimension_semantics = [#tpu.dimension_semantics<parallel>], iteration_bounds = array<i64: 1>, scalar_prefetch = 0 : i64, scratch_operands = 0 : i64, tpu.core_type = #tpu.core_type<tc>, window_params = [{transform_indices = @transform_0, window_bounds = array<i64: 16, 1024>}, {transform_indices = @transform_1, window_bounds = array<i64: 16, 1024>}, {pipeline_mode = #tpu.pipeline_mode<synchronous>, transform_indices = @transform_2, window_bounds = array<i64: 16, 16>}, {pipeline_mode = #tpu.pipeline_mode<synchronous>, transform_indices = @transform_3, window_bounds = array<i64: 16, 1>}, {transform_indices = @transform_4, window_bounds = array<i64: 16, 1024>}]} {
    %c0 = arith.constant 0 : index
    %c0_0 = arith.constant 0 : index
    %0 = vector.load %arg1[%c0, %c0_0] : memref<16x1024xf32, #tpu.memory_space<vmem>>, vector<16x1024xf32>
    %1 = arith.truncf %0 : vector<16x1024xf32> to vector<16x1024xbf16>
    %c0_1 = arith.constant 0 : index
    %c0_2 = arith.constant 0 : index
    %2 = vector.load %arg3[%c0_1, %c0_2] : memref<16x16xbf16, #tpu.memory_space<vmem>>, vector<16x16xbf16>
    %cst = arith.constant dense<0.000000e+00> : vector<16x1024xf32>
    %3 = tpu.matmul %2, %1, %cst {dimension_numbers = #tpu.dot_dimension_numbers<[1], [0], [0], [1], [0, 0, 1, 1], [], []>} : vector<16x16xbf16>, vector<16x1024xbf16>, vector<16x1024xf32> -> vector<16x1024xf32>
    %c0_3 = arith.constant 0 : index
    %c0_4 = arith.constant 0 : index
    %4 = vector.load %arg4[%c0_3, %c0_4] : memref<16x1xf32, #tpu.memory_space<vmem>>, vector<16x1xf32>
    %5 = vector.broadcast %4 : vector<16x1xf32> to vector<16x1024xf32>
    %6 = arith.addf %3, %5 : vector<16x1024xf32>
    %c0_5 = arith.constant 0 : index
    %c0_6 = arith.constant 0 : index
    %7 = vector.load %arg2[%c0_5, %c0_6] : memref<16x1024xf32, #tpu.memory_space<vmem>>, vector<16x1024xf32>
    %8 = arith.addf %6, %7 : vector<16x1024xf32>
    %c0_7 = arith.constant 0 : index
    %c0_8 = arith.constant 0 : index
    %9 = vector.load %arg5[%c0_7, %c0_8] : memref<16x1024xf32, #tpu.memory_space<vmem>>, vector<16x1024xf32>
    tpu.vector_store %arg5[%c0_7, %c0_8], %8 {strides = array<i32>} : memref<16x1024xf32, #tpu.memory_space<vmem>>, vector<16x1024xf32>,
    return
  }
  func.func @transform_0(%arg0: i32) -> (i32, i32) {
    %c0_i32 = arith.constant 0 : i32
    %c0_i32_0 = arith.constant 0 : i32
    return %c0_i32, %arg0 : i32, i32
  }
  func.func @transform_1(%arg0: i32) -> (i32, i32) {
    %c0_i32 = arith.constant 0 : i32
    %c0_i32_0 = arith.constant 0 : i32
    return %c0_i32, %arg0 : i32, i32
  }
  func.func @transform_2(%arg0: i32) -> (i32, i32) {
    %c0_i32 = arith.constant 0 : i32
    %c0_i32_0 = arith.constant 0 : i32
    %c0_i32_1 = arith.constant 0 : i32
    return %c0_i32, %c0_i32_0 : i32, i32
  }
  func.func @transform_3(%arg0: i32) -> (i32, i32) {
    %c0_i32 = arith.constant 0 : i32
    %c0_i32_0 = arith.constant 0 : i32
    %c0_i32_1 = arith.constant 0 : i32
    return %c0_i32, %c0_i32_0 : i32, i32
  }
  func.func @transform_4(%arg0: i32) -> (i32, i32) {
    %c0_i32 = arith.constant 0 : i32
    %c0_i32_0 = arith.constant 0 : i32
    return %c0_i32, %arg0 : i32, i32
  }
}

module attributes {stable_mosaic.version = 11 : i64} {
  func.func @_proj_kernel(%arg0: i32, %arg1: memref<16x1024xf32, #tpu.memory_space<vmem>>, %arg2: memref<32x16xbf16, #tpu.memory_space<vmem>>, %arg3: memref<32x1xf32, #tpu.memory_space<vmem>>, %arg4: memref<5x32xbf16, #tpu.memory_space<vmem>>, %arg5: memref<5x1xf32, #tpu.memory_space<vmem>>, %arg6: memref<5x1024xf32, #tpu.memory_space<vmem>>) attributes {dimension_semantics = [#tpu.dimension_semantics<parallel>], iteration_bounds = array<i64: 1>, scalar_prefetch = 0 : i64, scratch_operands = 0 : i64, tpu.core_type = #tpu.core_type<tc>, window_params = [{transform_indices = @transform_0, window_bounds = array<i64: 16, 1024>}, {pipeline_mode = #tpu.pipeline_mode<synchronous>, transform_indices = @transform_1, window_bounds = array<i64: 32, 16>}, {pipeline_mode = #tpu.pipeline_mode<synchronous>, transform_indices = @transform_2, window_bounds = array<i64: 32, 1>}, {pipeline_mode = #tpu.pipeline_mode<synchronous>, transform_indices = @transform_3, window_bounds = array<i64: 5, 32>}, {pipeline_mode = #tpu.pipeline_mode<synchronous>, transform_indices = @transform_4, window_bounds = array<i64: 5, 1>}, {transform_indices = @transform_5, window_bounds = array<i64: 5, 1024>}]} {
    %c0 = arith.constant 0 : index
    %c0_0 = arith.constant 0 : index
    %0 = vector.load %arg1[%c0, %c0_0] : memref<16x1024xf32, #tpu.memory_space<vmem>>, vector<16x1024xf32>
    %1 = arith.truncf %0 : vector<16x1024xf32> to vector<16x1024xbf16>
    %c0_1 = arith.constant 0 : index
    %c0_2 = arith.constant 0 : index
    %2 = vector.load %arg2[%c0_1, %c0_2] : memref<32x16xbf16, #tpu.memory_space<vmem>>, vector<32x16xbf16>
    %cst = arith.constant dense<0.000000e+00> : vector<32x1024xf32>
    %3 = tpu.matmul %2, %1, %cst {dimension_numbers = #tpu.dot_dimension_numbers<[1], [0], [0], [1], [0, 0, 1, 1], [], []>} : vector<32x16xbf16>, vector<16x1024xbf16>, vector<32x1024xf32> -> vector<32x1024xf32>
    %c0_3 = arith.constant 0 : index
    %c0_4 = arith.constant 0 : index
    %4 = vector.load %arg3[%c0_3, %c0_4] : memref<32x1xf32, #tpu.memory_space<vmem>>, vector<32x1xf32>
    %5 = vector.broadcast %4 : vector<32x1xf32> to vector<32x1024xf32>
    %6 = arith.addf %3, %5 : vector<32x1024xf32>
    %7 = arith.mulf %6, %6 : vector<32x1024xf32>
    %8 = arith.mulf %6, %7 : vector<32x1024xf32>
    %cst_5 = arith.constant 4.471500e-02 : f32
    %9 = vector.broadcast %cst_5 : f32 to vector<32x1024xf32>
    %10 = arith.mulf %9, %8 : vector<32x1024xf32>
    %11 = arith.addf %6, %10 : vector<32x1024xf32>
    %cst_6 = arith.constant 0.797884583 : f32
    %12 = vector.broadcast %cst_6 : f32 to vector<32x1024xf32>
    %13 = arith.mulf %12, %11 : vector<32x1024xf32>
    %14 = math.tanh %13 : vector<32x1024xf32>
    %cst_7 = arith.constant 1.000000e+00 : f32
    %15 = vector.broadcast %cst_7 : f32 to vector<32x1024xf32>
    %16 = arith.addf %15, %14 : vector<32x1024xf32>
    %cst_8 = arith.constant 5.000000e-01 : f32
    %17 = vector.broadcast %cst_8 : f32 to vector<32x1024xf32>
    %18 = arith.mulf %17, %16 : vector<32x1024xf32>
    %19 = arith.mulf %6, %18 : vector<32x1024xf32>
    %c0_9 = arith.constant 0 : index
    %c0_10 = arith.constant 0 : index
    %20 = vector.load %arg4[%c0_9, %c0_10] : memref<5x32xbf16, #tpu.memory_space<vmem>>, vector<5x32xbf16>
    %21 = arith.truncf %19 : vector<32x1024xf32> to vector<32x1024xbf16>
    %cst_11 = arith.constant dense<0.000000e+00> : vector<5x1024xf32>
    %22 = tpu.matmul %20, %21, %cst_11 {dimension_numbers = #tpu.dot_dimension_numbers<[1], [0], [0], [1], [0, 0, 1, 1], [], []>} : vector<5x32xbf16>, vector<32x1024xbf16>, vector<5x1024xf32> -> vector<5x1024xf32>
    %c0_12 = arith.constant 0 : index
    %c0_13 = arith.constant 0 : index
    %23 = vector.load %arg5[%c0_12, %c0_13] : memref<5x1xf32, #tpu.memory_space<vmem>>, vector<5x1xf32>
    %24 = vector.broadcast %23 : vector<5x1xf32> to vector<5x1024xf32>
    %25 = arith.addf %22, %24 : vector<5x1024xf32>
    %c0_14 = arith.constant 0 : index
    %c0_15 = arith.constant 0 : index
    %26 = vector.load %arg6[%c0_14, %c0_15] : memref<5x1024xf32, #tpu.memory_space<vmem>>, vector<5x1024xf32>
    tpu.vector_store %arg6[%c0_14, %c0_15], %25 {strides = array<i32>} : memref<5x1024xf32, #tpu.memory_space<vmem>>, vector<5x1024xf32>,
    return
  }
  func.func @transform_0(%arg0: i32) -> (i32, i32) {
    %c0_i32 = arith.constant 0 : i32
    %c0_i32_0 = arith.constant 0 : i32
    return %c0_i32, %arg0 : i32, i32
  }
  func.func @transform_1(%arg0: i32) -> (i32, i32) {
    %c0_i32 = arith.constant 0 : i32
    %c0_i32_0 = arith.constant 0 : i32
    %c0_i32_1 = arith.constant 0 : i32
    return %c0_i32, %c0_i32_0 : i32, i32
  }
  func.func @transform_2(%arg0: i32) -> (i32, i32) {
    %c0_i32 = arith.constant 0 : i32
    %c0_i32_0 = arith.constant 0 : i32
    %c0_i32_1 = arith.constant 0 : i32
    return %c0_i32, %c0_i32_0 : i32, i32
  }
  func.func @transform_3(%arg0: i32) -> (i32, i32) {
    %c0_i32 = arith.constant 0 : i32
    %c0_i32_0 = arith.constant 0 : i32
    %c0_i32_1 = arith.constant 0 : i32
    return %c0_i32, %c0_i32_0 : i32, i32
  }
  func.func @transform_4(%arg0: i32) -> (i32, i32) {
    %c0_i32 = arith.constant 0 : i32
    %c0_i32_0 = arith.constant 0 : i32
    %c0_i32_1 = arith.constant 0 : i32
    return %c0_i32, %c0_i32_0 : i32, i32
  }
  func.func @transform_5(%arg0: i32) -> (i32, i32) {
    %c0_i32 = arith.constant 0 : i32
    %c0_i32_0 = arith.constant 0 : i32
    return %c0_i32, %arg0 : i32, i32
  }
}

</mosaic_0001>

<llo_original>
// kernel: fno3d_forward.10
$region0: #{fno3d_forward.10}
  #allocation0 [shape = 'u32[]', space=smem, size = 0x4, offset = 0x4, fixed_abs, tag = 'smem constant byte address 0x4 - core index']
  #allocation1 [shape = 'u32[144,128]{1,0:T(1,128)}', space=vmem, size = 0x12000, scoped, tag = 'internal scratch']
  %s0 = inlined_call_operand.vmem [shape: f32[6,1024], index: 0, kind: input, shape index: {}]
  %s1 = inlined_call_operand.vmem [shape: bf16[16,6], index: 1, kind: input, shape index: {}]
  %s2 = inlined_call_operand.vmem [shape: f32[16,1], index: 2, kind: input, shape index: {}]
  %s3 = inlined_call_operand.vmem [shape: f32[16,1024], index: 3, kind: output, shape index: {}]
  %s4 = sld [smem:[#allocation0]]
  $region22: #{fno3d_forward.10} parent=0
    _
  %s6 = ssub.s32 1, %s4
  %s7 = scalar_select 0, %s6, %s4
  // Predicated region
  $region2: #{fno3d_forward.10} parent=0 // pred_check
    _
  $region3: #{fno3d_forward.10} parent=0 // pred_check_branch
    %9 = sbr.rel (0) target = $region5
  $region4: #{fno3d_forward.10} parent=0 // pred_region
    _
  $region5: #{fno3d_forward.10} parent=0 // pred_fallthru
    _
  // Predicated region
  $region6: #{fno3d_forward.10} parent=0 // pred_check
    _
  $region7: #{fno3d_forward.10} parent=0 // pred_check_branch
    %11 = sbr.rel (0) target = $region9
  $region8: #{fno3d_forward.10} parent=0 // pred_region
    _
  $region9: #{fno3d_forward.10} parent=0 // pred_fallthru
    _
  // Predicated region
  $region10: #{fno3d_forward.10} parent=0 // pred_check
    _
  $region11: #{fno3d_forward.10} parent=0 // pred_check_branch
    %13 = sbr.rel (0) target = $region13
  $region12: #{fno3d_forward.10} parent=0 // pred_region
    _
  $region13: #{fno3d_forward.10} parent=0 // pred_fallthru
    _
  %v15 = vld [vmem:[%s0] sm:$0x3f]
  %v16 = vld [vmem:[%s0 + $0x8] sm:$0x3f]
  %v17 = vld [vmem:[%s0 + $0x10] sm:$0x3f]
  %v18 = vld [vmem:[%s0 + $0x18] sm:$0x3f]
  %v19 = vld [vmem:[%s0 + $0x20] sm:$0x3f]
  %v20 = vld [vmem:[%s0 + $0x28] sm:$0x3f]
  %v21 = vld [vmem:[%s0 + $0x30] sm:$0x3f]
  %v22 = vld [vmem:[%s0 + $0x38] sm:$0x3f]
  %v23 = vpack.c.bf16 %v15, %v15
  %v24 = vpack.c.bf16 %v16, %v16
  %v25 = vpack.c.bf16 %v17, %v17
  %v26 = vpack.c.bf16 %v18, %v18
  %v27 = vpack.c.bf16 %v19, %v19
  %v28 = vpack.c.bf16 %v20, %v20
  %v29 = vpack.c.bf16 %v21, %v21
  %v30 = vpack.c.bf16 %v22, %v22
  %v31 = vld [vmem:[%s1] sm:$0xf]
  %v32 = vld [vmem:[%s1 + $0x4] sm:$0xf]
  %v33 = vld [vmem:[%s2] sm:$0xff]
  %v34 = vld [vmem:[%s2 + $0x8] sm:$0xff]
  %36 = vset.pattern.permute.xlu0 0
  %37 = vperm.xlu0 %36, %v33
  %v38 = vpop.permute.xlu0 %37
  %41 = vset.pattern.permute.xlu0 0
  %42 = vperm.xlu0 %41, %v34
  %v43 = vpop.permute.xlu0 %42
  %v47 = vunpack.c.l.b16 %v31
  %v48 = vunpack.c.l.b16 %v32
  %v49 = vpack.c.b16 %v48, %v47
  %vm50 = vcmask 48128
  %v52 = vsel %vm50, %v49, 0
  %vm54 = vcmask 1042432
  %v56 = vsel %vm54, %v23, 0
  %v59 = vsel %vm54, %v24, 0
  %v62 = vsel %vm54, %v25, 0
  %v65 = vsel %vm54, %v26, 0
  %v68 = vsel %vm54, %v27, 0
  %v71 = vsel %vm54, %v28, 0
  %v74 = vsel %vm54, %v29, 0
  %v77 = vsel %vm54, %v30, 0
  %79 = vmatprep.subr.bf16.mxu0 %v59
  %80 = vmatpush1.bf16.msra.mxu0 %v56
  %81 = vmatprep.subr.bf16.mxu0 0
  %82 = vmatpush1.bf16.msra.mxu0 0
  %83 = vmatprep.subr.bf16.mxu0 0
  %84 = vmatpush1.bf16.msra.mxu0 0
  %85 = vmatprep.subr.bf16.mxu0 0
  %86 = vmatpush1.bf16.msra.mxu0 0
  %87 = vmatprep.subr.bf16.mxu0 0
  %88 = vmatpush1.bf16.msra.mxu0 0
  %89 = vmatprep.subr.bf16.mxu0 0
  %90 = vmatpush1.bf16.msra.mxu0 0
  %91 = vmatprep.subr.bf16.mxu0 0
  %92 = vmatpush1.bf16.msra.mxu0 0
  %93 = vmatprep.subr.bf16.mxu0 0
  %94 = vmatpush1.bf16.msra.mxu0 0
  %95 = vmatprep.subr.bf16.mxu0 0
  %96 = vmatpush1.bf16.msra.mxu0 0
  %97 = vmatprep.subr.bf16.mxu0 0
  %98 = vmatpush1.bf16.msra.mxu0 0
  %99 = vmatprep.subr.bf16.mxu0 0
  %100 = vmatpush1.bf16.msra.mxu0 0
  %101 = vmatprep.subr.bf16.mxu0 0
  %102 = vmatpush1.bf16.msra.mxu0 0
  %103 = vmatprep.subr.bf16.mxu0 0
  %104 = vmatpush1.bf16.msra.mxu0 0
  %105 = vmatprep.subr.bf16.mxu0 0
  %106 = vmatpush1.bf16.msra.mxu0 0
  %107 = vmatprep.subr.bf16.mxu0 0
  %108 = vmatpush1.bf16.msra.mxu0 0
  %109 = vmatprep.subr.bf16.mxu0 0
  %110 = vmatpush1.bf16.msra.mxu0 0
  %111 = vmatprep.mubr.bf16.mxu0 0
  %112 = vmatmul.mubr.bf16.gmra.mrb[0].mxu0 %v52
  %v113 = vpop.f32.mrb[0].mxu0
  %v114 = vadd.f32 %v38, %v113
  %v115 = vpop.f32.mrb[0].mxu0
  %v116 = vadd.f32 %v38, %v115
  %v117 = vpop.f32.mrb[0].mxu0
  %v118 = vadd.f32 %v43, %v117
  %v119 = vpop.f32.mrb[0].mxu0
  %v120 = vadd.f32 %v43, %v119
  %121 = vdwg.mxu0
  %122 = vmatprep.subr.bf16.mxu0 %v65
  %123 = vmatpush1.bf16.msra.mxu0 %v62
  %124 = vmatprep.subr.bf16.mxu0 0
  %125 = vmatpush1.bf16.msra.mxu0 0
  %126 = vmatprep.subr.bf16.mxu0 0
  %127 = vmatpush1.bf16.msra.mxu0 0
  %128 = vmatprep.subr.bf16.mxu0 0
  %129 = vmatpush1.bf16.msra.mxu0 0
  %130 = vmatprep.subr.bf16.mxu0 0
  %131 = vmatpush1.bf16.msra.mxu0 0
  %132 = vmatprep.subr.bf16.mxu0 0
  %133 = vmatpush1.bf16.msra.mxu0 0
  %134 = vmatprep.subr.bf16.mxu0 0
  %135 = vmatpush1.bf16.msra.mxu0 0
  %136 = vmatprep.subr.bf16.mxu0 0
  %137 = vmatpush1.bf16.msra.mxu0 0
  %138 = vmatprep.subr.bf16.mxu0 0
  %139 = vmatpush1.bf16.msra.mxu0 0
  %140 = vmatprep.subr.bf16.mxu0 0
  %141 = vmatpush1.bf16.msra.mxu0 0
  %142 = vmatprep.subr.bf16.mxu0 0
  %143 = vmatpush1.bf16.msra.mxu0 0
  %144 = vmatprep.subr.bf16.mxu0 0
  %145 = vmatpush1.bf16.msra.mxu0 0
  %146 = vmatprep.subr.bf16.mxu0 0
  %147 = vmatpush1.bf16.msra.mxu0 0
  %148 = vmatprep.subr.bf16.mxu0 0
  %149 = vmatpush1.bf16.msra.mxu0 0
  %150 = vmatprep.subr.bf16.mxu0 0
  %151 = vmatpush1.bf16.msra.mxu0 0
  %152 = vmatprep.subr.bf16.mxu0 0
  %153 = vmatpush1.bf16.msra.mxu0 0
  %154 = vmatprep.mubr.bf16.mxu0 0
  %155 = vmatmul.mubr.bf16.gmra.mrb[0].mxu0 %v52
  %v156 = vpop.f32.mrb[0].mxu0
  %v157 = vadd.f32 %v38, %v156
  %v158 = vpop.f32.mrb[0].mxu0
  %v159 = vadd.f32 %v38, %v158
  %v160 = vpop.f32.mrb[0].mxu0
  %v161 = vadd.f32 %v43, %v160
  %v162 = vpop.f32.mrb[0].mxu0
  %v163 = vadd.f32 %v43, %v162
  %164 = vdwg.mxu0
  %165 = vmatprep.subr.bf16.mxu0 %v71
  %166 = vmatpush1.bf16.msra.mxu0 %v68
  %167 = vmatprep.subr.bf16.mxu0 0
  %168 = vmatpush1.bf16.msra.mxu0 0
  %169 = vmatprep.subr.bf16.mxu0 0
  %170 = vmatpush1.bf16.msra.mxu0 0
  %171 = vmatprep.subr.bf16.mxu0 0
  %172 = vmatpush1.bf16.msra.mxu0 0
  %173 = vmatprep.subr.bf16.mxu0 0
  %174 = vmatpush1.bf16.msra.mxu0 0
  %175 = vmatprep.subr.bf16.mxu0 0
  %176 = vmatpush1.bf16.msra.mxu0 0
  %177 = vmatprep.subr.bf16.mxu0 0
  %178 = vmatpush1.bf16.msra.mxu0 0
  %179 = vmatprep.subr.bf16.mxu0 0
  %180 = vmatpush1.bf16.msra.mxu0 0
  %181 = vmatprep.subr.bf16.mxu0 0
  %182 = vmatpush1.bf16.msra.mxu0 0
  %183 = vmatprep.subr.bf16.mxu0 0
  %184 = vmatpush1.bf16.msra.mxu0 0
  %185 = vmatprep.subr.bf16.mxu0 0
  %186 = vmatpush1.bf16.msra.mxu0 0
  %187 = vmatprep.subr.bf16.mxu0 0
  %188 = vmatpush1.bf16.msra.mxu0 0
  %189 = vmatprep.subr.bf16.mxu0 0
  %190 = vmatpush1.bf16.msra.mxu0 0
  %191 = vmatprep.subr.bf16.mxu0 0
  %192 = vmatpush1.bf16.msra.mxu0 0
  %193 = vmatprep.subr.bf16.mxu0 0
  %194 = vmatpush1.bf16.msra.mxu0 0
  %195 = vmatprep.subr.bf16.mxu0 0
  %196 = vmatpush1.bf16.msra.mxu0 0
  %197 = vmatprep.mubr.bf16.mxu0 0
  %198 = vmatmul.mubr.bf16.gmra.mrb[0].mxu0 %v52
  %v199 = vpop.f32.mrb[0].mxu0
  %v200 = vadd.f32 %v38, %v199
  %v201 = vpop.f32.mrb[0].mxu0
  %v202 = vadd.f32 %v38, %v201
  %v203 = vpop.f32.mrb[0].mxu0
  %v204 = vadd.f32 %v43, %v203
  %v205 = vpop.f32.mrb[0].mxu0
  %v206 = vadd.f32 %v43, %v205
  %207 = vdwg.mxu0
  %208 = vmatprep.subr.bf16.mxu0 %v77
  %209 = vmatpush1.bf16.msra.mxu0 %v74
  %210 = vmatprep.subr.bf16.mxu0 0
  %211 = vmatpush1.bf16.msra.mxu0 0
  %212 = vmatprep.subr.bf16.mxu0 0
  %213 = vmatpush1.bf16.msra.mxu0 0
  %214 = vmatprep.subr.bf16.mxu0 0
  %215 = vmatpush1.bf16.msra.mxu0 0
  %216 = vmatprep.subr.bf16.mxu0 0
  %217 = vmatpush1.bf16.msra.mxu0 0
  %218 = vmatprep.subr.bf16.mxu0 0
  %219 = vmatpush1.bf16.msra.mxu0 0
  %220 = vmatprep.subr.bf16.mxu0 0
  %221 = vmatpush1.bf16.msra.mxu0 0
  %222 = vmatprep.subr.bf16.mxu0 0
  %223 = vmatpush1.bf16.msra.mxu0 0
  %224 = vmatprep.subr.bf16.mxu0 0
  %225 = vmatpush1.bf16.msra.mxu0 0
  %226 = vmatprep.subr.bf16.mxu0 0
  %227 = vmatpush1.bf16.msra.mxu0 0
  %228 = vmatprep.subr.bf16.mxu0 0
  %229 = vmatpush1.bf16.msra.mxu0 0
  %230 = vmatprep.subr.bf16.mxu0 0
  %231 = vmatpush1.bf16.msra.mxu0 0
  %232 = vmatprep.subr.bf16.mxu0 0
  %233 = vmatpush1.bf16.msra.mxu0 0
  %234 = vmatprep.subr.bf16.mxu0 0
  %235 = vmatpush1.bf16.msra.mxu0 0
  %236 = vmatprep.subr.bf16.mxu0 0
  %237 = vmatpush1.bf16.msra.mxu0 0
  %238 = vmatprep.subr.bf16.mxu0 0
  %239 = vmatpush1.bf16.msra.mxu0 0
  %240 = vmatprep.mubr.bf16.mxu0 0
  %241 = vmatmul.mubr.bf16.gmra.mrb[0].mxu0 %v52
  %v242 = vpop.f32.mrb[0].mxu0
  %v243 = vadd.f32 %v38, %v242
  %v244 = vpop.f32.mrb[0].mxu0
  %v245 = vadd.f32 %v38, %v244
  %v246 = vpop.f32.mrb[0].mxu0
  %v247 = vadd.f32 %v43, %v246
  %v248 = vpop.f32.mrb[0].mxu0
  %v249 = vadd.f32 %v43, %v248
  %250 = vdwg.mxu0
  %251 = vst [vmem:[%s3] sm:$0xff] %v114
  %252 = vst [vmem:[%s3 + $0x8] sm:$0xff] %v116
  %253 = vst [vmem:[%s3 + $0x10] sm:$0xff] %v157
  %254 = vst [vmem:[%s3 + $0x18] sm:$0xff] %v159
  %255 = vst [vmem:[%s3 + $0x20] sm:$0xff] %v200
  %256 = vst [vmem:[%s3 + $0x28] sm:$0xff] %v202
  %257 = vst [vmem:[%s3 + $0x30] sm:$0xff] %v243
  %258 = vst [vmem:[%s3 + $0x38] sm:$0xff] %v245
  %259 = vst [vmem:[%s3 + $0x40] sm:$0xff] %v118
  %260 = vst [vmem:[%s3 + $0x48] sm:$0xff] %v120
  %261 = vst [vmem:[%s3 + $0x50] sm:$0xff] %v161
  %262 = vst [vmem:[%s3 + $0x58] sm:$0xff] %v163
  %263 = vst [vmem:[%s3 + $0x60] sm:$0xff] %v204
  %264 = vst [vmem:[%s3 + $0x68] sm:$0xff] %v206
  %265 = vst [vmem:[%s3 + $0x70] sm:$0xff] %v247
  %266 = vst [vmem:[%s3 + $0x78] sm:$0xff] %v249
  // Predicated region
  $region14: #{fno3d_forward.10} parent=0 // pred_check
    _
  $region15: #{fno3d_forward.10} parent=0 // pred_check_branch
    %268 = sbr.rel (0) target = $region17
  $region16: #{fno3d_forward.10} parent=0 // pred_region
    _
  $region17: #{fno3d_forward.10} parent=0 // pred_fallthru
    _
  // Predicated region
  $region18: #{fno3d_forward.10} parent=0 // pred_check
    _
  $region19: #{fno3d_forward.10} parent=0 // pred_check_branch
    %270 = sbr.rel (0) target = $region21
  $region20: #{fno3d_forward.10} parent=0 // pred_region
    _
  $region21: #{fno3d_forward.10} parent=0 // pred_fallthru
    _

// kernel: fno3d_forward.11
$region0: #{fno3d_forward.11}
  #allocation0 [shape = 'u32[]', space=smem, size = 0x4, offset = 0x4, fixed_abs, tag = 'smem constant byte address 0x4 - core index']
  #allocation1 [shape = 'u32[144,128]{1,0:T(1,128)}', space=vmem, size = 0x12000, scoped, tag = 'internal scratch']
  %s0 = inlined_call_operand.vmem [shape: f32[2,16,1,256], index: 0, kind: input, shape index: {}]
  %s1 = inlined_call_operand.vmem [shape: f32[2,16,1,256], index: 1, kind: input, shape index: {}]
  %s2 = inlined_call_operand.vmem [shape: bf16[16,16,256], index: 2, kind: input, shape index: {}]
  %s3 = inlined_call_operand.vmem [shape: bf16[16,16,256], index: 3, kind: input, shape index: {}]
  %s4 = inlined_call_operand.vmem [shape: f32[2,16,256], index: 4, kind: output, shape index: {0}]
  %s5 = inlined_call_operand.vmem [shape: f32[2,16,256], index: 5, kind: output, shape index: {1}]
  %6 = xla_tuple %s4, %s5
  %s7 = sld [smem:[#allocation0]]
  $region34: #{fno3d_forward.11} parent=0
    _
  %s9 = ssub.s32 1, %s7
  %s10 = scalar_select 0, %s9, %s7
  // Predicated region
  $region2: #{fno3d_forward.11} parent=0 // pred_check
    _
  $region3: #{fno3d_forward.11} parent=0 // pred_check_branch
    %12 = sbr.rel (0) target = $region5
  $region4: #{fno3d_forward.11} parent=0 // pred_region
    _
  $region5: #{fno3d_forward.11} parent=0 // pred_fallthru
    _
  // Predicated region
  $region6: #{fno3d_forward.11} parent=0 // pred_check
    _
  $region7: #{fno3d_forward.11} parent=0 // pred_check_branch
    %14 = sbr.rel (0) target = $region9
  $region8: #{fno3d_forward.11} parent=0 // pred_region
    _
  $region9: #{fno3d_forward.11} parent=0 // pred_fallthru
    _
  // Predicated region
  $region10: #{fno3d_forward.11} parent=0 // pred_check
    _
  $region11: #{fno3d_forward.11} parent=0 // pred_check_branch
    %16 = sbr.rel (0) target = $region13
  $region12: #{fno3d_forward.11} parent=0 // pred_region
    _
  $region13: #{fno3d_forward.11} parent=0 // pred_fallthru
    _
  // Predicated region
  $region14: #{fno3d_forward.11} parent=0 // pred_check
    _
  $region15: #{fno3d_forward.11} parent=0 // pred_check_branch
    %18 = sbr.rel (0) target = $region17
  $region16: #{fno3d_forward.11} parent=0 // pred_region
    _
  $region17: #{fno3d_forward.11} parent=0 // pred_fallthru
    _
  %v19 = vld [vmem:[%s2] sm:$0xff]
  %v20 = vld [vmem:[%s2 + $0x8] sm:$0xff]
  %v21 = vld [vmem:[%s2 + $0x10] sm:$0xff]
  %v22 = vld [vmem:[%s2 + $0x18] sm:$0xff]
  %v23 = vld [vmem:[%s2 + $0x20] sm:$0xff]
  %v24 = vld [vmem:[%s2 + $0x28] sm:$0xff]
  %v25 = vld [vmem:[%s2 + $0x30] sm:$0xff]
  %v26 = vld [vmem:[%s2 + $0x38] sm:$0xff]
  %v27 = vld [vmem:[%s2 + $0x40] sm:$0xff]
  %v28 = vld [vmem:[%s2 + $0x48] sm:$0xff]
  %v29 = vld [vmem:[%s2 + $0x50] sm:$0xff]
  %v30 = vld [vmem:[%s2 + $0x58] sm:$0xff]
  %v31 = vld [vmem:[%s2 + $0x60] sm:$0xff]
  %v32 = vld [vmem:[%s2 + $0x68] sm:$0xff]
  %v33 = vld [vmem:[%s2 + $0x70] sm:$0xff]
  %v34 = vld [vmem:[%s2 + $0x78] sm:$0xff]
  %v35 = vld [vmem:[%s2 + $0x80] sm:$0xff]
  %v36 = vld [vmem:[%s2 + $0x88] sm:$0xff]
  %v37 = vld [vmem:[%s2 + $0x90] sm:$0xff]
  %v38 = vld [vmem:[%s2 + $0x98] sm:$0xff]
  %v39 = vld [vmem:[%s2 + $0xa0] sm:$0xff]
  %v40 = vld [vmem:[%s2 + $0xa8] sm:$0xff]
  %v41 = vld [vmem:[%s2 + $0xb0] sm:$0xff]
  %v42 = vld [vmem:[%s2 + $0xb8] sm:$0xff]
  %v43 = vld [vmem:[%s2 + $0xc0] sm:$0xff]
  %v44 = vld [vmem:[%s2 + $0xc8] sm:$0xff]
  %v45 = vld [vmem:[%s2 + $0xd0] sm:$0xff]
  %v46 = vld [vmem:[%s2 + $0xd8] sm:$0xff]
  %v47 = vld [vmem:[%s2 + $0xe0] sm:$0xff]
  %v48 = vld [vmem:[%s2 + $0xe8] sm:$0xff]
  %v49 = vld [vmem:[%s2 + $0xf0] sm:$0xff]
  %v50 = vld [vmem:[%s2 + $0xf8] sm:$0xff]
  %v51 = vunpack.c.l.bf16 %v19
  %v52 = vunpack.c.h.bf16 %v19
  %v53 = vunpack.c.l.bf16 %v20
  %v54 = vunpack.c.h.bf16 %v20
  %v55 = vunpack.c.l.bf16 %v21
  %v56 = vunpack.c.h.bf16 %v21
  %v57 = vunpack.c.l.bf16 %v22
  %v58 = vunpack.c.h.bf16 %v22
  %v59 = vunpack.c.l.bf16 %v23
  %v60 = vunpack.c.h.bf16 %v23
  %v61 = vunpack.c.l.bf16 %v24
  %v62 = vunpack.c.h.bf16 %v24
  %v63 = vunpack.c.l.bf16 %v25
  %v64 = vunpack.c.h.bf16 %v25
  %v65 = vunpack.c.l.bf16 %v26
  %v66 = vunpack.c.h.bf16 %v26
  %v67 = vunpack.c.l.bf16 %v27
  %v68 = vunpack.c.h.bf16 %v27
  %v69 = vunpack.c.l.bf16 %v28
  %v70 = vunpack.c.h.bf16 %v28
  %v71 = vunpack.c.l.bf16 %v29
  %v72 = vunpack.c.h.bf16 %v29
  %v73 = vunpack.c.l.bf16 %v30
  %v74 = vunpack.c.h.bf16 %v30
  %v75 = vunpack.c.l.bf16 %v31
  %v76 = vunpack.c.h.bf16 %v31
  %v77 = vunpack.c.l.bf16 %v32
  %v78 = vunpack.c.h.bf16 %v32
  %v79 = vunpack.c.l.bf16 %v33
  %v80 = vunpack.c.h.bf16 %v33
  %v81 = vunpack.c.l.bf16 %v34
  %v82 = vunpack.c.h.bf16 %v34
  %v83 = vunpack.c.l.bf16 %v35
  %v84 = vunpack.c.h.bf16 %v35
  %v85 = vunpack.c.l.bf16 %v36
  %v86 = vunpack.c.h.bf16 %v36
  %v87 = vunpack.c.l.bf16 %v37
  %v88 = vunpack.c.h.bf16 %v37
  %v89 = vunpack.c.l.bf16 %v38
  %v90 = vunpack.c.h.bf16 %v38
  %v91 = vunpack.c.l.bf16 %v39
  %v92 = vunpack.c.h.bf16 %v39
  %v93 = vunpack.c.l.bf16 %v40
  %v94 = vunpack.c.h.bf16 %v40
  %v95 = vunpack.c.l.bf16 %v41
  %v96 = vunpack.c.h.bf16 %v41
  %v97 = vunpack.c.l.bf16 %v42
  %v98 = vunpack.c.h.bf16 %v42
  %v99 = vunpack.c.l.bf16 %v43
  %v100 = vunpack.c.h.bf16 %v43
  %v101 = vunpack.c.l.bf16 %v44
  %v102 = vunpack.c.h.bf16 %v44
  %v103 = vunpack.c.l.bf16 %v45
  %v104 = vunpack.c.h.bf16 %v45
  %v105 = vunpack.c.l.bf16 %v46
  %v106 = vunpack.c.h.bf16 %v46
  %v107 = vunpack.c.l.bf16 %v47
  %v108 = vunpack.c.h.bf16 %v47
  %v109 = vunpack.c.l.bf16 %v48
  %v110 = vunpack.c.h.bf16 %v48
  %v111 = vunpack.c.l.bf16 %v49
  %v112 = vunpack.c.h.bf16 %v49
  %v113 = vunpack.c.l.bf16 %v50
  %v114 = vunpack.c.h.bf16 %v50
  %v115 = vld [vmem:[%s3] sm:$0xff]
  %v116 = vld [vmem:[%s3 + $0x8] sm:$0xff]
  %v117 = vld [vmem:[%s3 + $0x10] sm:$0xff]
  %v118 = vld [vmem:[%s3 + $0x18] sm:$0xff]
  %v119 = vld [vmem:[%s3 + $0x20] sm:$0xff]
  %v120 = vld [vmem:[%s3 + $0x28] sm:$0xff]
  %v121 = vld [vmem:[%s3 + $0x30] sm:$0xff]
  %v122 = vld [vmem:[%s3 + $0x38] sm:$0xff]
  %v123 = vld [vmem:[%s3 + $0x40] sm:$0xff]
  %v124 = vld [vmem:[%s3 + $0x48] sm:$0xff]
  %v125 = vld [vmem:[%s3 + $0x50] sm:$0xff]
  %v126 = vld [vmem:[%s3 + $0x58] sm:$0xff]
  %v127 = vld [vmem:[%s3 + $0x60] sm:$0xff]
  %v128 = vld [vmem:[%s3 + $0x68] sm:$0xff]
  %v129 = vld [vmem:[%s3 + $0x70] sm:$0xff]
  %v130 = vld [vmem:[%s3 + $0x78] sm:$0xff]
  %v131 = vld [vmem:[%s3 + $0x80] sm:$0xff]
  %v132 = vld [vmem:[%s3 + $0x88] sm:$0xff]
  %v133 = vld [vmem:[%s3 + $0x90] sm:$0xff]
  %v134 = vld [vmem:[%s3 + $0x98] sm:$0xff]
  %v135 = vld [vmem:[%s3 + $0xa0] sm:$0xff]
  %v136 = vld [vmem:[%s3 + $0xa8] sm:$0xff]
  %v137 = vld [vmem:[%s3 + $0xb0] sm:$0xff]
  %v138 = vld [vmem:[%s3 + $0xb8] sm:$0xff]
  %v139 = vld [vmem:[%s3 + $0xc0] sm:$0xff]
  %v140 = vld [vmem:[%s3 + $0xc8] sm:$0xff]
  %v141 = vld [vmem:[%s3 + $0xd0] sm:$0xff]
  %v142 = vld [vmem:[%s3 + $0xd8] sm:$0xff]
  %v143 = vld [vmem:[%s3 + $0xe0] sm:$0xff]
  %v144 = vld [vmem:[%s3 + $0xe8] sm:$0xff]
  %v145 = vld [vmem:[%s3 + $0xf0] sm:$0xff]
  %v146 = vld [vmem:[%s3 + $0xf8] sm:$0xff]
  %v147 = vunpack.c.l.bf16 %v115
  %v148 = vunpack.c.h.bf16 %v115
  %v149 = vunpack.c.l.bf16 %v116
  %v150 = vunpack.c.h.bf16 %v116
  %v151 = vunpack.c.l.bf16 %v117
  %v152 = vunpack.c.h.bf16 %v117
  %v153 = vunpack.c.l.bf16 %v118
  %v154 = vunpack.c.h.bf16 %v118
  %v155 = vunpack.c.l.bf16 %v119
  %v156 = vunpack.c.h.bf16 %v119
  %v157 = vunpack.c.l.bf16 %v120
  %v158 = vunpack.c.h.bf16 %v120
  %v159 = vunpack.c.l.bf16 %v121
  %v160 = vunpack.c.h.bf16 %v121
  %v161 = vunpack.c.l.bf16 %v122
  %v162 = vunpack.c.h.bf16 %v122
  %v163 = vunpack.c.l.bf16 %v123
  %v164 = vunpack.c.h.bf16 %v123
  %v165 = vunpack.c.l.bf16 %v124
  %v166 = vunpack.c.h.bf16 %v124
  %v167 = vunpack.c.l.bf16 %v125
  %v168 = vunpack.c.h.bf16 %v125
  %v169 = vunpack.c.l.bf16 %v126
  %v170 = vunpack.c.h.bf16 %v126
  %v171 = vunpack.c.l.bf16 %v127
  %v172 = vunpack.c.h.bf16 %v127
  %v173 = vunpack.c.l.bf16 %v128
  %v174 = vunpack.c.h.bf16 %v128
  %v175 = vunpack.c.l.bf16 %v129
  %v176 = vunpack.c.h.bf16 %v129
  %v177 = vunpack.c.l.bf16 %v130
  %v178 = vunpack.c.h.bf16 %v130
  %v179 = vunpack.c.l.bf16 %v131
  %v180 = vunpack.c.h.bf16 %v131
  %v181 = vunpack.c.l.bf16 %v132
  %v182 = vunpack.c.h.bf16 %v132
  %v183 = vunpack.c.l.bf16 %v133
  %v184 = vunpack.c.h.bf16 %v133
  %v185 = vunpack.c.l.bf16 %v134
  %v186 = vunpack.c.h.bf16 %v134
  %v187 = vunpack.c.l.bf16 %v135
  %v188 = vunpack.c.h.bf16 %v135
  %v189 = vunpack.c.l.bf16 %v136
  %v190 = vunpack.c.h.bf16 %v136
  %v191 = vunpack.c.l.bf16 %v137
  %v192 = vunpack.c.h.bf16 %v137
  %v193 = vunpack.c.l.bf16 %v138
  %v194 = vunpack.c.h.bf16 %v138
  %v195 = vunpack.c.l.bf16 %v139
  %v196 = vunpack.c.h.bf16 %v139
  %v197 = vunpack.c.l.bf16 %v140
  %v198 = vunpack.c.h.bf16 %v140
  %v199 = vunpack.c.l.bf16 %v141
  %v200 = vunpack.c.h.bf16 %v141
  %v201 = vunpack.c.l.bf16 %v142
  %v202 = vunpack.c.h.bf16 %v142
  %v203 = vunpack.c.l.bf16 %v143
  %v204 = vunpack.c.h.bf16 %v143
  %v205 = vunpack.c.l.bf16 %v144
  %v206 = vunpack.c.h.bf16 %v144
  %v207 = vunpack.c.l.bf16 %v145
  %v208 = vunpack.c.h.bf16 %v145
  %v209 = vunpack.c.l.bf16 %v146
  %v210 = vunpack.c.h.bf16 %v146
  %v211 = vld [vmem:[%s0] sm:$0x3]
  %v212 = vld [vmem:[%s0 + $0x2] sm:$0x3]
  %v213 = vld [vmem:[%s0 + $0x4] sm:$0x3]
  %v214 = vld [vmem:[%s0 + $0x6] sm:$0x3]
  %v215 = vld [vmem:[%s0 + $0x8] sm:$0x3]
  %v216 = vld [vmem:[%s0 + $0xa] sm:$0x3]
  %v217 = vld [vmem:[%s0 + $0xc] sm:$0x3]
  %v218 = vld [vmem:[%s0 + $0xe] sm:$0x3]
  %v219 = vld [vmem:[%s0 + $0x10] sm:$0x3]
  %v220 = vld [vmem:[%s0 + $0x12] sm:$0x3]
  %v221 = vld [vmem:[%s0 + $0x14] sm:$0x3]
  %v222 = vld [vmem:[%s0 + $0x16] sm:$0x3]
  %v223 = vld [vmem:[%s0 + $0x18] sm:$0x3]
  %v224 = vld [vmem:[%s0 + $0x1a] sm:$0x3]
  %v225 = vld [vmem:[%s0 + $0x1c] sm:$0x3]
  %v226 = vld [vmem:[%s0 + $0x1e] sm:$0x3]
  %v227 = vld [vmem:[%s1] sm:$0x3]
  %v228 = vld [vmem:[%s1 + $0x2] sm:$0x3]
  %v229 = vld [vmem:[%s1 + $0x4] sm:$0x3]
  %v230 = vld [vmem:[%s1 + $0x6] sm:$0x3]
  %v231 = vld [vmem:[%s1 + $0x8] sm:$0x3]
  %v232 = vld [vmem:[%s1 + $0xa] sm:$0x3]
  %v233 = vld [vmem:[%s1 + $0xc] sm:$0x3]
  %v234 = vld [vmem:[%s1 + $0xe] sm:$0x3]
  %v235 = vld [vmem:[%s1 + $0x10] sm:$0x3]
  %v236 = vld [vmem:[%s1 + $0x12] sm:$0x3]
  %v237 = vld [vmem:[%s1 + $0x14] sm:$0x3]
  %v238 = vld [vmem:[%s1 + $0x16] sm:$0x3]
  %v239 = vld [vmem:[%s1 + $0x18] sm:$0x3]
  %v240 = vld [vmem:[%s1 + $0x1a] sm:$0x3]
  %v241 = vld [vmem:[%s1 + $0x1c] sm:$0x3]
  %v242 = vld [vmem:[%s1 + $0x1e] sm:$0x3]
  %v259 = vlaneseq
  %v260 = vshrl.u32 %v259, 7
  %v261 = vsub.s32 0, %v260
  %v262 = vrot.slane %v211, %v261
  %v263 = vlaneseq
  %v264 = vshrl.u32 %v263, 7
  %v265 = vsub.s32 1, %v264
  %v266 = vrot.slane %v211, %v265
  %v267 = vlaneseq
  %v268 = vshrl.u32 %v267, 7
  %v269 = vsub.s32 0, %v268
  %v270 = vrot.slane %v212, %v269
  %v271 = vlaneseq
  %v272 = vshrl.u32 %v271, 7
  %v273 = vsub.s32 1, %v272
  %v274 = vrot.slane %v212, %v273
  %v275 = vlaneseq
  %v276 = vshrl.u32 %v275, 7
  %v277 = vsub.s32 0, %v276
  %v278 = vrot.slane %v213, %v277
  %v279 = vlaneseq
  %v280 = vshrl.u32 %v279, 7
  %v281 = vsub.s32 1, %v280
  %v282 = vrot.slane %v213, %v281
  %v283 = vlaneseq
  %v284 = vshrl.u32 %v283, 7
  %v285 = vsub.s32 0, %v284
  %v286 = vrot.slane %v214, %v285
  %v287 = vlaneseq
  %v288 = vshrl.u32 %v287, 7
  %v289 = vsub.s32 1, %v288
  %v290 = vrot.slane %v214, %v289
  %v291 = vlaneseq
  %v292 = vshrl.u32 %v291, 7
  %v293 = vsub.s32 0, %v292
  %v294 = vrot.slane %v215, %v293
  %v295 = vlaneseq
  %v296 = vshrl.u32 %v295, 7
  %v297 = vsub.s32 1, %v296
  %v298 = vrot.slane %v215, %v297
  %v299 = vlaneseq
  %v300 = vshrl.u32 %v299, 7
  %v301 = vsub.s32 0, %v300
  %v302 = vrot.slane %v216, %v301
  %v303 = vlaneseq
  %v304 = vshrl.u32 %v303, 7
  %v305 = vsub.s32 1, %v304
  %v306 = vrot.slane %v216, %v305
  %v307 = vlaneseq
  %v308 = vshrl.u32 %v307, 7
  %v309 = vsub.s32 0, %v308
  %v310 = vrot.slane %v217, %v309
  %v311 = vlaneseq
  %v312 = vshrl.u32 %v311, 7
  %v313 = vsub.s32 1, %v312
  %v314 = vrot.slane %v217, %v313
  %v315 = vlaneseq
  %v316 = vshrl.u32 %v315, 7
  %v317 = vsub.s32 0, %v316
  %v318 = vrot.slane %v218, %v317
  %v319 = vlaneseq
  %v320 = vshrl.u32 %v319, 7
  %v321 = vsub.s32 1, %v320
  %v322 = vrot.slane %v218, %v321
  %v323 = vlaneseq
  %v324 = vshrl.u32 %v323, 7
  %v325 = vsub.s32 0, %v324
  %v326 = vrot.slane %v219, %v325
  %v327 = vlaneseq
  %v328 = vshrl.u32 %v327, 7
  %v329 = vsub.s32 1, %v328
  %v330 = vrot.slane %v219, %v329
  %v331 = vlaneseq
  %v332 = vshrl.u32 %v331, 7
  %v333 = vsub.s32 0, %v332
  %v334 = vrot.slane %v220, %v333
  %v335 = vlaneseq
  %v336 = vshrl.u32 %v335, 7
  %v337 = vsub.s32 1, %v336
  %v338 = vrot.slane %v220, %v337
  %v339 = vlaneseq
  %v340 = vshrl.u32 %v339, 7
  %v341 = vsub.s32 0, %v340
  %v342 = vrot.slane %v221, %v341
  %v343 = vlaneseq
  %v344 = vshrl.u32 %v343, 7
  %v345 = vsub.s32 1, %v344
  %v346 = vrot.slane %v221, %v345
  %v347 = vlaneseq
  %v348 = vshrl.u32 %v347, 7
  %v349 = vsub.s32 0, %v348
  %v350 = vrot.slane %v222, %v349
  %v351 = vlaneseq
  %v352 = vshrl.u32 %v351, 7
  %v353 = vsub.s32 1, %v352
  %v354 = vrot.slane %v222, %v353
  %v355 = vlaneseq
  %v356 = vshrl.u32 %v355, 7
  %v357 = vsub.s32 0, %v356
  %v358 = vrot.slane %v223, %v357
  %v359 = vlaneseq
  %v360 = vshrl.u32 %v359, 7
  %v361 = vsub.s32 1, %v360
  %v362 = vrot.slane %v223, %v361
  %v363 = vlaneseq
  %v364 = vshrl.u32 %v363, 7
  %v365 = vsub.s32 0, %v364
  %v366 = vrot.slane %v224, %v365
  %v367 = vlaneseq
  %v368 = vshrl.u32 %v367, 7
  %v369 = vsub.s32 1, %v368
  %v370 = vrot.slane %v224, %v369
  %v371 = vlaneseq
  %v372 = vshrl.u32 %v371, 7
  %v373 = vsub.s32 0, %v372
  %v374 = vrot.slane %v225, %v373
  %v375 = vlaneseq
  %v376 = vshrl.u32 %v375, 7
  %v377 = vsub.s32 1, %v376
  %v378 = vrot.slane %v225, %v377
  %v379 = vlaneseq
  %v380 = vshrl.u32 %v379, 7
  %v381 = vsub.s32 0, %v380
  %v382 = vrot.slane %v226, %v381
  %v383 = vlaneseq
  %v384 = vshrl.u32 %v383, 7
  %v385 = vsub.s32 1, %v384
  %v386 = vrot.slane %v226, %v385
  %v419 = vmul.f32 %v262, %v51
  %v420 = vmul.f32 %v266, %v52
  %v421 = vmul.f32 %v262, %v53
  %v422 = vmul.f32 %v266, %v54
  %v423 = vmul.f32 %v270, %v55
  %v424 = vmul.f32 %v274, %v56
  %v425 = vmul.f32 %v270, %v57
  %v426 = vmul.f32 %v274, %v58
  %v427 = vmul.f32 %v278, %v59
  %v428 = vmul.f32 %v282, %v60
  %v429 = vmul.f32 %v278, %v61
  %v430 = vmul.f32 %v282, %v62
  %v431 = vmul.f32 %v286, %v63
  %v432 = vmul.f32 %v290, %v64
  %v433 = vmul.f32 %v286, %v65
  %v434 = vmul.f32 %v290, %v66
  %v435 = vmul.f32 %v294, %v67
  %v436 = vmul.f32 %v298, %v68
  %v437 = vmul.f32 %v294, %v69
  %v438 = vmul.f32 %v298, %v70
  %v439 = vmul.f32 %v302, %v71
  %v440 = vmul.f32 %v306, %v72
  %v441 = vmul.f32 %v302, %v73
  %v442 = vmul.f32 %v306, %v74
  %v443 = vmul.f32 %v310, %v75
  %v444 = vmul.f32 %v314, %v76
  %v445 = vmul.f32 %v310, %v77
  %v446 = vmul.f32 %v314, %v78
  %v447 = vmul.f32 %v318, %v79
  %v448 = vmul.f32 %v322, %v80
  %v449 = vmul.f32 %v318, %v81
  %v450 = vmul.f32 %v322, %v82
  %v451 = vmul.f32 %v326, %v83
  %v452 = vmul.f32 %v330, %v84
  %v453 = vmul.f32 %v326, %v85
  %v454 = vmul.f32 %v330, %v86
  %v455 = vmul.f32 %v334, %v87
  %v456 = vmul.f32 %v338, %v88
  %v457 = vmul.f32 %v334, %v89
  %v458 = vmul.f32 %v338, %v90
  %v459 = vmul.f32 %v342, %v91
  %v460 = vmul.f32 %v346, %v92
  %v461 = vmul.f32 %v342, %v93
  %v462 = vmul.f32 %v346, %v94
  %v463 = vmul.f32 %v350, %v95
  %v464 = vmul.f32 %v354, %v96
  %v465 = vmul.f32 %v350, %v97
  %v466 = vmul.f32 %v354, %v98
  %v467 = vmul.f32 %v358, %v99
  %v468 = vmul.f32 %v362, %v100
  %v469 = vmul.f32 %v358, %v101
  %v470 = vmul.f32 %v362, %v102
  %v471 = vmul.f32 %v366, %v103
  %v472 = vmul.f32 %v370, %v104
  %v473 = vmul.f32 %v366, %v105
  %v474 = vmul.f32 %v370, %v106
  %v475 = vmul.f32 %v374, %v107
  %v476 = vmul.f32 %v378, %v108
  %v477 = vmul.f32 %v374, %v109
  %v478 = vmul.f32 %v378, %v110
  %v479 = vmul.f32 %v382, %v111
  %v480 = vmul.f32 %v386, %v112
  %v481 = vmul.f32 %v382, %v113
  %v482 = vmul.f32 %v386, %v114
  %v483 = vadd.f32 %v419, %v423
  %v484 = vadd.f32 %v483, %v427
  %v485 = vadd.f32 %v484, %v431
  %v486 = vadd.f32 %v485, %v435
  %v487 = vadd.f32 %v486, %v439
  %v488 = vadd.f32 %v487, %v443
  %v489 = vadd.f32 %v488, %v447
  %v490 = vadd.f32 %v489, %v451
  %v491 = vadd.f32 %v490, %v455
  %v492 = vadd.f32 %v491, %v459
  %v493 = vadd.f32 %v492, %v463
  %v494 = vadd.f32 %v493, %v467
  %v495 = vadd.f32 %v494, %v471
  %v496 = vadd.f32 %v495, %v475
  %v497 = vadd.f32 %v496, %v479
  %v498 = vadd.f32 %v420, %v424
  %v499 = vadd.f32 %v498, %v428
  %v500 = vadd.f32 %v499, %v432
  %v501 = vadd.f32 %v500, %v436
  %v502 = vadd.f32 %v501, %v440
  %v503 = vadd.f32 %v502, %v444
  %v504 = vadd.f32 %v503, %v448
  %v505 = vadd.f32 %v504, %v452
  %v506 = vadd.f32 %v505, %v456
  %v507 = vadd.f32 %v506, %v460
  %v508 = vadd.f32 %v507, %v464
  %v509 = vadd.f32 %v508, %v468
  %v510 = vadd.f32 %v509, %v472
  %v511 = vadd.f32 %v510, %v476
  %v512 = vadd.f32 %v511, %v480
  %v513 = vadd.f32 %v421, %v425
  %v514 = vadd.f32 %v513, %v429
  %v515 = vadd.f32 %v514, %v433
  %v516 = vadd.f32 %v515, %v437
  %v517 = vadd.f32 %v516, %v441
  %v518 = vadd.f32 %v517, %v445
  %v519 = vadd.f32 %v518, %v449
  %v520 = vadd.f32 %v519, %v453
  %v521 = vadd.f32 %v520, %v457
  %v522 = vadd.f32 %v521, %v461
  %v523 = vadd.f32 %v522, %v465
  %v524 = vadd.f32 %v523, %v469
  %v525 = vadd.f32 %v524, %v473
  %v526 = vadd.f32 %v525, %v477
  %v527 = vadd.f32 %v526, %v481
  %v528 = vadd.f32 %v422, %v426
  %v529 = vadd.f32 %v528, %v430
  %v530 = vadd.f32 %v529, %v434
  %v531 = vadd.f32 %v530, %v438
  %v532 = vadd.f32 %v531, %v442
  %v533 = vadd.f32 %v532, %v446
  %v534 = vadd.f32 %v533, %v450
  %v535 = vadd.f32 %v534, %v454
  %v536 = vadd.f32 %v535, %v458
  %v537 = vadd.f32 %v536, %v462
  %v538 = vadd.f32 %v537, %v466
  %v539 = vadd.f32 %v538, %v470
  %v540 = vadd.f32 %v539, %v474
  %v541 = vadd.f32 %v540, %v478
  %v542 = vadd.f32 %v541, %v482
  %v559 = vlaneseq
  %v560 = vshrl.u32 %v559, 7
  %v561 = vsub.s32 0, %v560
  %v562 = vrot.slane %v227, %v561
  %v563 = vlaneseq
  %v564 = vshrl.u32 %v563, 7
  %v565 = vsub.s32 1, %v564
  %v566 = vrot.slane %v227, %v565
  %v567 = vlaneseq
  %v568 = vshrl.u32 %v567, 7
  %v569 = vsub.s32 0, %v568
  %v570 = vrot.slane %v228, %v569
  %v571 = vlaneseq
  %v572 = vshrl.u32 %v571, 7
  %v573 = vsub.s32 1, %v572
  %v574 = vrot.slane %v228, %v573
  %v575 = vlaneseq
  %v576 = vshrl.u32 %v575, 7
  %v577 = vsub.s32 0, %v576
  %v578 = vrot.slane %v229, %v577
  %v579 = vlaneseq
  %v580 = vshrl.u32 %v579, 7
  %v581 = vsub.s32 1, %v580
  %v582 = vrot.slane %v229, %v581
  %v583 = vlaneseq
  %v584 = vshrl.u32 %v583, 7
  %v585 = vsub.s32 0, %v584
  %v586 = vrot.slane %v230, %v585
  %v587 = vlaneseq
  %v588 = vshrl.u32 %v587, 7
  %v589 = vsub.s32 1, %v588
  %v590 = vrot.slane %v230, %v589
  %v591 = vlaneseq
  %v592 = vshrl.u32 %v591, 7
  %v593 = vsub.s32 0, %v592
  %v594 = vrot.slane %v231, %v593
  %v595 = vlaneseq
  %v596 = vshrl.u32 %v595, 7
  %v597 = vsub.s32 1, %v596
  %v598 = vrot.slane %v231, %v597
  %v599 = vlaneseq
  %v600 = vshrl.u32 %v599, 7
  %v601 = vsub.s32 0, %v600
  %v602 = vrot.slane %v232, %v601
  %v603 = vlaneseq
  %v604 = vshrl.u32 %v603, 7
  %v605 = vsub.s32 1, %v604
  %v606 = vrot.slane %v232, %v605
  %v607 = vlaneseq
  %v608 = vshrl.u32 %v607, 7
  %v609 = vsub.s32 0, %v608
  %v610 = vrot.slane %v233, %v609
  %v611 = vlaneseq
  %v612 = vshrl.u32 %v611, 7
  %v613 = vsub.s32 1, %v612
  %v614 = vrot.slane %v233, %v613
  %v615 = vlaneseq
  %v616 = vshrl.u32 %v615, 7
  %v617 = vsub.s32 0, %v616
  %v618 = vrot.slane %v234, %v617
  %v619 = vlaneseq
  %v620 = vshrl.u32 %v619, 7
  %v621 = vsub.s32 1, %v620
  %v622 = vrot.slane %v234, %v621
  %v623 = vlaneseq
  %v624 = vshrl.u32 %v623, 7
  %v625 = vsub.s32 0, %v624
  %v626 = vrot.slane %v235, %v625
  %v627 = vlaneseq
  %v628 = vshrl.u32 %v627, 7
  %v629 = vsub.s32 1, %v628
  %v630 = vrot.slane %v235, %v629
  %v631 = vlaneseq
  %v632 = vshrl.u32 %v631, 7
  %v633 = vsub.s32 0, %v632
  %v634 = vrot.slane %v236, %v633
  %v635 = vlaneseq
  %v636 = vshrl.u32 %v635, 7
  %v637 = vsub.s32 1, %v636
  %v638 = vrot.slane %v236, %v637
  %v639 = vlaneseq
  %v640 = vshrl.u32 %v639, 7
  %v641 = vsub.s32 0, %v640
  %v642 = vrot.slane %v237, %v641
  %v643 = vlaneseq
  %v644 = vshrl.u32 %v643, 7
  %v645 = vsub.s32 1, %v644
  %v646 = vrot.slane %v237, %v645
  %v647 = vlaneseq
  %v648 = vshrl.u32 %v647, 7
  %v649 = vsub.s32 0, %v648
  %v650 = vrot.slane %v238, %v649
  %v651 = vlaneseq
  %v652 = vshrl.u32 %v651, 7
  %v653 = vsub.s32 1, %v652
  %v654 = vrot.slane %v238, %v653
  %v655 = vlaneseq
  %v656 = vshrl.u32 %v655, 7
  %v657 = vsub.s32 0, %v656
  %v658 = vrot.slane %v239, %v657
  %v659 = vlaneseq
  %v660 = vshrl.u32 %v659, 7
  %v661 = vsub.s32 1, %v660
  %v662 = vrot.slane %v239, %v661
  %v663 = vlaneseq
  %v664 = vshrl.u32 %v663, 7
  %v665 = vsub.s32 0, %v664
  %v666 = vrot.slane %v240, %v665
  %v667 = vlaneseq
  %v668 = vshrl.u32 %v667, 7
  %v669 = vsub.s32 1, %v668
  %v670 = vrot.slane %v240, %v669
  %v671 = vlaneseq
  %v672 = vshrl.u32 %v671, 7
  %v673 = vsub.s32 0, %v672
  %v674 = vrot.slane %v241, %v673
  %v675 = vlaneseq
  %v676 = vshrl.u32 %v675, 7
  %v677 = vsub.s32 1, %v676
  %v678 = vrot.slane %v241, %v677
  %v679 = vlaneseq
  %v680 = vshrl.u32 %v679, 7
  %v681 = vsub.s32 0, %v680
  %v682 = vrot.slane %v242, %v681
  %v683 = vlaneseq
  %v684 = vshrl.u32 %v683, 7
  %v685 = vsub.s32 1, %v684
  %v686 = vrot.slane %v242, %v685
  %v719 = vmul.f32 %v562, %v147
  %v720 = vmul.f32 %v566, %v148
  %v721 = vmul.f32 %v562, %v149
  %v722 = vmul.f32 %v566, %v150
  %v723 = vmul.f32 %v570, %v151
  %v724 = vmul.f32 %v574, %v152
  %v725 = vmul.f32 %v570, %v153
  %v726 = vmul.f32 %v574, %v154
  %v727 = vmul.f32 %v578, %v155
  %v728 = vmul.f32 %v582, %v156
  %v729 = vmul.f32 %v578, %v157
  %v730 = vmul.f32 %v582, %v158
  %v731 = vmul.f32 %v586, %v159
  %v732 = vmul.f32 %v590, %v160
  %v733 = vmul.f32 %v586, %v161
  %v734 = vmul.f32 %v590, %v162
  %v735 = vmul.f32 %v594, %v163
  %v736 = vmul.f32 %v598, %v164
  %v737 = vmul.f32 %v594, %v165
  %v738 = vmul.f32 %v598, %v166
  %v739 = vmul.f32 %v602, %v167
  %v740 = vmul.f32 %v606, %v168
  %v741 = vmul.f32 %v602, %v169
  %v742 = vmul.f32 %v606, %v170
  %v743 = vmul.f32 %v610, %v171
  %v744 = vmul.f32 %v614, %v172
  %v745 = vmul.f32 %v610, %v173
  %v746 = vmul.f32 %v614, %v174
  %v747 = vmul.f32 %v618, %v175
  %v748 = vmul.f32 %v622, %v176
  %v749 = vmul.f32 %v618, %v177
  %v750 = vmul.f32 %v622, %v178
  %v751 = vmul.f32 %v626, %v179
  %v752 = vmul.f32 %v630, %v180
  %v753 = vmul.f32 %v626, %v181
  %v754 = vmul.f32 %v630, %v182
  %v755 = vmul.f32 %v634, %v183
  %v756 = vmul.f32 %v638, %v184
  %v757 = vmul.f32 %v634, %v185
  %v758 = vmul.f32 %v638, %v186
  %v759 = vmul.f32 %v642, %v187
  %v760 = vmul.f32 %v646, %v188
  %v761 = vmul.f32 %v642, %v189
  %v762 = vmul.f32 %v646, %v190
  %v763 = vmul.f32 %v650, %v191
  %v764 = vmul.f32 %v654, %v192
  %v765 = vmul.f32 %v650, %v193
  %v766 = vmul.f32 %v654, %v194
  %v767 = vmul.f32 %v658, %v195
  %v768 = vmul.f32 %v662, %v196
  %v769 = vmul.f32 %v658, %v197
  %v770 = vmul.f32 %v662, %v198
  %v771 = vmul.f32 %v666, %v199
  %v772 = vmul.f32 %v670, %v200
  %v773 = vmul.f32 %v666, %v201
  %v774 = vmul.f32 %v670, %v202
  %v775 = vmul.f32 %v674, %v203
  %v776 = vmul.f32 %v678, %v204
  %v777 = vmul.f32 %v674, %v205
  %v778 = vmul.f32 %v678, %v206
  %v779 = vmul.f32 %v682, %v207
  %v780 = vmul.f32 %v686, %v208
  %v781 = vmul.f32 %v682, %v209
  %v782 = vmul.f32 %v686, %v210
  %v783 = vadd.f32 %v719, %v723
  %v784 = vadd.f32 %v783, %v727
  %v785 = vadd.f32 %v784, %v731
  %v786 = vadd.f32 %v785, %v735
  %v787 = vadd.f32 %v786, %v739
  %v788 = vadd.f32 %v787, %v743
  %v789 = vadd.f32 %v788, %v747
  %v790 = vadd.f32 %v789, %v751
  %v791 = vadd.f32 %v790, %v755
  %v792 = vadd.f32 %v791, %v759
  %v793 = vadd.f32 %v792, %v763
  %v794 = vadd.f32 %v793, %v767
  %v795 = vadd.f32 %v794, %v771
  %v796 = vadd.f32 %v795, %v775
  %v797 = vadd.f32 %v796, %v779
  %v798 = vadd.f32 %v720, %v724
  %v799 = vadd.f32 %v798, %v728
  %v800 = vadd.f32 %v799, %v732
  %v801 = vadd.f32 %v800, %v736
  %v802 = vadd.f32 %v801, %v740
  %v803 = vadd.f32 %v802, %v744
  %v804 = vadd.f32 %v803, %v748
  %v805 = vadd.f32 %v804, %v752
  %v806 = vadd.f32 %v805, %v756
  %v807 = vadd.f32 %v806, %v760
  %v808 = vadd.f32 %v807, %v764
  %v809 = vadd.f32 %v808, %v768
  %v810 = vadd.f32 %v809, %v772
  %v811 = vadd.f32 %v810, %v776
  %v812 = vadd.f32 %v811, %v780
  %v813 = vadd.f32 %v721, %v725
  %v814 = vadd.f32 %v813, %v729
  %v815 = vadd.f32 %v814, %v733
  %v816 = vadd.f32 %v815, %v737
  %v817 = vadd.f32 %v816, %v741
  %v818 = vadd.f32 %v817, %v745
  %v819 = vadd.f32 %v818, %v749
  %v820 = vadd.f32 %v819, %v753
  %v821 = vadd.f32 %v820, %v757
  %v822 = vadd.f32 %v821, %v761
  %v823 = vadd.f32 %v822, %v765
  %v824 = vadd.f32 %v823, %v769
  %v825 = vadd.f32 %v824, %v773
  %v826 = vadd.f32 %v825, %v777
  %v827 = vadd.f32 %v826, %v781
  %v828 = vadd.f32 %v722, %v726
  %v829 = vadd.f32 %v828, %v730
  %v830 = vadd.f32 %v829, %v734
  %v831 = vadd.f32 %v830, %v738
  %v832 = vadd.f32 %v831, %v742
  %v833 = vadd.f32 %v832, %v746
  %v834 = vadd.f32 %v833, %v750
  %v835 = vadd.f32 %v834, %v754
  %v836 = vadd.f32 %v835, %v758
  %v837 = vadd.f32 %v836, %v762
  %v838 = vadd.f32 %v837, %v766
  %v839 = vadd.f32 %v838, %v770
  %v840 = vadd.f32 %v839, %v774
  %v841 = vadd.f32 %v840, %v778
  %v842 = vadd.f32 %v841, %v782
  %v843 = vmul.f32 %v262, %v147
  %v844 = vmul.f32 %v266, %v148
  %v845 = vmul.f32 %v262, %v149
  %v846 = vmul.f32 %v266, %v150
  %v847 = vmul.f32 %v270, %v151
  %v848 = vmul.f32 %v274, %v152
  %v849 = vmul.f32 %v270, %v153
  %v850 = vmul.f32 %v274, %v154
  %v851 = vmul.f32 %v278, %v155
  %v852 = vmul.f32 %v282, %v156
  %v853 = vmul.f32 %v278, %v157
  %v854 = vmul.f32 %v282, %v158
  %v855 = vmul.f32 %v286, %v159
  %v856 = vmul.f32 %v290, %v160
  %v857 = vmul.f32 %v286, %v161
  %v858 = vmul.f32 %v290, %v162
  %v859 = vmul.f32 %v294, %v163
  %v860 = vmul.f32 %v298, %v164
  %v861 = vmul.f32 %v294, %v165
  %v862 = vmul.f32 %v298, %v166
  %v863 = vmul.f32 %v302, %v167
  %v864 = vmul.f32 %v306, %v168
  %v865 = vmul.f32 %v302, %v169
  %v866 = vmul.f32 %v306, %v170
  %v867 = vmul.f32 %v310, %v171
  %v868 = vmul.f32 %v314, %v172
  %v869 = vmul.f32 %v310, %v173
  %v870 = vmul.f32 %v314, %v174
  %v871 = vmul.f32 %v318, %v175
  %v872 = vmul.f32 %v322, %v176
  %v873 = vmul.f32 %v318, %v177
  %v874 = vmul.f32 %v322, %v178
  %v875 = vmul.f32 %v326, %v179
  %v876 = vmul.f32 %v330, %v180
  %v877 = vmul.f32 %v326, %v181
  %v878 = vmul.f32 %v330, %v182
  %v879 = vmul.f32 %v334, %v183
  %v880 = vmul.f32 %v338, %v184
  %v881 = vmul.f32 %v334, %v185
  %v882 = vmul.f32 %v338, %v186
  %v883 = vmul.f32 %v342, %v187
  %v884 = vmul.f32 %v346, %v188
  %v885 = vmul.f32 %v342, %v189
  %v886 = vmul.f32 %v346, %v190
  %v887 = vmul.f32 %v350, %v191
  %v888 = vmul.f32 %v354, %v192
  %v889 = vmul.f32 %v350, %v193
  %v890 = vmul.f32 %v354, %v194
  %v891 = vmul.f32 %v358, %v195
  %v892 = vmul.f32 %v362, %v196
  %v893 = vmul.f32 %v358, %v197
  %v894 = vmul.f32 %v362, %v198
  %v895 = vmul.f32 %v366, %v199
  %v896 = vmul.f32 %v370, %v200
  %v897 = vmul.f32 %v366, %v201
  %v898 = vmul.f32 %v370, %v202
  %v899 = vmul.f32 %v374, %v203
  %v900 = vmul.f32 %v378, %v204
  %v901 = vmul.f32 %v374, %v205
  %v902 = vmul.f32 %v378, %v206
  %v903 = vmul.f32 %v382, %v207
  %v904 = vmul.f32 %v386, %v208
  %v905 = vmul.f32 %v382, %v209
  %v906 = vmul.f32 %v386, %v210
  %v907 = vadd.f32 %v843, %v847
  %v908 = vadd.f32 %v907, %v851
  %v909 = vadd.f32 %v908, %v855
  %v910 = vadd.f32 %v909, %v859
  %v911 = vadd.f32 %v910, %v863
  %v912 = vadd.f32 %v911, %v867
  %v913 = vadd.f32 %v912, %v871
  %v914 = vadd.f32 %v913, %v875
  %v915 = vadd.f32 %v914, %v879
  %v916 = vadd.f32 %v915, %v883
  %v917 = vadd.f32 %v916, %v887
  %v918 = vadd.f32 %v917, %v891
  %v919 = vadd.f32 %v918, %v895
  %v920 = vadd.f32 %v919, %v899
  %v921 = vadd.f32 %v920, %v903
  %v922 = vadd.f32 %v844, %v848
  %v923 = vadd.f32 %v922, %v852
  %v924 = vadd.f32 %v923, %v856
  %v925 = vadd.f32 %v924, %v860
  %v926 = vadd.f32 %v925, %v864
  %v927 = vadd.f32 %v926, %v868
  %v928 = vadd.f32 %v927, %v872
  %v929 = vadd.f32 %v928, %v876
  %v930 = vadd.f32 %v929, %v880
  %v931 = vadd.f32 %v930, %v884
  %v932 = vadd.f32 %v931, %v888
  %v933 = vadd.f32 %v932, %v892
  %v934 = vadd.f32 %v933, %v896
  %v935 = vadd.f32 %v934, %v900
  %v936 = vadd.f32 %v935, %v904
  %v937 = vadd.f32 %v845, %v849
  %v938 = vadd.f32 %v937, %v853
  %v939 = vadd.f32 %v938, %v857
  %v940 = vadd.f32 %v939, %v861
  %v941 = vadd.f32 %v940, %v865
  %v942 = vadd.f32 %v941, %v869
  %v943 = vadd.f32 %v942, %v873
  %v944 = vadd.f32 %v943, %v877
  %v945 = vadd.f32 %v944, %v881
  %v946 = vadd.f32 %v945, %v885
  %v947 = vadd.f32 %v946, %v889
  %v948 = vadd.f32 %v947, %v893
  %v949 = vadd.f32 %v948, %v897
  %v950 = vadd.f32 %v949, %v901
  %v951 = vadd.f32 %v950, %v905
  %v952 = vadd.f32 %v846, %v850
  %v953 = vadd.f32 %v952, %v854
  %v954 = vadd.f32 %v953, %v858
  %v955 = vadd.f32 %v954, %v862
  %v956 = vadd.f32 %v955, %v866
  %v957 = vadd.f32 %v956, %v870
  %v958 = vadd.f32 %v957, %v874
  %v959 = vadd.f32 %v958, %v878
  %v960 = vadd.f32 %v959, %v882
  %v961 = vadd.f32 %v960, %v886
  %v962 = vadd.f32 %v961, %v890
  %v963 = vadd.f32 %v962, %v894
  %v964 = vadd.f32 %v963, %v898
  %v965 = vadd.f32 %v964, %v902
  %v966 = vadd.f32 %v965, %v906
  %v967 = vmul.f32 %v562, %v51
  %v968 = vmul.f32 %v566, %v52
  %v969 = vmul.f32 %v562, %v53
  %v970 = vmul.f32 %v566, %v54
  %v971 = vmul.f32 %v570, %v55
  %v972 = vmul.f32 %v574, %v56
  %v973 = vmul.f32 %v570, %v57
  %v974 = vmul.f32 %v574, %v58
  %v975 = vmul.f32 %v578, %v59
  %v976 = vmul.f32 %v582, %v60
  %v977 = vmul.f32 %v578, %v61
  %v978 = vmul.f32 %v582, %v62
  %v979 = vmul.f32 %v586, %v63
  %v980 = vmul.f32 %v590, %v64
  %v981 = vmul.f32 %v586, %v65
  %v982 = vmul.f32 %v590, %v66
  %v983 = vmul.f32 %v594, %v67
  %v984 = vmul.f32 %v598, %v68
  %v985 = vmul.f32 %v594, %v69
  %v986 = vmul.f32 %v598, %v70
  %v987 = vmul.f32 %v602, %v71
  %v988 = vmul.f32 %v606, %v72
  %v989 = vmul.f32 %v602, %v73
  %v990 = vmul.f32 %v606, %v74
  %v991 = vmul.f32 %v610, %v75
  %v992 = vmul.f32 %v614, %v76
  %v993 = vmul.f32 %v610, %v77
  %v994 = vmul.f32 %v614, %v78
  %v995 = vmul.f32 %v618, %v79
  %v996 = vmul.f32 %v622, %v80
  %v997 = vmul.f32 %v618, %v81
  %v998 = vmul.f32 %v622, %v82
  %v999 = vmul.f32 %v626, %v83
  %v1000 = vmul.f32 %v630, %v84
  %v1001 = vmul.f32 %v626, %v85
  %v1002 = vmul.f32 %v630, %v86
  %v1003 = vmul.f32 %v634, %v87
  %v1004 = vmul.f32 %v638, %v88
  %v1005 = vmul.f32 %v634, %v89
  %v1006 = vmul.f32 %v638, %v90
  %v1007 = vmul.f32 %v642, %v91
  %v1008 = vmul.f32 %v646, %v92
  %v1009 = vmul.f32 %v642, %v93
  %v1010 = vmul.f32 %v646, %v94
  %v1011 = vmul.f32 %v650, %v95
  %v1012 = vmul.f32 %v654, %v96
  %v1013 = vmul.f32 %v650, %v97
  %v1014 = vmul.f32 %v654, %v98
  %v1015 = vmul.f32 %v658, %v99
  %v1016 = vmul.f32 %v662, %v100
  %v1017 = vmul.f32 %v658, %v101
  %v1018 = vmul.f32 %v662, %v102
  %v1019 = vmul.f32 %v666, %v103
  %v1020 = vmul.f32 %v670, %v104
  %v1021 = vmul.f32 %v666, %v105
  %v1022 = vmul.f32 %v670, %v106
  %v1023 = vmul.f32 %v674, %v107
  %v1024 = vmul.f32 %v678, %v108
  %v1025 = vmul.f32 %v674, %v109
  %v1026 = vmul.f32 %v678, %v110
  %v1027 = vmul.f32 %v682, %v111
  %v1028 = vmul.f32 %v686, %v112
  %v1029 = vmul.f32 %v682, %v113
  %v1030 = vmul.f32 %v686, %v114
  %v1031 = vadd.f32 %v967, %v971
  %v1032 = vadd.f32 %v1031, %v975
  %v1033 = vadd.f32 %v1032, %v979
  %v1034 = vadd.f32 %v1033, %v983
  %v1035 = vadd.f32 %v1034, %v987
  %v1036 = vadd.f32 %v1035, %v991
  %v1037 = vadd.f32 %v1036, %v995
  %v1038 = vadd.f32 %v1037, %v999
  %v1039 = vadd.f32 %v1038, %v1003
  %v1040 = vadd.f32 %v1039, %v1007
  %v1041 = vadd.f32 %v1040, %v1011
  %v1042 = vadd.f32 %v1041, %v1015
  %v1043 = vadd.f32 %v1042, %v1019
  %v1044 = vadd.f32 %v1043, %v1023
  %v1045 = vadd.f32 %v1044, %v1027
  %v1046 = vadd.f32 %v968, %v972
  %v1047 = vadd.f32 %v1046, %v976
  %v1048 = vadd.f32 %v1047, %v980
  %v1049 = vadd.f32 %v1048, %v984
  %v1050 = vadd.f32 %v1049, %v988
  %v1051 = vadd.f32 %v1050, %v992
  %v1052 = vadd.f32 %v1051, %v996
  %v1053 = vadd.f32 %v1052, %v1000
  %v1054 = vadd.f32 %v1053, %v1004
  %v1055 = vadd.f32 %v1054, %v1008
  %v1056 = vadd.f32 %v1055, %v1012
  %v1057 = vadd.f32 %v1056, %v1016
  %v1058 = vadd.f32 %v1057, %v1020
  %v1059 = vadd.f32 %v1058, %v1024
  %v1060 = vadd.f32 %v1059, %v1028
  %v1061 = vadd.f32 %v969, %v973
  %v1062 = vadd.f32 %v1061, %v977
  %v1063 = vadd.f32 %v1062, %v981
  %v1064 = vadd.f32 %v1063, %v985
  %v1065 = vadd.f32 %v1064, %v989
  %v1066 = vadd.f32 %v1065, %v993
  %v1067 = vadd.f32 %v1066, %v997
  %v1068 = vadd.f32 %v1067, %v1001
  %v1069 = vadd.f32 %v1068, %v1005
  %v1070 = vadd.f32 %v1069, %v1009
  %v1071 = vadd.f32 %v1070, %v1013
  %v1072 = vadd.f32 %v1071, %v1017
  %v1073 = vadd.f32 %v1072, %v1021
  %v1074 = vadd.f32 %v1073, %v1025
  %v1075 = vadd.f32 %v1074, %v1029
  %v1076 = vadd.f32 %v970, %v974
  %v1077 = vadd.f32 %v1076, %v978
  %v1078 = vadd.f32 %v1077, %v982
  %v1079 = vadd.f32 %v1078, %v986
  %v1080 = vadd.f32 %v1079, %v990
  %v1081 = vadd.f32 %v1080, %v994
  %v1082 = vadd.f32 %v1081, %v998
  %v1083 = vadd.f32 %v1082, %v1002
  %v1084 = vadd.f32 %v1083, %v1006
  %v1085 = vadd.f32 %v1084, %v1010
  %v1086 = vadd.f32 %v1085, %v1014
  %v1087 = vadd.f32 %v1086, %v1018
  %v1088 = vadd.f32 %v1087, %v1022
  %v1089 = vadd.f32 %v1088, %v1026
  %v1090 = vadd.f32 %v1089, %v1030
  %v1091 = vsub.f32 %v497, %v797
  %v1092 = vsub.f32 %v512, %v812
  %v1093 = vsub.f32 %v527, %v827
  %v1094 = vsub.f32 %v542, %v842
  %1095 = vst [vmem:[%s4] sm:$0xff] %v1091
  %1096 = vst [vmem:[%s4 + $0x8] sm:$0xff] %v1092
  %1097 = vst [vmem:[%s4 + $0x10] sm:$0xff] %v1093
  %1098 = vst [vmem:[%s4 + $0x18] sm:$0xff] %v1094
  %v1099 = vadd.f32 %v921, %v1045
  %v1100 = vadd.f32 %v936, %v1060
  %v1101 = vadd.f32 %v951, %v1075
  %v1102 = vadd.f32 %v966, %v1090
  %1103 = vst [vmem:[%s5] sm:$0xff] %v1099
  %1104 = vst [vmem:[%s5 + $0x8] sm:$0xff] %v1100
  %1105 = vst [vmem:[%s5 + $0x10] sm:$0xff] %v1101
  %1106 = vst [vmem:[%s5 + $0x18] sm:$0xff] %v1102
  %s1107 = scalar_lea.vmem %s0, 32
  %v1108 = vld [vmem:[%s1107] sm:$0x3]
  %v1109 = vld [vmem:[%s1107 + $0x2] sm:$0x3]
  %v1110 = vld [vmem:[%s1107 + $0x4] sm:$0x3]
  %v1111 = vld [vmem:[%s1107 + $0x6] sm:$0x3]
  %v1112 = vld [vmem:[%s1107 + $0x8] sm:$0x3]
  %v1113 = vld [vmem:[%s1107 + $0xa] sm:$0x3]
  %v1114 = vld [vmem:[%s1107 + $0xc] sm:$0x3]
  %v1115 = vld [vmem:[%s1107 + $0xe] sm:$0x3]
  %v1116 = vld [vmem:[%s1107 + $0x10] sm:$0x3]
  %v1117 = vld [vmem:[%s1107 + $0x12] sm:$0x3]
  %v1118 = vld [vmem:[%s1107 + $0x14] sm:$0x3]
  %v1119 = vld [vmem:[%s1107 + $0x16] sm:$0x3]
  %v1120 = vld [vmem:[%s1107 + $0x18] sm:$0x3]
  %v1121 = vld [vmem:[%s1107 + $0x1a] sm:$0x3]
  %v1122 = vld [vmem:[%s1107 + $0x1c] sm:$0x3]
  %v1123 = vld [vmem:[%s1107 + $0x1e] sm:$0x3]
  %s1124 = scalar_lea.vmem %s1, 32
  %v1125 = vld [vmem:[%s1124] sm:$0x3]
  %v1126 = vld [vmem:[%s1124 + $0x2] sm:$0x3]
  %v1127 = vld [vmem:[%s1124 + $0x4] sm:$0x3]
  %v1128 = vld [vmem:[%s1124 + $0x6] sm:$0x3]
  %v1129 = vld [vmem:[%s1124 + $0x8] sm:$0x3]
  %v1130 = vld [vmem:[%s1124 + $0xa] sm:$0x3]
  %v1131 = vld [vmem:[%s1124 + $0xc] sm:$0x3]
  %v1132 = vld [vmem:[%s1124 + $0xe] sm:$0x3]
  %v1133 = vld [vmem:[%s1124 + $0x10] sm:$0x3]
  %v1134 = vld [vmem:[%s1124 + $0x12] sm:$0x3]
  %v1135 = vld [vmem:[%s1124 + $0x14] sm:$0x3]
  %v1136 = vld [vmem:[%s1124 + $0x16] sm:$0x3]
  %v1137 = vld [vmem:[%s1124 + $0x18] sm:$0x3]
  %v1138 = vld [vmem:[%s1124 + $0x1a] sm:$0x3]
  %v1139 = vld [vmem:[%s1124 + $0x1c] sm:$0x3]
  %v1140 = vld [vmem:[%s1124 + $0x1e] sm:$0x3]
  %v1157 = vlaneseq
  %v1158 = vshrl.u32 %v1157, 7
  %v1159 = vsub.s32 0, %v1158
  %v1160 = vrot.slane %v1108, %v1159
  %v1161 = vlaneseq
  %v1162 = vshrl.u32 %v1161, 7
  %v1163 = vsub.s32 1, %v1162
  %v1164 = vrot.slane %v1108, %v1163
  %v1165 = vlaneseq
  %v1166 = vshrl.u32 %v1165, 7
  %v1167 = vsub.s32 0, %v1166
  %v1168 = vrot.slane %v1109, %v1167
  %v1169 = vlaneseq
  %v1170 = vshrl.u32 %v1169, 7
  %v1171 = vsub.s32 1, %v1170
  %v1172 = vrot.slane %v1109, %v1171
  %v1173 = vlaneseq
  %v1174 = vshrl.u32 %v1173, 7
  %v1175 = vsub.s32 0, %v1174
  %v1176 = vrot.slane %v1110, %v1175
  %v1177 = vlaneseq
  %v1178 = vshrl.u32 %v1177, 7
  %v1179 = vsub.s32 1, %v1178
  %v1180 = vrot.slane %v1110, %v1179
  %v1181 = vlaneseq
  %v1182 = vshrl.u32 %v1181, 7
  %v1183 = vsub.s32 0, %v1182
  %v1184 = vrot.slane %v1111, %v1183
  %v1185 = vlaneseq
  %v1186 = vshrl.u32 %v1185, 7
  %v1187 = vsub.s32 1, %v1186
  %v1188 = vrot.slane %v1111, %v1187
  %v1189 = vlaneseq
  %v1190 = vshrl.u32 %v1189, 7
  %v1191 = vsub.s32 0, %v1190
  %v1192 = vrot.slane %v1112, %v1191
  %v1193 = vlaneseq
  %v1194 = vshrl.u32 %v1193, 7
  %v1195 = vsub.s32 1, %v1194
  %v1196 = vrot.slane %v1112, %v1195
  %v1197 = vlaneseq
  %v1198 = vshrl.u32 %v1197, 7
  %v1199 = vsub.s32 0, %v1198
  %v1200 = vrot.slane %v1113, %v1199
  %v1201 = vlaneseq
  %v1202 = vshrl.u32 %v1201, 7
  %v1203 = vsub.s32 1, %v1202
  %v1204 = vrot.slane %v1113, %v1203
  %v1205 = vlaneseq
  %v1206 = vshrl.u32 %v1205, 7
  %v1207 = vsub.s32 0, %v1206
  %v1208 = vrot.slane %v1114, %v1207
  %v1209 = vlaneseq
  %v1210 = vshrl.u32 %v1209, 7
  %v1211 = vsub.s32 1, %v1210
  %v1212 = vrot.slane %v1114, %v1211
  %v1213 = vlaneseq
  %v1214 = vshrl.u32 %v1213, 7
  %v1215 = vsub.s32 0, %v1214
  %v1216 = vrot.slane %v1115, %v1215
  %v1217 = vlaneseq
  %v1218 = vshrl.u32 %v1217, 7
  %v1219 = vsub.s32 1, %v1218
  %v1220 = vrot.slane %v1115, %v1219
  %v1221 = vlaneseq
  %v1222 = vshrl.u32 %v1221, 7
  %v1223 = vsub.s32 0, %v1222
  %v1224 = vrot.slane %v1116, %v1223
  %v1225 = vlaneseq
  %v1226 = vshrl.u32 %v1225, 7
  %v1227 = vsub.s32 1, %v1226
  %v1228 = vrot.slane %v1116, %v1227
  %v1229 = vlaneseq
  %v1230 = vshrl.u32 %v1229, 7
  %v1231 = vsub.s32 0, %v1230
  %v1232 = vrot.slane %v1117, %v1231
  %v1233 = vlaneseq
  %v1234 = vshrl.u32 %v1233, 7
  %v1235 = vsub.s32 1, %v1234
  %v1236 = vrot.slane %v1117, %v1235
  %v1237 = vlaneseq
  %v1238 = vshrl.u32 %v1237, 7
  %v1239 = vsub.s32 0, %v1238
  %v1240 = vrot.slane %v1118, %v1239
  %v1241 = vlaneseq
  %v1242 = vshrl.u32 %v1241, 7
  %v1243 = vsub.s32 1, %v1242
  %v1244 = vrot.slane %v1118, %v1243
  %v1245 = vlaneseq
  %v1246 = vshrl.u32 %v1245, 7
  %v1247 = vsub.s32 0, %v1246
  %v1248 = vrot.slane %v1119, %v1247
  %v1249 = vlaneseq
  %v1250 = vshrl.u32 %v1249, 7
  %v1251 = vsub.s32 1, %v1250
  %v1252 = vrot.slane %v1119, %v1251
  %v1253 = vlaneseq
  %v1254 = vshrl.u32 %v1253, 7
  %v1255 = vsub.s32 0, %v1254
  %v1256 = vrot.slane %v1120, %v1255
  %v1257 = vlaneseq
  %v1258 = vshrl.u32 %v1257, 7
  %v1259 = vsub.s32 1, %v1258
  %v1260 = vrot.slane %v1120, %v1259
  %v1261 = vlaneseq
  %v1262 = vshrl.u32 %v1261, 7
  %v1263 = vsub.s32 0, %v1262
  %v1264 = vrot.slane %v1121, %v1263
  %v1265 = vlaneseq
  %v1266 = vshrl.u32 %v1265, 7
  %v1267 = vsub.s32 1, %v1266
  %v1268 = vrot.slane %v1121, %v1267
  %v1269 = vlaneseq
  %v1270 = vshrl.u32 %v1269, 7
  %v1271 = vsub.s32 0, %v1270
  %v1272 = vrot.slane %v1122, %v1271
  %v1273 = vlaneseq
  %v1274 = vshrl.u32 %v1273, 7
  %v1275 = vsub.s32 1, %v1274
  %v1276 = vrot.slane %v1122, %v1275
  %v1277 = vlaneseq
  %v1278 = vshrl.u32 %v1277, 7
  %v1279 = vsub.s32 0, %v1278
  %v1280 = vrot.slane %v1123, %v1279
  %v1281 = vlaneseq
  %v1282 = vshrl.u32 %v1281, 7
  %v1283 = vsub.s32 1, %v1282
  %v1284 = vrot.slane %v1123, %v1283
  %v1317 = vmul.f32 %v1160, %v51
  %v1318 = vmul.f32 %v1164, %v52
  %v1319 = vmul.f32 %v1160, %v53
  %v1320 = vmul.f32 %v1164, %v54
  %v1321 = vmul.f32 %v1168, %v55
  %v1322 = vmul.f32 %v1172, %v56
  %v1323 = vmul.f32 %v1168, %v57
  %v1324 = vmul.f32 %v1172, %v58
  %v1325 = vmul.f32 %v1176, %v59
  %v1326 = vmul.f32 %v1180, %v60
  %v1327 = vmul.f32 %v1176, %v61
  %v1328 = vmul.f32 %v1180, %v62
  %v1329 = vmul.f32 %v1184, %v63
  %v1330 = vmul.f32 %v1188, %v64
  %v1331 = vmul.f32 %v1184, %v65
  %v1332 = vmul.f32 %v1188, %v66
  %v1333 = vmul.f32 %v1192, %v67
  %v1334 = vmul.f32 %v1196, %v68
  %v1335 = vmul.f32 %v1192, %v69
  %v1336 = vmul.f32 %v1196, %v70
  %v1337 = vmul.f32 %v1200, %v71
  %v1338 = vmul.f32 %v1204, %v72
  %v1339 = vmul.f32 %v1200, %v73
  %v1340 = vmul.f32 %v1204, %v74
  %v1341 = vmul.f32 %v1208, %v75
  %v1342 = vmul.f32 %v1212, %v76
  %v1343 = vmul.f32 %v1208, %v77
  %v1344 = vmul.f32 %v1212, %v78
  %v1345 = vmul.f32 %v1216, %v79
  %v1346 = vmul.f32 %v1220, %v80
  %v1347 = vmul.f32 %v1216, %v81
  %v1348 = vmul.f32 %v1220, %v82
  %v1349 = vmul.f32 %v1224, %v83
  %v1350 = vmul.f32 %v1228, %v84
  %v1351 = vmul.f32 %v1224, %v85
  %v1352 = vmul.f32 %v1228, %v86
  %v1353 = vmul.f32 %v1232, %v87
  %v1354 = vmul.f32 %v1236, %v88
  %v1355 = vmul.f32 %v1232, %v89
  %v1356 = vmul.f32 %v1236, %v90
  %v1357 = vmul.f32 %v1240, %v91
  %v1358 = vmul.f32 %v1244, %v92
  %v1359 = vmul.f32 %v1240, %v93
  %v1360 = vmul.f32 %v1244, %v94
  %v1361 = vmul.f32 %v1248, %v95
  %v1362 = vmul.f32 %v1252, %v96
  %v1363 = vmul.f32 %v1248, %v97
  %v1364 = vmul.f32 %v1252, %v98
  %v1365 = vmul.f32 %v1256, %v99
  %v1366 = vmul.f32 %v1260, %v100
  %v1367 = vmul.f32 %v1256, %v101
  %v1368 = vmul.f32 %v1260, %v102
  %v1369 = vmul.f32 %v1264, %v103
  %v1370 = vmul.f32 %v1268, %v104
  %v1371 = vmul.f32 %v1264, %v105
  %v1372 = vmul.f32 %v1268, %v106
  %v1373 = vmul.f32 %v1272, %v107
  %v1374 = vmul.f32 %v1276, %v108
  %v1375 = vmul.f32 %v1272, %v109
  %v1376 = vmul.f32 %v1276, %v110
  %v1377 = vmul.f32 %v1280, %v111
  %v1378 = vmul.f32 %v1284, %v112
  %v1379 = vmul.f32 %v1280, %v113
  %v1380 = vmul.f32 %v1284, %v114
  %v1381 = vadd.f32 %v1317, %v1321
  %v1382 = vadd.f32 %v1381, %v1325
  %v1383 = vadd.f32 %v1382, %v1329
  %v1384 = vadd.f32 %v1383, %v1333
  %v1385 = vadd.f32 %v1384, %v1337
  %v1386 = vadd.f32 %v1385, %v1341
  %v1387 = vadd.f32 %v1386, %v1345
  %v1388 = vadd.f32 %v1387, %v1349
  %v1389 = vadd.f32 %v1388, %v1353
  %v1390 = vadd.f32 %v1389, %v1357
  %v1391 = vadd.f32 %v1390, %v1361
  %v1392 = vadd.f32 %v1391, %v1365
  %v1393 = vadd.f32 %v1392, %v1369
  %v1394 = vadd.f32 %v1393, %v1373
  %v1395 = vadd.f32 %v1394, %v1377
  %v1396 = vadd.f32 %v1318, %v1322
  %v1397 = vadd.f32 %v1396, %v1326
  %v1398 = vadd.f32 %v1397, %v1330
  %v1399 = vadd.f32 %v1398, %v1334
  %v1400 = vadd.f32 %v1399, %v1338
  %v1401 = vadd.f32 %v1400, %v1342
  %v1402 = vadd.f32 %v1401, %v1346
  %v1403 = vadd.f32 %v1402, %v1350
  %v1404 = vadd.f32 %v1403, %v1354
  %v1405 = vadd.f32 %v1404, %v1358
  %v1406 = vadd.f32 %v1405, %v1362
  %v1407 = vadd.f32 %v1406, %v1366
  %v1408 = vadd.f32 %v1407, %v1370
  %v1409 = vadd.f32 %v1408, %v1374
  %v1410 = vadd.f32 %v1409, %v1378
  %v1411 = vadd.f32 %v1319, %v1323
  %v1412 = vadd.f32 %v1411, %v1327
  %v1413 = vadd.f32 %v1412, %v1331
  %v1414 = vadd.f32 %v1413, %v1335
  %v1415 = vadd.f32 %v1414, %v1339
  %v1416 = vadd.f32 %v1415, %v1343
  %v1417 = vadd.f32 %v1416, %v1347
  %v1418 = vadd.f32 %v1417, %v1351
  %v1419 = vadd.f32 %v1418, %v1355
  %v1420 = vadd.f32 %v1419, %v1359
  %v1421 = vadd.f32 %v1420, %v1363
  %v1422 = vadd.f32 %v1421, %v1367
  %v1423 = vadd.f32 %v1422, %v1371
  %v1424 = vadd.f32 %v1423, %v1375
  %v1425 = vadd.f32 %v1424, %v1379
  %v1426 = vadd.f32 %v1320, %v1324
  %v1427 = vadd.f32 %v1426, %v1328
  %v1428 = vadd.f32 %v1427, %v1332
  %v1429 = vadd.f32 %v1428, %v1336
  %v1430 = vadd.f32 %v1429, %v1340
  %v1431 = vadd.f32 %v1430, %v1344
  %v1432 = vadd.f32 %v1431, %v1348
  %v1433 = vadd.f32 %v1432, %v1352
  %v1434 = vadd.f32 %v1433, %v1356
  %v1435 = vadd.f32 %v1434, %v1360
  %v1436 = vadd.f32 %v1435, %v1364
  %v1437 = vadd.f32 %v1436, %v1368
  %v1438 = vadd.f32 %v1437, %v1372
  %v1439 = vadd.f32 %v1438, %v1376
  %v1440 = vadd.f32 %v1439, %v1380
  %v1457 = vlaneseq
  %v1458 = vshrl.u32 %v1457, 7
  %v1459 = vsub.s32 0, %v1458
  %v1460 = vrot.slane %v1125, %v1459
  %v1461 = vlaneseq
  %v1462 = vshrl.u32 %v1461, 7
  %v1463 = vsub.s32 1, %v1462
  %v1464 = vrot.slane %v1125, %v1463
  %v1465 = vlaneseq
  %v1466 = vshrl.u32 %v1465, 7
  %v1467 = vsub.s32 0, %v1466
  %v1468 = vrot.slane %v1126, %v1467
  %v1469 = vlaneseq
  %v1470 = vshrl.u32 %v1469, 7
  %v1471 = vsub.s32 1, %v1470
  %v1472 = vrot.slane %v1126, %v1471
  %v1473 = vlaneseq
  %v1474 = vshrl.u32 %v1473, 7
  %v1475 = vsub.s32 0, %v1474
  %v1476 = vrot.slane %v1127, %v1475
  %v1477 = vlaneseq
  %v1478 = vshrl.u32 %v1477, 7
  %v1479 = vsub.s32 1, %v1478
  %v1480 = vrot.slane %v1127, %v1479
  %v1481 = vlaneseq
  %v1482 = vshrl.u32 %v1481, 7
  %v1483 = vsub.s32 0, %v1482
  %v1484 = vrot.slane %v1128, %v1483
  %v1485 = vlaneseq
  %v1486 = vshrl.u32 %v1485, 7
  %v1487 = vsub.s32 1, %v1486
  %v1488 = vrot.slane %v1128, %v1487
  %v1489 = vlaneseq
  %v1490 = vshrl.u32 %v1489, 7
  %v1491 = vsub.s32 0, %v1490
  %v1492 = vrot.slane %v1129, %v1491
  %v1493 = vlaneseq
  %v1494 = vshrl.u32 %v1493, 7
  %v1495 = vsub.s32 1, %v1494
  %v1496 = vrot.slane %v1129, %v1495
  %v1497 = vlaneseq
  %v1498 = vshrl.u32 %v1497, 7
  %v1499 = vsub.s32 0, %v1498
  %v1500 = vrot.slane %v1130, %v1499
  %v1501 = vlaneseq
  %v1502 = vshrl.u32 %v1501, 7
  %v1503 = vsub.s32 1, %v1502
  %v1504 = vrot.slane %v1130, %v1503
  %v1505 = vlaneseq
  %v1506 = vshrl.u32 %v1505, 7
  %v1507 = vsub.s32 0, %v1506
  %v1508 = vrot.slane %v1131, %v1507
  %v1509 = vlaneseq
  %v1510 = vshrl.u32 %v1509, 7
  %v1511 = vsub.s32 1, %v1510
  %v1512 = vrot.slane %v1131, %v1511
  %v1513 = vlaneseq
  %v1514 = vshrl.u32 %v1513, 7
  %v1515 = vsub.s32 0, %v1514
  %v1516 = vrot.slane %v1132, %v1515
  %v1517 = vlaneseq
  %v1518 = vshrl.u32 %v1517, 7
  %v1519 = vsub.s32 1, %v1518
  %v1520 = vrot.slane %v1132, %v1519
  %v1521 = vlaneseq
  %v1522 = vshrl.u32 %v1521, 7
  %v1523 = vsub.s32 0, %v1522
  %v1524 = vrot.slane %v1133, %v1523
  %v1525 = vlaneseq
  %v1526 = vshrl.u32 %v1525, 7
  %v1527 = vsub.s32 1, %v1526
  %v1528 = vrot.slane %v1133, %v1527
  %v1529 = vlaneseq
  %v1530 = vshrl.u32 %v1529, 7
  %v1531 = vsub.s32 0, %v1530
  %v1532 = vrot.slane %v1134, %v1531
  %v1533 = vlaneseq
  %v1534 = vshrl.u32 %v1533, 7
  %v1535 = vsub.s32 1, %v1534
  %v1536 = vrot.slane %v1134, %v1535
  %v1537 = vlaneseq
  %v1538 = vshrl.u32 %v1537, 7
  %v1539 = vsub.s32 0, %v1538
  %v1540 = vrot.slane %v1135, %v1539
  %v1541 = vlaneseq
  %v1542 = vshrl.u32 %v1541, 7
  %v1543 = vsub.s32 1, %v1542
  %v1544 = vrot.slane %v1135, %v1543
  %v1545 = vlaneseq
  %v1546 = vshrl.u32 %v1545, 7
  %v1547 = vsub.s32 0, %v1546
  %v1548 = vrot.slane %v1136, %v1547
  %v1549 = vlaneseq
  %v1550 = vshrl.u32 %v1549, 7
  %v1551 = vsub.s32 1, %v1550
  %v1552 = vrot.slane %v1136, %v1551
  %v1553 = vlaneseq
  %v1554 = vshrl.u32 %v1553, 7
  %v1555 = vsub.s32 0, %v1554
  %v1556 = vrot.slane %v1137, %v1555
  %v1557 = vlaneseq
  %v1558 = vshrl.u32 %v1557, 7
  %v1559 = vsub.s32 1, %v1558
  %v1560 = vrot.slane %v1137, %v1559
  %v1561 = vlaneseq
  %v1562 = vshrl.u32 %v1561, 7
  %v1563 = vsub.s32 0, %v1562
  %v1564 = vrot.slane %v1138, %v1563
  %v1565 = vlaneseq
  %v1566 = vshrl.u32 %v1565, 7
  %v1567 = vsub.s32 1, %v1566
  %v1568 = vrot.slane %v1138, %v1567
  %v1569 = vlaneseq
  %v1570 = vshrl.u32 %v1569, 7
  %v1571 = vsub.s32 0, %v1570
  %v1572 = vrot.slane %v1139, %v1571
  %v1573 = vlaneseq
  %v1574 = vshrl.u32 %v1573, 7
  %v1575 = vsub.s32 1, %v1574
  %v1576 = vrot.slane %v1139, %v1575
  %v1577 = vlaneseq
  %v1578 = vshrl.u32 %v1577, 7
  %v1579 = vsub.s32 0, %v1578
  %v1580 = vrot.slane %v1140, %v1579
  %v1581 = vlaneseq
  %v1582 = vshrl.u32 %v1581, 7
  %v1583 = vsub.s32 1, %v1582
  %v1584 = vrot.slane %v1140, %v1583
  %v1617 = vmul.f32 %v1460, %v147
  %v1618 = vmul.f32 %v1464, %v148
  %v1619 = vmul.f32 %v1460, %v149
  %v1620 = vmul.f32 %v1464, %v150
  %v1621 = vmul.f32 %v1468, %v151
  %v1622 = vmul.f32 %v1472, %v152
  %v1623 = vmul.f32 %v1468, %v153
  %v1624 = vmul.f32 %v1472, %v154
  %v1625 = vmul.f32 %v1476, %v155
  %v1626 = vmul.f32 %v1480, %v156
  %v1627 = vmul.f32 %v1476, %v157
  %v1628 = vmul.f32 %v1480, %v158
  %v1629 = vmul.f32 %v1484, %v159
  %v1630 = vmul.f32 %v1488, %v160
  %v1631 = vmul.f32 %v1484, %v161
  %v1632 = vmul.f32 %v1488, %v162
  %v1633 = vmul.f32 %v1492, %v163
  %v1634 = vmul.f32 %v1496, %v164
  %v1635 = vmul.f32 %v1492, %v165
  %v1636 = vmul.f32 %v1496, %v166
  %v1637 = vmul.f32 %v1500, %v167
  %v1638 = vmul.f32 %v1504, %v168
  %v1639 = vmul.f32 %v1500, %v169
  %v1640 = vmul.f32 %v1504, %v170
  %v1641 = vmul.f32 %v1508, %v171
  %v1642 = vmul.f32 %v1512, %v172
  %v1643 = vmul.f32 %v1508, %v173
  %v1644 = vmul.f32 %v1512, %v174
  %v1645 = vmul.f32 %v1516, %v175
  %v1646 = vmul.f32 %v1520, %v176
  %v1647 = vmul.f32 %v1516, %v177
  %v1648 = vmul.f32 %v1520, %v178
  %v1649 = vmul.f32 %v1524, %v179
  %v1650 = vmul.f32 %v1528, %v180
  %v1651 = vmul.f32 %v1524, %v181
  %v1652 = vmul.f32 %v1528, %v182
  %v1653 = vmul.f32 %v1532, %v183
  %v1654 = vmul.f32 %v1536, %v184
  %v1655 = vmul.f32 %v1532, %v185
  %v1656 = vmul.f32 %v1536, %v186
  %v1657 = vmul.f32 %v1540, %v187
  %v1658 = vmul.f32 %v1544, %v188
  %v1659 = vmul.f32 %v1540, %v189
  %v1660 = vmul.f32 %v1544, %v190
  %v1661 = vmul.f32 %v1548, %v191
  %v1662 = vmul.f32 %v1552, %v192
  %v1663 = vmul.f32 %v1548, %v193
  %v1664 = vmul.f32 %v1552, %v194
  %v1665 = vmul.f32 %v1556, %v195
  %v1666 = vmul.f32 %v1560, %v196
  %v1667 = vmul.f32 %v1556, %v197
  %v1668 = vmul.f32 %v1560, %v198
  %v1669 = vmul.f32 %v1564, %v199
  %v1670 = vmul.f32 %v1568, %v200
  %v1671 = vmul.f32 %v1564, %v201
  %v1672 = vmul.f32 %v1568, %v202
  %v1673 = vmul.f32 %v1572, %v203
  %v1674 = vmul.f32 %v1576, %v204
  %v1675 = vmul.f32 %v1572, %v205
  %v1676 = vmul.f32 %v1576, %v206
  %v1677 = vmul.f32 %v1580, %v207
  %v1678 = vmul.f32 %v1584, %v208
  %v1679 = vmul.f32 %v1580, %v209
  %v1680 = vmul.f32 %v1584, %v210
  %v1681 = vadd.f32 %v1617, %v1621
  %v1682 = vadd.f32 %v1681, %v1625
  %v1683 = vadd.f32 %v1682, %v1629
  %v1684 = vadd.f32 %v1683, %v1633
  %v1685 = vadd.f32 %v1684, %v1637
  %v1686 = vadd.f32 %v1685, %v1641
  %v1687 = vadd.f32 %v1686, %v1645
  %v1688 = vadd.f32 %v1687, %v1649
  %v1689 = vadd.f32 %v1688, %v1653
  %v1690 = vadd.f32 %v1689, %v1657
  %v1691 = vadd.f32 %v1690, %v1661
  %v1692 = vadd.f32 %v1691, %v1665
  %v1693 = vadd.f32 %v1692, %v1669
  %v1694 = vadd.f32 %v1693, %v1673
  %v1695 = vadd.f32 %v1694, %v1677
  %v1696 = vadd.f32 %v1618, %v1622
  %v1697 = vadd.f32 %v1696, %v1626
  %v1698 = vadd.f32 %v1697, %v1630
  %v1699 = vadd.f32 %v1698, %v1634
  %v1700 = vadd.f32 %v1699, %v1638
  %v1701 = vadd.f32 %v1700, %v1642
  %v1702 = vadd.f32 %v1701, %v1646
  %v1703 = vadd.f32 %v1702, %v1650
  %v1704 = vadd.f32 %v1703, %v1654
  %v1705 = vadd.f32 %v1704, %v1658
  %v1706 = vadd.f32 %v1705, %v1662
  %v1707 = vadd.f32 %v1706, %v1666
  %v1708 = vadd.f32 %v1707, %v1670
  %v1709 = vadd.f32 %v1708, %v1674
  %v1710 = vadd.f32 %v1709, %v1678
  %v1711 = vadd.f32 %v1619, %v1623
  %v1712 = vadd.f32 %v1711, %v1627
  %v1713 = vadd.f32 %v1712, %v1631
  %v1714 = vadd.f32 %v1713, %v1635
  %v1715 = vadd.f32 %v1714, %v1639
  %v1716 = vadd.f32 %v1715, %v1643
  %v1717 = vadd.f32 %v1716, %v1647
  %v1718 = vadd.f32 %v1717, %v1651
  %v1719 = vadd.f32 %v1718, %v1655
  %v1720 = vadd.f32 %v1719, %v1659
  %v1721 = vadd.f32 %v1720, %v1663
  %v1722 = vadd.f32 %v1721, %v1667
  %v1723 = vadd.f32 %v1722, %v1671
  %v1724 = vadd.f32 %v1723, %v1675
  %v1725 = vadd.f32 %v1724, %v1679
  %v1726 = vadd.f32 %v1620, %v1624
  %v1727 = vadd.f32 %v1726, %v1628
  %v1728 = vadd.f32 %v1727, %v1632
  %v1729 = vadd.f32 %v1728, %v1636
  %v1730 = vadd.f32 %v1729, %v1640
  %v1731 = vadd.f32 %v1730, %v1644
  %v1732 = vadd.f32 %v1731, %v1648
  %v1733 = vadd.f32 %v1732, %v1652
  %v1734 = vadd.f32 %v1733, %v1656
  %v1735 = vadd.f32 %v1734, %v1660
  %v1736 = vadd.f32 %v1735, %v1664
  %v1737 = vadd.f32 %v1736, %v1668
  %v1738 = vadd.f32 %v1737, %v1672
  %v1739 = vadd.f32 %v1738, %v1676
  %v1740 = vadd.f32 %v1739, %v1680
  %v1741 = vmul.f32 %v1160, %v147
  %v1742 = vmul.f32 %v1164, %v148
  %v1743 = vmul.f32 %v1160, %v149
  %v1744 = vmul.f32 %v1164, %v150
  %v1745 = vmul.f32 %v1168, %v151
  %v1746 = vmul.f32 %v1172, %v152
  %v1747 = vmul.f32 %v1168, %v153
  %v1748 = vmul.f32 %v1172, %v154
  %v1749 = vmul.f32 %v1176, %v155
  %v1750 = vmul.f32 %v1180, %v156
  %v1751 = vmul.f32 %v1176, %v157
  %v1752 = vmul.f32 %v1180, %v158
  %v1753 = vmul.f32 %v1184, %v159
  %v1754 = vmul.f32 %v1188, %v160
  %v1755 = vmul.f32 %v1184, %v161
  %v1756 = vmul.f32 %v1188, %v162
  %v1757 = vmul.f32 %v1192, %v163
  %v1758 = vmul.f32 %v1196, %v164
  %v1759 = vmul.f32 %v1192, %v165
  %v1760 = vmul.f32 %v1196, %v166
  %v1761 = vmul.f32 %v1200, %v167
  %v1762 = vmul.f32 %v1204, %v168
  %v1763 = vmul.f32 %v1200, %v169
  %v1764 = vmul.f32 %v1204, %v170
  %v1765 = vmul.f32 %v1208, %v171
  %v1766 = vmul.f32 %v1212, %v172
  %v1767 = vmul.f32 %v1208, %v173
  %v1768 = vmul.f32 %v1212, %v174
  %v1769 = vmul.f32 %v1216, %v175
  %v1770 = vmul.f32 %v1220, %v176
  %v1771 = vmul.f32 %v1216, %v177
  %v1772 = vmul.f32 %v1220, %v178
  %v1773 = vmul.f32 %v1224, %v179
  %v1774 = vmul.f32 %v1228, %v180
  %v1775 = vmul.f32 %v1224, %v181
  %v1776 = vmul.f32 %v1228, %v182
  %v1777 = vmul.f32 %v1232, %v183
  %v1778 = vmul.f32 %v1236, %v184
  %v1779 = vmul.f32 %v1232, %v185
  %v1780 = vmul.f32 %v1236, %v186
  %v1781 = vmul.f32 %v1240, %v187
  %v1782 = vmul.f32 %v1244, %v188
  %v1783 = vmul.f32 %v1240, %v189
  %v1784 = vmul.f32 %v1244, %v190
  %v1785 = vmul.f32 %v1248, %v191
  %v1786 = vmul.f32 %v1252, %v192
  %v1787 = vmul.f32 %v1248, %v193
  %v1788 = vmul.f32 %v1252, %v194
  %v1789 = vmul.f32 %v1256, %v195
  %v1790 = vmul.f32 %v1260, %v196
  %v1791 = vmul.f32 %v1256, %v197
  %v1792 = vmul.f32 %v1260, %v198
  %v1793 = vmul.f32 %v1264, %v199
  %v1794 = vmul.f32 %v1268, %v200
  %v1795 = vmul.f32 %v1264, %v201
  %v1796 = vmul.f32 %v1268, %v202
  %v1797 = vmul.f32 %v1272, %v203
  %v1798 = vmul.f32 %v1276, %v204
  %v1799 = vmul.f32 %v1272, %v205
  %v1800 = vmul.f32 %v1276, %v206
  %v1801 = vmul.f32 %v1280, %v207
  %v1802 = vmul.f32 %v1284, %v208
  %v1803 = vmul.f32 %v1280, %v209
  %v1804 = vmul.f32 %v1284, %v210
  %v1805 = vadd.f32 %v1741, %v1745
  %v1806 = vadd.f32 %v1805, %v1749
  %v1807 = vadd.f32 %v1806, %v1753
  %v1808 = vadd.f32 %v1807, %v1757
  %v1809 = vadd.f32 %v1808, %v1761
  %v1810 = vadd.f32 %v1809, %v1765
  %v1811 = vadd.f32 %v1810, %v1769
  %v1812 = vadd.f32 %v1811, %v1773
  %v1813 = vadd.f32 %v1812, %v1777
  %v1814 = vadd.f32 %v1813, %v1781
  %v1815 = vadd.f32 %v1814, %v1785
  %v1816 = vadd.f32 %v1815, %v1789
  %v1817 = vadd.f32 %v1816, %v1793
  %v1818 = vadd.f32 %v1817, %v1797
  %v1819 = vadd.f32 %v1818, %v1801
  %v1820 = vadd.f32 %v1742, %v1746
  %v1821 = vadd.f32 %v1820, %v1750
  %v1822 = vadd.f32 %v1821, %v1754
  %v1823 = vadd.f32 %v1822, %v1758
  %v1824 = vadd.f32 %v1823, %v1762
  %v1825 = vadd.f32 %v1824, %v1766
  %v1826 = vadd.f32 %v1825, %v1770
  %v1827 = vadd.f32 %v1826, %v1774
  %v1828 = vadd.f32 %v1827, %v1778
  %v1829 = vadd.f32 %v1828, %v1782
  %v1830 = vadd.f32 %v1829, %v1786
  %v1831 = vadd.f32 %v1830, %v1790
  %v1832 = vadd.f32 %v1831, %v1794
  %v1833 = vadd.f32 %v1832, %v1798
  %v1834 = vadd.f32 %v1833, %v1802
  %v1835 = vadd.f32 %v1743, %v1747
  %v1836 = vadd.f32 %v1835, %v1751
  %v1837 = vadd.f32 %v1836, %v1755
  %v1838 = vadd.f32 %v1837, %v1759
  %v1839 = vadd.f32 %v1838, %v1763
  %v1840 = vadd.f32 %v1839, %v1767
  %v1841 = vadd.f32 %v1840, %v1771
  %v1842 = vadd.f32 %v1841, %v1775
  %v1843 = vadd.f32 %v1842, %v1779
  %v1844 = vadd.f32 %v1843, %v1783
  %v1845 = vadd.f32 %v1844, %v1787
  %v1846 = vadd.f32 %v1845, %v1791
  %v1847 = vadd.f32 %v1846, %v1795
  %v1848 = vadd.f32 %v1847, %v1799
  %v1849 = vadd.f32 %v1848, %v1803
  %v1850 = vadd.f32 %v1744, %v1748
  %v1851 = vadd.f32 %v1850, %v1752
  %v1852 = vadd.f32 %v1851, %v1756
  %v1853 = vadd.f32 %v1852, %v1760
  %v1854 = vadd.f32 %v1853, %v1764
  %v1855 = vadd.f32 %v1854, %v1768
  %v1856 = vadd.f32 %v1855, %v1772
  %v1857 = vadd.f32 %v1856, %v1776
  %v1858 = vadd.f32 %v1857, %v1780
  %v1859 = vadd.f32 %v1858, %v1784
  %v1860 = vadd.f32 %v1859, %v1788
  %v1861 = vadd.f32 %v1860, %v1792
  %v1862 = vadd.f32 %v1861, %v1796
  %v1863 = vadd.f32 %v1862, %v1800
  %v1864 = vadd.f32 %v1863, %v1804
  %v1865 = vmul.f32 %v1460, %v51
  %v1866 = vmul.f32 %v1464, %v52
  %v1867 = vmul.f32 %v1460, %v53
  %v1868 = vmul.f32 %v1464, %v54
  %v1869 = vmul.f32 %v1468, %v55
  %v1870 = vmul.f32 %v1472, %v56
  %v1871 = vmul.f32 %v1468, %v57
  %v1872 = vmul.f32 %v1472, %v58
  %v1873 = vmul.f32 %v1476, %v59
  %v1874 = vmul.f32 %v1480, %v60
  %v1875 = vmul.f32 %v1476, %v61
  %v1876 = vmul.f32 %v1480, %v62
  %v1877 = vmul.f32 %v1484, %v63
  %v1878 = vmul.f32 %v1488, %v64
  %v1879 = vmul.f32 %v1484, %v65
  %v1880 = vmul.f32 %v1488, %v66
  %v1881 = vmul.f32 %v1492, %v67
  %v1882 = vmul.f32 %v1496, %v68
  %v1883 = vmul.f32 %v1492, %v69
  %v1884 = vmul.f32 %v1496, %v70
  %v1885 = vmul.f32 %v1500, %v71
  %v1886 = vmul.f32 %v1504, %v72
  %v1887 = vmul.f32 %v1500, %v73
  %v1888 = vmul.f32 %v1504, %v74
  %v1889 = vmul.f32 %v1508, %v75
  %v1890 = vmul.f32 %v1512, %v76
  %v1891 = vmul.f32 %v1508, %v77
  %v1892 = vmul.f32 %v1512, %v78
  %v1893 = vmul.f32 %v1516, %v79
  %v1894 = vmul.f32 %v1520, %v80
  %v1895 = vmul.f32 %v1516, %v81
  %v1896 = vmul.f32 %v1520, %v82
  %v1897 = vmul.f32 %v1524, %v83
  %v1898 = vmul.f32 %v1528, %v84
  %v1899 = vmul.f32 %v1524, %v85
  %v1900 = vmul.f32 %v1528, %v86
  %v1901 = vmul.f32 %v1532, %v87
  %v1902 = vmul.f32 %v1536, %v88
  %v1903 = vmul.f32 %v1532, %v89
  %v1904 = vmul.f32 %v1536, %v90
  %v1905 = vmul.f32 %v1540, %v91
  %v1906 = vmul.f32 %v1544, %v92
  %v1907 = vmul.f32 %v1540, %v93
  %v1908 = vmul.f32 %v1544, %v94
  %v1909 = vmul.f32 %v1548, %v95
  %v1910 = vmul.f32 %v1552, %v96
  %v1911 = vmul.f32 %v1548, %v97
  %v1912 = vmul.f32 %v1552, %v98
  %v1913 = vmul.f32 %v1556, %v99
  %v1914 = vmul.f32 %v1560, %v100
  %v1915 = vmul.f32 %v1556, %v101
  %v1916 = vmul.f32 %v1560, %v102
  %v1917 = vmul.f32 %v1564, %v103
  %v1918 = vmul.f32 %v1568, %v104
  %v1919 = vmul.f32 %v1564, %v105
  %v1920 = vmul.f32 %v1568, %v106
  %v1921 = vmul.f32 %v1572, %v107
  %v1922 = vmul.f32 %v1576, %v108
  %v1923 = vmul.f32 %v1572, %v109
  %v1924 = vmul.f32 %v1576, %v110
  %v1925 = vmul.f32 %v1580, %v111
  %v1926 = vmul.f32 %v1584, %v112
  %v1927 = vmul.f32 %v1580, %v113
  %v1928 = vmul.f32 %v1584, %v114
  %v1929 = vadd.f32 %v1865, %v1869
  %v1930 = vadd.f32 %v1929, %v1873
  %v1931 = vadd.f32 %v1930, %v1877
  %v1932 = vadd.f32 %v1931, %v1881
  %v1933 = vadd.f32 %v1932, %v1885
  %v1934 = vadd.f32 %v1933, %v1889
  %v1935 = vadd.f32 %v1934, %v1893
  %v1936 = vadd.f32 %v1935, %v1897
  %v1937 = vadd.f32 %v1936, %v1901
  %v1938 = vadd.f32 %v1937, %v1905
  %v1939 = vadd.f32 %v1938, %v1909
  %v1940 = vadd.f32 %v1939, %v1913
  %v1941 = vadd.f32 %v1940, %v1917
  %v1942 = vadd.f32 %v1941, %v1921
  %v1943 = vadd.f32 %v1942, %v1925
  %v1944 = vadd.f32 %v1866, %v1870
  %v1945 = vadd.f32 %v1944, %v1874
  %v1946 = vadd.f32 %v1945, %v1878
  %v1947 = vadd.f32 %v1946, %v1882
  %v1948 = vadd.f32 %v1947, %v1886
  %v1949 = vadd.f32 %v1948, %v1890
  %v1950 = vadd.f32 %v1949, %v1894
  %v1951 = vadd.f32 %v1950, %v1898
  %v1952 = vadd.f32 %v1951, %v1902
  %v1953 = vadd.f32 %v1952, %v1906
  %v1954 = vadd.f32 %v1953, %v1910
  %v1955 = vadd.f32 %v1954, %v1914
  %v1956 = vadd.f32 %v1955, %v1918
  %v1957 = vadd.f32 %v1956, %v1922
  %v1958 = vadd.f32 %v1957, %v1926
  %v1959 = vadd.f32 %v1867, %v1871
  %v1960 = vadd.f32 %v1959, %v1875
  %v1961 = vadd.f32 %v1960, %v1879
  %v1962 = vadd.f32 %v1961, %v1883
  %v1963 = vadd.f32 %v1962, %v1887
  %v1964 = vadd.f32 %v1963, %v1891
  %v1965 = vadd.f32 %v1964, %v1895
  %v1966 = vadd.f32 %v1965, %v1899
  %v1967 = vadd.f32 %v1966, %v1903
  %v1968 = vadd.f32 %v1967, %v1907
  %v1969 = vadd.f32 %v1968, %v1911
  %v1970 = vadd.f32 %v1969, %v1915
  %v1971 = vadd.f32 %v1970, %v1919
  %v1972 = vadd.f32 %v1971, %v1923
  %v1973 = vadd.f32 %v1972, %v1927
  %v1974 = vadd.f32 %v1868, %v1872
  %v1975 = vadd.f32 %v1974, %v1876
  %v1976 = vadd.f32 %v1975, %v1880
  %v1977 = vadd.f32 %v1976, %v1884
  %v1978 = vadd.f32 %v1977, %v1888
  %v1979 = vadd.f32 %v1978, %v1892
  %v1980 = vadd.f32 %v1979, %v1896
  %v1981 = vadd.f32 %v1980, %v1900
  %v1982 = vadd.f32 %v1981, %v1904
  %v1983 = vadd.f32 %v1982, %v1908
  %v1984 = vadd.f32 %v1983, %v1912
  %v1985 = vadd.f32 %v1984, %v1916
  %v1986 = vadd.f32 %v1985, %v1920
  %v1987 = vadd.f32 %v1986, %v1924
  %v1988 = vadd.f32 %v1987, %v1928
  %v1989 = vsub.f32 %v1395, %v1695
  %v1990 = vsub.f32 %v1410, %v1710
  %v1991 = vsub.f32 %v1425, %v1725
  %v1992 = vsub.f32 %v1440, %v1740
  %s1993 = scalar_lea.vmem %s4, 32
  %1994 = vst [vmem:[%s1993] sm:$0xff] %v1989
  %1995 = vst [vmem:[%s1993 + $0x8] sm:$0xff] %v1990
  %1996 = vst [vmem:[%s1993 + $0x10] sm:$0xff] %v1991
  %1997 = vst [vmem:[%s1993 + $0x18] sm:$0xff] %v1992
  %v1998 = vadd.f32 %v1819, %v1943
  %v1999 = vadd.f32 %v1834, %v1958
  %v2000 = vadd.f32 %v1849, %v1973
  %v2001 = vadd.f32 %v1864, %v1988
  %s2002 = scalar_lea.vmem %s5, 32
  %2003 = vst [vmem:[%s2002] sm:$0xff] %v1998
  %2004 = vst [vmem:[%s2002 + $0x8] sm:$0xff] %v1999
  %2005 = vst [vmem:[%s2002 + $0x10] sm:$0xff] %v2000
  %2006 = vst [vmem:[%s2002 + $0x18] sm:$0xff] %v2001
  // Predicated region
  $region18: #{fno3d_forward.11} parent=0 // pred_check
    _
  $region19: #{fno3d_forward.11} parent=0 // pred_check_branch
    %2008 = sbr.rel (0) target = $region21
  $region20: #{fno3d_forward.11} parent=0 // pred_region
    _
  $region21: #{fno3d_forward.11} parent=0 // pred_fallthru
    _
  // Predicated region
  $region22: #{fno3d_forward.11} parent=0 // pred_check
    _
  $region23: #{fno3d_forward.11} parent=0 // pred_check_branch
    %2010 = sbr.rel (0) target = $region25
  $region24: #{fno3d_forward.11} parent=0 // pred_region
    _
  $region25: #{fno3d_forward.11} parent=0 // pred_fallthru
    _
  // Predicated region
  $region26: #{fno3d_forward.11} parent=0 // pred_check
    _
  $region27: #{fno3d_forward.11} parent=0 // pred_check_branch
    %2012 = sbr.rel (0) target = $region29
  $region28: #{fno3d_forward.11} parent=0 // pred_region
    _
  $region29: #{fno3d_forward.11} parent=0 // pred_fallthru
    _
  // Predicated region
  $region30: #{fno3d_forward.11} parent=0 // pred_check
    _
  $region31: #{fno3d_forward.11} parent=0 // pred_check_branch
    %2014 = sbr.rel (0) target = $region33
  $region32: #{fno3d_forward.11} parent=0 // pred_region
    _
  $region33: #{fno3d_forward.11} parent=0 // pred_fallthru
    _

// kernel: reverse.8
$region0: #{reverse.8}
  #allocation0 [shape = 's32[1]{0}', space=sflag, size = 0x4, scoped, tag = 'scoped memory for reverse.8']
  %s0 = inlined_call_operand.vmem [shape: f32[16,2,8,8,3], index: 0, kind: input, shape index: {}]
  %s1 = inlined_call_operand.vmem [shape: f32[16,2,8,8,3], index: 1, kind: output, shape index: {}]
  %s2 = scalar_lea.vmem %s0, 128
  %v3 = vld [vmem:[%s2] sm:$0xff]
  %4 = vst [vmem:[%s1] sm:$0xff] %v3
  %s5 = scalar_lea.vmem %s0, 320
  %v6 = vld [vmem:[%s5] sm:$0xff]
  %s7 = scalar_lea.vmem %s1, 192
  %8 = vst [vmem:[%s7] sm:$0xff] %v6
  %s9 = scalar_lea.vmem %s0, 64
  %v10 = vld [vmem:[%s9] sm:$0xff]
  %s11 = scalar_lea.vmem %s1, 64
  %12 = vst [vmem:[%s11] sm:$0xff] %v10
  %s13 = scalar_lea.vmem %s0, 256
  %v14 = vld [vmem:[%s13] sm:$0xff]
  %s15 = scalar_lea.vmem %s1, 256
  %16 = vst [vmem:[%s15] sm:$0xff] %v14
  %v17 = vld [vmem:[%s0] sm:$0xff]
  %s18 = scalar_lea.vmem %s1, 128
  %19 = vst [vmem:[%s18] sm:$0xff] %v17
  %s20 = scalar_lea.vmem %s0, 192
  %v21 = vld [vmem:[%s20] sm:$0xff]
  %s22 = scalar_lea.vmem %s1, 320
  %23 = vst [vmem:[%s22] sm:$0xff] %v21
  %s24 = scalar_lea.vmem %s0, 136
  %v25 = vld [vmem:[%s24] sm:$0xff]
  %s26 = scalar_lea.vmem %s1, 8
  %27 = vst [vmem:[%s26] sm:$0xff] %v25
  %s28 = scalar_lea.vmem %s0, 328
  %v29 = vld [vmem:[%s28] sm:$0xff]
  %s30 = scalar_lea.vmem %s1, 200
  %31 = vst [vmem:[%s30] sm:$0xff] %v29
  %s32 = scalar_lea.vmem %s0, 72
  %v33 = vld [vmem:[%s32] sm:$0xff]
  %s34 = scalar_lea.vmem %s1, 72
  %35 = vst [vmem:[%s34] sm:$0xff] %v33
  %s36 = scalar_lea.vmem %s0, 264
  %v37 = vld [vmem:[%s36] sm:$0xff]
  %s38 = scalar_lea.vmem %s1, 264
  %39 = vst [vmem:[%s38] sm:$0xff] %v37
  %s40 = scalar_lea.vmem %s0, 8
  %v41 = vld [vmem:[%s40] sm:$0xff]
  %s42 = scalar_lea.vmem %s1, 136
  %43 = vst [vmem:[%s42] sm:$0xff] %v41
  %s44 = scalar_lea.vmem %s0, 200
  %v45 = vld [vmem:[%s44] sm:$0xff]
  %s46 = scalar_lea.vmem %s1, 328
  %47 = vst [vmem:[%s46] sm:$0xff] %v45
  %s48 = scalar_lea.vmem %s0, 144
  %v49 = vld [vmem:[%s48] sm:$0xff]
  %s50 = scalar_lea.vmem %s1, 16
  %51 = vst [vmem:[%s50] sm:$0xff] %v49
  %s52 = scalar_lea.vmem %s0, 336
  %v53 = vld [vmem:[%s52] sm:$0xff]
  %s54 = scalar_lea.vmem %s1, 208
  %55 = vst [vmem:[%s54] sm:$0xff] %v53
  %s56 = scalar_lea.vmem %s0, 80
  %v57 = vld [vmem:[%s56] sm:$0xff]
  %s58 = scalar_lea.vmem %s1, 80
  %59 = vst [vmem:[%s58] sm:$0xff] %v57
  %s60 = scalar_lea.vmem %s0, 272
  %v61 = vld [vmem:[%s60] sm:$0xff]
  %s62 = scalar_lea.vmem %s1, 272
  %63 = vst [vmem:[%s62] sm:$0xff] %v61
  %s64 = scalar_lea.vmem %s0, 16
  %v65 = vld [vmem:[%s64] sm:$0xff]
  %s66 = scalar_lea.vmem %s1, 144
  %67 = vst [vmem:[%s66] sm:$0xff] %v65
  %s68 = scalar_lea.vmem %s0, 208
  %v69 = vld [vmem:[%s68] sm:$0xff]
  %s70 = scalar_lea.vmem %s1, 336
  %71 = vst [vmem:[%s70] sm:$0xff] %v69
  %s72 = scalar_lea.vmem %s0, 152
  %v73 = vld [vmem:[%s72] sm:$0xff]
  %s74 = scalar_lea.vmem %s1, 24
  %75 = vst [vmem:[%s74] sm:$0xff] %v73
  %s76 = scalar_lea.vmem %s0, 344
  %v77 = vld [vmem:[%s76] sm:$0xff]
  %s78 = scalar_lea.vmem %s1, 216
  %79 = vst [vmem:[%s78] sm:$0xff] %v77
  %s80 = scalar_lea.vmem %s0, 88
  %v81 = vld [vmem:[%s80] sm:$0xff]
  %s82 = scalar_lea.vmem %s1, 88
  %83 = vst [vmem:[%s82] sm:$0xff] %v81
  %s84 = scalar_lea.vmem %s0, 280
  %v85 = vld [vmem:[%s84] sm:$0xff]
  %s86 = scalar_lea.vmem %s1, 280
  %87 = vst [vmem:[%s86] sm:$0xff] %v85
  %s88 = scalar_lea.vmem %s0, 24
  %v89 = vld [vmem:[%s88] sm:$0xff]
  %s90 = scalar_lea.vmem %s1, 152
  %91 = vst [vmem:[%s90] sm:$0xff] %v89
  %s92 = scalar_lea.vmem %s0, 216
  %v93 = vld [vmem:[%s92] sm:$0xff]
  %s94 = scalar_lea.vmem %s1, 344
  %95 = vst [vmem:[%s94] sm:$0xff] %v93
  %s96 = scalar_lea.vmem %s0, 160
  %v97 = vld [vmem:[%s96] sm:$0xff]
  %s98 = scalar_lea.vmem %s1, 32
  %99 = vst [vmem:[%s98] sm:$0xff] %v97
  %s100 = scalar_lea.vmem %s0, 352
  %v101 = vld [vmem:[%s100] sm:$0xff]
  %s102 = scalar_lea.vmem %s1, 224
  %103 = vst [vmem:[%s102] sm:$0xff] %v101
  %s104 = scalar_lea.vmem %s0, 96
  %v105 = vld [vmem:[%s104] sm:$0xff]
  %s106 = scalar_lea.vmem %s1, 96
  %107 = vst [vmem:[%s106] sm:$0xff] %v105
  %s108 = scalar_lea.vmem %s0, 288
  %v109 = vld [vmem:[%s108] sm:$0xff]
  %s110 = scalar_lea.vmem %s1, 288
  %111 = vst [vmem:[%s110] sm:$0xff] %v109
  %s112 = scalar_lea.vmem %s0, 32
  %v113 = vld [vmem:[%s112] sm:$0xff]
  %s114 = scalar_lea.vmem %s1, 160
  %115 = vst [vmem:[%s114] sm:$0xff] %v113
  %s116 = scalar_lea.vmem %s0, 224
  %v117 = vld [vmem:[%s116] sm:$0xff]
  %s118 = scalar_lea.vmem %s1, 352
  %119 = vst [vmem:[%s118] sm:$0xff] %v117
  %s120 = scalar_lea.vmem %s0, 168
  %v121 = vld [vmem:[%s120] sm:$0xff]
  %s122 = scalar_lea.vmem %s1, 40
  %123 = vst [vmem:[%s122] sm:$0xff] %v121
  %s124 = scalar_lea.vmem %s0, 360
  %v125 = vld [vmem:[%s124] sm:$0xff]
  %s126 = scalar_lea.vmem %s1, 232
  %127 = vst [vmem:[%s126] sm:$0xff] %v125
  %s128 = scalar_lea.vmem %s0, 104
  %v129 = vld [vmem:[%s128] sm:$0xff]
  %s130 = scalar_lea.vmem %s1, 104
  %131 = vst [vmem:[%s130] sm:$0xff] %v129
  %s132 = scalar_lea.vmem %s0, 296
  %v133 = vld [vmem:[%s132] sm:$0xff]
  %s134 = scalar_lea.vmem %s1, 296
  %135 = vst [vmem:[%s134] sm:$0xff] %v133
  %s136 = scalar_lea.vmem %s0, 40
  %v137 = vld [vmem:[%s136] sm:$0xff]
  %s138 = scalar_lea.vmem %s1, 168
  %139 = vst [vmem:[%s138] sm:$0xff] %v137
  %s140 = scalar_lea.vmem %s0, 232
  %v141 = vld [vmem:[%s140] sm:$0xff]
  %s142 = scalar_lea.vmem %s1, 360
  %143 = vst [vmem:[%s142] sm:$0xff] %v141
  %s144 = scalar_lea.vmem %s0, 176
  %v145 = vld [vmem:[%s144] sm:$0xff]
  %s146 = scalar_lea.vmem %s1, 48
  %147 = vst [vmem:[%s146] sm:$0xff] %v145
  %s148 = scalar_lea.vmem %s0, 368
  %v149 = vld [vmem:[%s148] sm:$0xff]
  %s150 = scalar_lea.vmem %s1, 240
  %151 = vst [vmem:[%s150] sm:$0xff] %v149
  %s152 = scalar_lea.vmem %s0, 112
  %v153 = vld [vmem:[%s152] sm:$0xff]
  %s154 = scalar_lea.vmem %s1, 112
  %155 = vst [vmem:[%s154] sm:$0xff] %v153
  %s156 = scalar_lea.vmem %s0, 304
  %v157 = vld [vmem:[%s156] sm:$0xff]
  %s158 = scalar_lea.vmem %s1, 304
  %159 = vst [vmem:[%s158] sm:$0xff] %v157
  %s160 = scalar_lea.vmem %s0, 48
  %v161 = vld [vmem:[%s160] sm:$0xff]
  %s162 = scalar_lea.vmem %s1, 176
  %163 = vst [vmem:[%s162] sm:$0xff] %v161
  %s164 = scalar_lea.vmem %s0, 240
  %v165 = vld [vmem:[%s164] sm:$0xff]
  %s166 = scalar_lea.vmem %s1, 368
  %167 = vst [vmem:[%s166] sm:$0xff] %v165
  %s168 = scalar_lea.vmem %s0, 184
  %v169 = vld [vmem:[%s168] sm:$0xff]
  %s170 = scalar_lea.vmem %s1, 56
  %171 = vst [vmem:[%s170] sm:$0xff] %v169
  %s172 = scalar_lea.vmem %s0, 376
  %v173 = vld [vmem:[%s172] sm:$0xff]
  %s174 = scalar_lea.vmem %s1, 248
  %175 = vst [vmem:[%s174] sm:$0xff] %v173
  %s176 = scalar_lea.vmem %s0, 120
  %v177 = vld [vmem:[%s176] sm:$0xff]
  %s178 = scalar_lea.vmem %s1, 120
  %179 = vst [vmem:[%s178] sm:$0xff] %v177
  %s180 = scalar_lea.vmem %s0, 312
  %v181 = vld [vmem:[%s180] sm:$0xff]
  %s182 = scalar_lea.vmem %s1, 312
  %183 = vst [vmem:[%s182] sm:$0xff] %v181
  %s184 = scalar_lea.vmem %s0, 56
  %v185 = vld [vmem:[%s184] sm:$0xff]
  %s186 = scalar_lea.vmem %s1, 184
  %187 = vst [vmem:[%s186] sm:$0xff] %v185
  %s188 = scalar_lea.vmem %s0, 248
  %v189 = vld [vmem:[%s188] sm:$0xff]
  %s190 = scalar_lea.vmem %s1, 376
  %191 = vst [vmem:[%s190] sm:$0xff] %v189

// kernel: fno3d_forward.12
$region0: #{fno3d_forward.12}
  #allocation0 [shape = 'u32[]', space=smem, size = 0x4, offset = 0x4, fixed_abs, tag = 'smem constant byte address 0x4 - core index']
  #allocation1 [shape = 'u32[144,128]{1,0:T(1,128)}', space=vmem, size = 0x12000, scoped, tag = 'internal scratch']
  %s0 = inlined_call_operand.vmem [shape: f32[16,1024], index: 0, kind: input, shape index: {}]
  %s1 = inlined_call_operand.vmem [shape: f32[16,1024], index: 1, kind: input, shape index: {}, may-alias: {1,4}]
  %s2 = inlined_call_operand.vmem [shape: bf16[16,16], index: 2, kind: input, shape index: {}]
  %s3 = inlined_call_operand.vmem [shape: f32[16,1], index: 3, kind: input, shape index: {}]
  %s4 = inlined_call_operand.vmem [shape: f32[16,1024], index: 4, kind: output, shape index: {}, may-alias: {1,4}]
  %s5 = sld [smem:[#allocation0]]
  $region26: #{fno3d_forward.12} parent=0
    _
  %s7 = ssub.s32 1, %s5
  %s8 = scalar_select 0, %s7, %s5
  // Predicated region
  $region2: #{fno3d_forward.12} parent=0 // pred_check
    _
  $region3: #{fno3d_forward.12} parent=0 // pred_check_branch
    %10 = sbr.rel (0) target = $region5
  $region4: #{fno3d_forward.12} parent=0 // pred_region
    _
  $region5: #{fno3d_forward.12} parent=0 // pred_fallthru
    _
  // Predicated region
  $region6: #{fno3d_forward.12} parent=0 // pred_check
    _
  $region7: #{fno3d_forward.12} parent=0 // pred_check_branch
    %12 = sbr.rel (0) target = $region9
  $region8: #{fno3d_forward.12} parent=0 // pred_region
    _
  $region9: #{fno3d_forward.12} parent=0 // pred_fallthru
    _
  // Predicated region
  $region10: #{fno3d_forward.12} parent=0 // pred_check
    _
  $region11: #{fno3d_forward.12} parent=0 // pred_check_branch
    %14 = sbr.rel (0) target = $region13
  $region12: #{fno3d_forward.12} parent=0 // pred_region
    _
  $region13: #{fno3d_forward.12} parent=0 // pred_fallthru
    _
  // Predicated region
  $region14: #{fno3d_forward.12} parent=0 // pred_check
    _
  $region15: #{fno3d_forward.12} parent=0 // pred_check_branch
    %16 = sbr.rel (0) target = $region17
  $region16: #{fno3d_forward.12} parent=0 // pred_region
    _
  $region17: #{fno3d_forward.12} parent=0 // pred_fallthru
    _
  %v18 = vld [vmem:[%s0] sm:$0xff]
  %v19 = vld [vmem:[%s0 + $0x8] sm:$0xff]
  %v20 = vld [vmem:[%s0 + $0x10] sm:$0xff]
  %v21 = vld [vmem:[%s0 + $0x18] sm:$0xff]
  %v22 = vld [vmem:[%s0 + $0x20] sm:$0xff]
  %v23 = vld [vmem:[%s0 + $0x28] sm:$0xff]
  %v24 = vld [vmem:[%s0 + $0x30] sm:$0xff]
  %v25 = vld [vmem:[%s0 + $0x38] sm:$0xff]
  %v26 = vld [vmem:[%s0 + $0x40] sm:$0xff]
  %v27 = vld [vmem:[%s0 + $0x48] sm:$0xff]
  %v28 = vld [vmem:[%s0 + $0x50] sm:$0xff]
  %v29 = vld [vmem:[%s0 + $0x58] sm:$0xff]
  %v30 = vld [vmem:[%s0 + $0x60] sm:$0xff]
  %v31 = vld [vmem:[%s0 + $0x68] sm:$0xff]
  %v32 = vld [vmem:[%s0 + $0x70] sm:$0xff]
  %v33 = vld [vmem:[%s0 + $0x78] sm:$0xff]
  %v34 = vpack.c.bf16 %v26, %v18
  %v35 = vpack.c.bf16 %v27, %v19
  %v36 = vpack.c.bf16 %v28, %v20
  %v37 = vpack.c.bf16 %v29, %v21
  %v38 = vpack.c.bf16 %v30, %v22
  %v39 = vpack.c.bf16 %v31, %v23
  %v40 = vpack.c.bf16 %v32, %v24
  %v41 = vpack.c.bf16 %v33, %v25
  %v42 = vld [vmem:[%s2] sm:$0xf]
  %v43 = vld [vmem:[%s2 + $0x4] sm:$0xf]
  %v44 = vld [vmem:[%s3] sm:$0xff]
  %v45 = vld [vmem:[%s3 + $0x8] sm:$0xff]
  %47 = vset.pattern.permute.xlu0 0
  %48 = vperm.xlu0 %47, %v44
  %v49 = vpop.permute.xlu0 %48
  %52 = vset.pattern.permute.xlu0 0
  %53 = vperm.xlu0 %52, %v45
  %v54 = vpop.permute.xlu0 %53
  %v58 = vunpack.c.l.b16 %v42
  %v59 = vunpack.c.l.b16 %v43
  %v60 = vpack.c.b16 %v59, %v58
  %vm61 = vcmask 130048
  %v63 = vsel %vm61, %v60, 0
  %65 = vmatprep.subr.bf16.mxu0 %v35
  %66 = vmatpush1.bf16.msra.mxu0 %v34
  %67 = vmatprep.subr.bf16.mxu0 0
  %68 = vmatpush1.bf16.msra.mxu0 0
  %69 = vmatprep.subr.bf16.mxu0 0
  %70 = vmatpush1.bf16.msra.mxu0 0
  %71 = vmatprep.subr.bf16.mxu0 0
  %72 = vmatpush1.bf16.msra.mxu0 0
  %73 = vmatprep.subr.bf16.mxu0 0
  %74 = vmatpush1.bf16.msra.mxu0 0
  %75 = vmatprep.subr.bf16.mxu0 0
  %76 = vmatpush1.bf16.msra.mxu0 0
  %77 = vmatprep.subr.bf16.mxu0 0
  %78 = vmatpush1.bf16.msra.mxu0 0
  %79 = vmatprep.subr.bf16.mxu0 0
  %80 = vmatpush1.bf16.msra.mxu0 0
  %81 = vmatprep.subr.bf16.mxu0 0
  %82 = vmatpush1.bf16.msra.mxu0 0
  %83 = vmatprep.subr.bf16.mxu0 0
  %84 = vmatpush1.bf16.msra.mxu0 0
  %85 = vmatprep.subr.bf16.mxu0 0
  %86 = vmatpush1.bf16.msra.mxu0 0
  %87 = vmatprep.subr.bf16.mxu0 0
  %88 = vmatpush1.bf16.msra.mxu0 0
  %89 = vmatprep.subr.bf16.mxu0 0
  %90 = vmatpush1.bf16.msra.mxu0 0
  %91 = vmatprep.subr.bf16.mxu0 0
  %92 = vmatpush1.bf16.msra.mxu0 0
  %93 = vmatprep.subr.bf16.mxu0 0
  %94 = vmatpush1.bf16.msra.mxu0 0
  %95 = vmatprep.subr.bf16.mxu0 0
  %96 = vmatpush1.bf16.msra.mxu0 0
  %97 = vmatprep.mubr.bf16.mxu0 0
  %98 = vmatmul.mubr.bf16.gmra.mrb[0].mxu0 %v63
  %v99 = vpop.f32.mrb[0].mxu0
  %v100 = vadd.f32 %v49, %v99
  %v101 = vpop.f32.mrb[0].mxu0
  %v102 = vadd.f32 %v49, %v101
  %v103 = vpop.f32.mrb[0].mxu0
  %v104 = vadd.f32 %v54, %v103
  %v105 = vpop.f32.mrb[0].mxu0
  %v106 = vadd.f32 %v54, %v105
  %107 = vdwg.mxu0
  %108 = vmatprep.subr.bf16.mxu0 %v37
  %109 = vmatpush1.bf16.msra.mxu0 %v36
  %110 = vmatprep.subr.bf16.mxu0 0
  %111 = vmatpush1.bf16.msra.mxu0 0
  %112 = vmatprep.subr.bf16.mxu0 0
  %113 = vmatpush1.bf16.msra.mxu0 0
  %114 = vmatprep.subr.bf16.mxu0 0
  %115 = vmatpush1.bf16.msra.mxu0 0
  %116 = vmatprep.subr.bf16.mxu0 0
  %117 = vmatpush1.bf16.msra.mxu0 0
  %118 = vmatprep.subr.bf16.mxu0 0
  %119 = vmatpush1.bf16.msra.mxu0 0
  %120 = vmatprep.subr.bf16.mxu0 0
  %121 = vmatpush1.bf16.msra.mxu0 0
  %122 = vmatprep.subr.bf16.mxu0 0
  %123 = vmatpush1.bf16.msra.mxu0 0
  %124 = vmatprep.subr.bf16.mxu0 0
  %125 = vmatpush1.bf16.msra.mxu0 0
  %126 = vmatprep.subr.bf16.mxu0 0
  %127 = vmatpush1.bf16.msra.mxu0 0
  %128 = vmatprep.subr.bf16.mxu0 0
  %129 = vmatpush1.bf16.msra.mxu0 0
  %130 = vmatprep.subr.bf16.mxu0 0
  %131 = vmatpush1.bf16.msra.mxu0 0
  %132 = vmatprep.subr.bf16.mxu0 0
  %133 = vmatpush1.bf16.msra.mxu0 0
  %134 = vmatprep.subr.bf16.mxu0 0
  %135 = vmatpush1.bf16.msra.mxu0 0
  %136 = vmatprep.subr.bf16.mxu0 0
  %137 = vmatpush1.bf16.msra.mxu0 0
  %138 = vmatprep.subr.bf16.mxu0 0
  %139 = vmatpush1.bf16.msra.mxu0 0
  %140 = vmatprep.mubr.bf16.mxu0 0
  %141 = vmatmul.mubr.bf16.gmra.mrb[0].mxu0 %v63
  %v142 = vpop.f32.mrb[0].mxu0
  %v143 = vadd.f32 %v49, %v142
  %v144 = vpop.f32.mrb[0].mxu0
  %v145 = vadd.f32 %v49, %v144
  %v146 = vpop.f32.mrb[0].mxu0
  %v147 = vadd.f32 %v54, %v146
  %v148 = vpop.f32.mrb[0].mxu0
  %v149 = vadd.f32 %v54, %v148
  %150 = vdwg.mxu0
  %151 = vmatprep.subr.bf16.mxu0 %v39
  %152 = vmatpush1.bf16.msra.mxu0 %v38
  %153 = vmatprep.subr.bf16.mxu0 0
  %154 = vmatpush1.bf16.msra.mxu0 0
  %155 = vmatprep.subr.bf16.mxu0 0
  %156 = vmatpush1.bf16.msra.mxu0 0
  %157 = vmatprep.subr.bf16.mxu0 0
  %158 = vmatpush1.bf16.msra.mxu0 0
  %159 = vmatprep.subr.bf16.mxu0 0
  %160 = vmatpush1.bf16.msra.mxu0 0
  %161 = vmatprep.subr.bf16.mxu0 0
  %162 = vmatpush1.bf16.msra.mxu0 0
  %163 = vmatprep.subr.bf16.mxu0 0
  %164 = vmatpush1.bf16.msra.mxu0 0
  %165 = vmatprep.subr.bf16.mxu0 0
  %166 = vmatpush1.bf16.msra.mxu0 0
  %167 = vmatprep.subr.bf16.mxu0 0
  %168 = vmatpush1.bf16.msra.mxu0 0
  %169 = vmatprep.subr.bf16.mxu0 0
  %170 = vmatpush1.bf16.msra.mxu0 0
  %171 = vmatprep.subr.bf16.mxu0 0
  %172 = vmatpush1.bf16.msra.mxu0 0
  %173 = vmatprep.subr.bf16.mxu0 0
  %174 = vmatpush1.bf16.msra.mxu0 0
  %175 = vmatprep.subr.bf16.mxu0 0
  %176 = vmatpush1.bf16.msra.mxu0 0
  %177 = vmatprep.subr.bf16.mxu0 0
  %178 = vmatpush1.bf16.msra.mxu0 0
  %179 = vmatprep.subr.bf16.mxu0 0
  %180 = vmatpush1.bf16.msra.mxu0 0
  %181 = vmatprep.subr.bf16.mxu0 0
  %182 = vmatpush1.bf16.msra.mxu0 0
  %183 = vmatprep.mubr.bf16.mxu0 0
  %184 = vmatmul.mubr.bf16.gmra.mrb[0].mxu0 %v63
  %v185 = vpop.f32.mrb[0].mxu0
  %v186 = vadd.f32 %v49, %v185
  %v187 = vpop.f32.mrb[0].mxu0
  %v188 = vadd.f32 %v49, %v187
  %v189 = vpop.f32.mrb[0].mxu0
  %v190 = vadd.f32 %v54, %v189
  %v191 = vpop.f32.mrb[0].mxu0
  %v192 = vadd.f32 %v54, %v191
  %193 = vdwg.mxu0
  %194 = vmatprep.subr.bf16.mxu0 %v41
  %195 = vmatpush1.bf16.msra.mxu0 %v40
  %196 = vmatprep.subr.bf16.mxu0 0
  %197 = vmatpush1.bf16.msra.mxu0 0
  %198 = vmatprep.subr.bf16.mxu0 0
  %199 = vmatpush1.bf16.msra.mxu0 0
  %200 = vmatprep.subr.bf16.mxu0 0
  %201 = vmatpush1.bf16.msra.mxu0 0
  %202 = vmatprep.subr.bf16.mxu0 0
  %203 = vmatpush1.bf16.msra.mxu0 0
  %204 = vmatprep.subr.bf16.mxu0 0
  %205 = vmatpush1.bf16.msra.mxu0 0
  %206 = vmatprep.subr.bf16.mxu0 0
  %207 = vmatpush1.bf16.msra.mxu0 0
  %208 = vmatprep.subr.bf16.mxu0 0
  %209 = vmatpush1.bf16.msra.mxu0 0
  %210 = vmatprep.subr.bf16.mxu0 0
  %211 = vmatpush1.bf16.msra.mxu0 0
  %212 = vmatprep.subr.bf16.mxu0 0
  %213 = vmatpush1.bf16.msra.mxu0 0
  %214 = vmatprep.subr.bf16.mxu0 0
  %215 = vmatpush1.bf16.msra.mxu0 0
  %216 = vmatprep.subr.bf16.mxu0 0
  %217 = vmatpush1.bf16.msra.mxu0 0
  %218 = vmatprep.subr.bf16.mxu0 0
  %219 = vmatpush1.bf16.msra.mxu0 0
  %220 = vmatprep.subr.bf16.mxu0 0
  %221 = vmatpush1.bf16.msra.mxu0 0
  %222 = vmatprep.subr.bf16.mxu0 0
  %223 = vmatpush1.bf16.msra.mxu0 0
  %224 = vmatprep.subr.bf16.mxu0 0
  %225 = vmatpush1.bf16.msra.mxu0 0
  %226 = vmatprep.mubr.bf16.mxu0 0
  %227 = vmatmul.mubr.bf16.gmra.mrb[0].mxu0 %v63
  %v228 = vpop.f32.mrb[0].mxu0
  %v229 = vadd.f32 %v49, %v228
  %v230 = vpop.f32.mrb[0].mxu0
  %v231 = vadd.f32 %v49, %v230
  %v232 = vpop.f32.mrb[0].mxu0
  %v233 = vadd.f32 %v54, %v232
  %v234 = vpop.f32.mrb[0].mxu0
  %v235 = vadd.f32 %v54, %v234
  %236 = vdwg.mxu0
  %v237 = vld [vmem:[%s1] sm:$0xff]
  %v238 = vld [vmem:[%s1 + $0x8] sm:$0xff]
  %v239 = vld [vmem:[%s1 + $0x10] sm:$0xff]
  %v240 = vld [vmem:[%s1 + $0x18] sm:$0xff]
  %v241 = vld [vmem:[%s1 + $0x20] sm:$0xff]
  %v242 = vld [vmem:[%s1 + $0x28] sm:$0xff]
  %v243 = vld [vmem:[%s1 + $0x30] sm:$0xff]
  %v244 = vld [vmem:[%s1 + $0x38] sm:$0xff]
  %v245 = vld [vmem:[%s1 + $0x40] sm:$0xff]
  %v246 = vld [vmem:[%s1 + $0x48] sm:$0xff]
  %v247 = vld [vmem:[%s1 + $0x50] sm:$0xff]
  %v248 = vld [vmem:[%s1 + $0x58] sm:$0xff]
  %v249 = vld [vmem:[%s1 + $0x60] sm:$0xff]
  %v250 = vld [vmem:[%s1 + $0x68] sm:$0xff]
  %v251 = vld [vmem:[%s1 + $0x70] sm:$0xff]
  %v252 = vld [vmem:[%s1 + $0x78] sm:$0xff]
  %v253 = vadd.f32 %v100, %v237
  %v254 = vadd.f32 %v102, %v238
  %v255 = vadd.f32 %v143, %v239
  %v256 = vadd.f32 %v145, %v240
  %v257 = vadd.f32 %v186, %v241
  %v258 = vadd.f32 %v188, %v242
  %v259 = vadd.f32 %v229, %v243
  %v260 = vadd.f32 %v231, %v244
  %v261 = vadd.f32 %v104, %v245
  %v262 = vadd.f32 %v106, %v246
  %v263 = vadd.f32 %v147, %v247
  %v264 = vadd.f32 %v149, %v248
  %v265 = vadd.f32 %v190, %v249
  %v266 = vadd.f32 %v192, %v250
  %v267 = vadd.f32 %v233, %v251
  %v268 = vadd.f32 %v235, %v252
  %v269 = vmul.f32 %v253, %v253
  %v270 = vmul.f32 %v254, %v254
  %v271 = vmul.f32 %v255, %v255
  %v272 = vmul.f32 %v256, %v256
  %v273 = vmul.f32 %v257, %v257
  %v274 = vmul.f32 %v258, %v258
  %v275 = vmul.f32 %v259, %v259
  %v276 = vmul.f32 %v260, %v260
  %v277 = vmul.f32 %v261, %v261
  %v278 = vmul.f32 %v262, %v262
  %v279 = vmul.f32 %v263, %v263
  %v280 = vmul.f32 %v264, %v264
  %v281 = vmul.f32 %v265, %v265
  %v282 = vmul.f32 %v266, %v266
  %v283 = vmul.f32 %v267, %v267
  %v284 = vmul.f32 %v268, %v268
  %v285 = vmul.f32 %v253, %v269
  %v286 = vmul.f32 %v254, %v270
  %v287 = vmul.f32 %v255, %v271
  %v288 = vmul.f32 %v256, %v272
  %v289 = vmul.f32 %v257, %v273
  %v290 = vmul.f32 %v258, %v274
  %v291 = vmul.f32 %v259, %v275
  %v292 = vmul.f32 %v260, %v276
  %v293 = vmul.f32 %v261, %v277
  %v294 = vmul.f32 %v262, %v278
  %v295 = vmul.f32 %v263, %v279
  %v296 = vmul.f32 %v264, %v280
  %v297 = vmul.f32 %v265, %v281
  %v298 = vmul.f32 %v266, %v282
  %v299 = vmul.f32 %v267, %v283
  %v300 = vmul.f32 %v268, %v284
  %v301 = vmul.f32 %v285, 0.044715
  %v302 = vmul.f32 %v286, 0.044715
  %v303 = vmul.f32 %v287, 0.044715
  %v304 = vmul.f32 %v288, 0.044715
  %v305 = vmul.f32 %v289, 0.044715
  %v306 = vmul.f32 %v290, 0.044715
  %v307 = vmul.f32 %v291, 0.044715
  %v308 = vmul.f32 %v292, 0.044715
  %v309 = vmul.f32 %v293, 0.044715
  %v310 = vmul.f32 %v294, 0.044715
  %v311 = vmul.f32 %v295, 0.044715
  %v312 = vmul.f32 %v296, 0.044715
  %v313 = vmul.f32 %v297, 0.044715
  %v314 = vmul.f32 %v298, 0.044715
  %v315 = vmul.f32 %v299, 0.044715
  %v316 = vmul.f32 %v300, 0.044715
  %v317 = vadd.f32 %v253, %v301
  %v318 = vadd.f32 %v254, %v302
  %v319 = vadd.f32 %v255, %v303
  %v320 = vadd.f32 %v256, %v304
  %v321 = vadd.f32 %v257, %v305
  %v322 = vadd.f32 %v258, %v306
  %v323 = vadd.f32 %v259, %v307
  %v324 = vadd.f32 %v260, %v308
  %v325 = vadd.f32 %v261, %v309
  %v326 = vadd.f32 %v262, %v310
  %v327 = vadd.f32 %v263, %v311
  %v328 = vadd.f32 %v264, %v312
  %v329 = vadd.f32 %v265, %v313
  %v330 = vadd.f32 %v266, %v314
  %v331 = vadd.f32 %v267, %v315
  %v332 = vadd.f32 %v268, %v316
  %v333 = vmul.f32 %v317, 0.7978846
  %v334 = vmul.f32 %v318, 0.7978846
  %v335 = vmul.f32 %v319, 0.7978846
  %v336 = vmul.f32 %v320, 0.7978846
  %v337 = vmul.f32 %v321, 0.7978846
  %v338 = vmul.f32 %v322, 0.7978846
  %v339 = vmul.f32 %v323, 0.7978846
  %v340 = vmul.f32 %v324, 0.7978846
  %v341 = vmul.f32 %v325, 0.7978846
  %v342 = vmul.f32 %v326, 0.7978846
  %v343 = vmul.f32 %v327, 0.7978846
  %v344 = vmul.f32 %v328, 0.7978846
  %v345 = vmul.f32 %v329, 0.7978846
  %v346 = vmul.f32 %v330, 0.7978846
  %v347 = vmul.f32 %v331, 0.7978846
  %v348 = vmul.f32 %v332, 0.7978846
  %v349 = vtanh.pop %v333
  %v350 = vtanh.pop %v334
  %v351 = vtanh.pop %v335
  %v352 = vtanh.pop %v336
  %v353 = vtanh.pop %v337
  %v354 = vtanh.pop %v338
  %v355 = vtanh.pop %v339
  %v356 = vtanh.pop %v340
  %v357 = vtanh.pop %v341
  %v358 = vtanh.pop %v342
  %v359 = vtanh.pop %v343
  %v360 = vtanh.pop %v344
  %v361 = vtanh.pop %v345
  %v362 = vtanh.pop %v346
  %v363 = vtanh.pop %v347
  %v364 = vtanh.pop %v348
  %v365 = vadd.f32 %v349, 1.0
  %v366 = vadd.f32 %v350, 1.0
  %v367 = vadd.f32 %v351, 1.0
  %v368 = vadd.f32 %v352, 1.0
  %v369 = vadd.f32 %v353, 1.0
  %v370 = vadd.f32 %v354, 1.0
  %v371 = vadd.f32 %v355, 1.0
  %v372 = vadd.f32 %v356, 1.0
  %v373 = vadd.f32 %v357, 1.0
  %v374 = vadd.f32 %v358, 1.0
  %v375 = vadd.f32 %v359, 1.0
  %v376 = vadd.f32 %v360, 1.0
  %v377 = vadd.f32 %v361, 1.0
  %v378 = vadd.f32 %v362, 1.0
  %v379 = vadd.f32 %v363, 1.0
  %v380 = vadd.f32 %v364, 1.0
  %v381 = vmul.f32 %v365, 0.5
  %v382 = vmul.f32 %v366, 0.5
  %v383 = vmul.f32 %v367, 0.5
  %v384 = vmul.f32 %v368, 0.5
  %v385 = vmul.f32 %v369, 0.5
  %v386 = vmul.f32 %v370, 0.5
  %v387 = vmul.f32 %v371, 0.5
  %v388 = vmul.f32 %v372, 0.5
  %v389 = vmul.f32 %v373, 0.5
  %v390 = vmul.f32 %v374, 0.5
  %v391 = vmul.f32 %v375, 0.5
  %v392 = vmul.f32 %v376, 0.5
  %v393 = vmul.f32 %v377, 0.5
  %v394 = vmul.f32 %v378, 0.5
  %v395 = vmul.f32 %v379, 0.5
  %v396 = vmul.f32 %v380, 0.5
  %v397 = vmul.f32 %v253, %v381
  %v398 = vmul.f32 %v254, %v382
  %v399 = vmul.f32 %v255, %v383
  %v400 = vmul.f32 %v256, %v384
  %v401 = vmul.f32 %v257, %v385
  %v402 = vmul.f32 %v258, %v386
  %v403 = vmul.f32 %v259, %v387
  %v404 = vmul.f32 %v260, %v388
  %v405 = vmul.f32 %v261, %v389
  %v406 = vmul.f32 %v262, %v390
  %v407 = vmul.f32 %v263, %v391
  %v408 = vmul.f32 %v264, %v392
  %v409 = vmul.f32 %v265, %v393
  %v410 = vmul.f32 %v266, %v394
  %v411 = vmul.f32 %v267, %v395
  %v412 = vmul.f32 %v268, %v396
  %413 = vst [vmem:[%s4] sm:$0xff] %v397
  %414 = vst [vmem:[%s4 + $0x8] sm:$0xff] %v398
  %415 = vst [vmem:[%s4 + $0x10] sm:$0xff] %v399
  %416 = vst [vmem:[%s4 + $0x18] sm:$0xff] %v400
  %417 = vst [vmem:[%s4 + $0x20] sm:$0xff] %v401
  %418 = vst [vmem:[%s4 + $0x28] sm:$0xff] %v402
  %419 = vst [vmem:[%s4 + $0x30] sm:$0xff] %v403
  %420 = vst [vmem:[%s4 + $0x38] sm:$0xff] %v404
  %421 = vst [vmem:[%s4 + $0x40] sm:$0xff] %v405
  %422 = vst [vmem:[%s4 + $0x48] sm:$0xff] %v406
  %423 = vst [vmem:[%s4 + $0x50] sm:$0xff] %v407
  %424 = vst [vmem:[%s4 + $0x58] sm:$0xff] %v408
  %425 = vst [vmem:[%s4 + $0x60] sm:$0xff] %v409
  %426 = vst [vmem:[%s4 + $0x68] sm:$0xff] %v410
  %427 = vst [vmem:[%s4 + $0x70] sm:$0xff] %v411
  %428 = vst [vmem:[%s4 + $0x78] sm:$0xff] %v412
  // Predicated region
  $region18: #{fno3d_forward.12} parent=0 // pred_check
    _
  $region19: #{fno3d_forward.12} parent=0 // pred_check_branch
    %430 = sbr.rel (0) target = $region21
  $region20: #{fno3d_forward.12} parent=0 // pred_region
    _
  $region21: #{fno3d_forward.12} parent=0 // pred_fallthru
    _
  // Predicated region
  $region22: #{fno3d_forward.12} parent=0 // pred_check
    _
  $region23: #{fno3d_forward.12} parent=0 // pred_check_branch
    %432 = sbr.rel (0) target = $region25
  $region24: #{fno3d_forward.12} parent=0 // pred_region
    _
  $region25: #{fno3d_forward.12} parent=0 // pred_fallthru
    _

// kernel: fno3d_forward.18
$region0: #{fno3d_forward.18}
  #allocation0 [shape = 'u32[]', space=smem, size = 0x4, offset = 0x4, fixed_abs, tag = 'smem constant byte address 0x4 - core index']
  #allocation1 [shape = 'u32[144,128]{1,0:T(1,128)}', space=vmem, size = 0x12000, scoped, tag = 'internal scratch']
  %s0 = inlined_call_operand.vmem [shape: f32[16,1024], index: 0, kind: input, shape index: {}]
  %s1 = inlined_call_operand.vmem [shape: f32[16,1024], index: 1, kind: input, shape index: {}, may-alias: {1,4}]
  %s2 = inlined_call_operand.vmem [shape: bf16[16,16], index: 2, kind: input, shape index: {}]
  %s3 = inlined_call_operand.vmem [shape: f32[16,1], index: 3, kind: input, shape index: {}]
  %s4 = inlined_call_operand.vmem [shape: f32[16,1024], index: 4, kind: output, shape index: {}, may-alias: {1,4}]
  %s5 = sld [smem:[#allocation0]]
  $region26: #{fno3d_forward.18} parent=0
    _
  %s7 = ssub.s32 1, %s5
  %s8 = scalar_select 0, %s7, %s5
  // Predicated region
  $region2: #{fno3d_forward.18} parent=0 // pred_check
    _
  $region3: #{fno3d_forward.18} parent=0 // pred_check_branch
    %10 = sbr.rel (0) target = $region5
  $region4: #{fno3d_forward.18} parent=0 // pred_region
    _
  $region5: #{fno3d_forward.18} parent=0 // pred_fallthru
    _
  // Predicated region
  $region6: #{fno3d_forward.18} parent=0 // pred_check
    _
  $region7: #{fno3d_forward.18} parent=0 // pred_check_branch
    %12 = sbr.rel (0) target = $region9
  $region8: #{fno3d_forward.18} parent=0 // pred_region
    _
  $region9: #{fno3d_forward.18} parent=0 // pred_fallthru
    _
  // Predicated region
  $region10: #{fno3d_forward.18} parent=0 // pred_check
    _
  $region11: #{fno3d_forward.18} parent=0 // pred_check_branch
    %14 = sbr.rel (0) target = $region13
  $region12: #{fno3d_forward.18} parent=0 // pred_region
    _
  $region13: #{fno3d_forward.18} parent=0 // pred_fallthru
    _
  // Predicated region
  $region14: #{fno3d_forward.18} parent=0 // pred_check
    _
  $region15: #{fno3d_forward.18} parent=0 // pred_check_branch
    %16 = sbr.rel (0) target = $region17
  $region16: #{fno3d_forward.18} parent=0 // pred_region
    _
  $region17: #{fno3d_forward.18} parent=0 // pred_fallthru
    _
  %v18 = vld [vmem:[%s0] sm:$0xff]
  %v19 = vld [vmem:[%s0 + $0x8] sm:$0xff]
  %v20 = vld [vmem:[%s0 + $0x10] sm:$0xff]
  %v21 = vld [vmem:[%s0 + $0x18] sm:$0xff]
  %v22 = vld [vmem:[%s0 + $0x20] sm:$0xff]
  %v23 = vld [vmem:[%s0 + $0x28] sm:$0xff]
  %v24 = vld [vmem:[%s0 + $0x30] sm:$0xff]
  %v25 = vld [vmem:[%s0 + $0x38] sm:$0xff]
  %v26 = vld [vmem:[%s0 + $0x40] sm:$0xff]
  %v27 = vld [vmem:[%s0 + $0x48] sm:$0xff]
  %v28 = vld [vmem:[%s0 + $0x50] sm:$0xff]
  %v29 = vld [vmem:[%s0 + $0x58] sm:$0xff]
  %v30 = vld [vmem:[%s0 + $0x60] sm:$0xff]
  %v31 = vld [vmem:[%s0 + $0x68] sm:$0xff]
  %v32 = vld [vmem:[%s0 + $0x70] sm:$0xff]
  %v33 = vld [vmem:[%s0 + $0x78] sm:$0xff]
  %v34 = vpack.c.bf16 %v26, %v18
  %v35 = vpack.c.bf16 %v27, %v19
  %v36 = vpack.c.bf16 %v28, %v20
  %v37 = vpack.c.bf16 %v29, %v21
  %v38 = vpack.c.bf16 %v30, %v22
  %v39 = vpack.c.bf16 %v31, %v23
  %v40 = vpack.c.bf16 %v32, %v24
  %v41 = vpack.c.bf16 %v33, %v25
  %v42 = vld [vmem:[%s2] sm:$0xf]
  %v43 = vld [vmem:[%s2 + $0x4] sm:$0xf]
  %v44 = vld [vmem:[%s3] sm:$0xff]
  %v45 = vld [vmem:[%s3 + $0x8] sm:$0xff]
  %47 = vset.pattern.permute.xlu0 0
  %48 = vperm.xlu0 %47, %v44
  %v49 = vpop.permute.xlu0 %48
  %52 = vset.pattern.permute.xlu0 0
  %53 = vperm.xlu0 %52, %v45
  %v54 = vpop.permute.xlu0 %53
  %v58 = vunpack.c.l.b16 %v42
  %v59 = vunpack.c.l.b16 %v43
  %v60 = vpack.c.b16 %v59, %v58
  %vm61 = vcmask 130048
  %v63 = vsel %vm61, %v60, 0
  %65 = vmatprep.subr.bf16.mxu0 %v35
  %66 = vmatpush1.bf16.msra.mxu0 %v34
  %67 = vmatprep.subr.bf16.mxu0 0
  %68 = vmatpush1.bf16.msra.mxu0 0
  %69 = vmatprep.subr.bf16.mxu0 0
  %70 = vmatpush1.bf16.msra.mxu0 0
  %71 = vmatprep.subr.bf16.mxu0 0
  %72 = vmatpush1.bf16.msra.mxu0 0
  %73 = vmatprep.subr.bf16.mxu0 0
  %74 = vmatpush1.bf16.msra.mxu0 0
  %75 = vmatprep.subr.bf16.mxu0 0
  %76 = vmatpush1.bf16.msra.mxu0 0
  %77 = vmatprep.subr.bf16.mxu0 0
  %78 = vmatpush1.bf16.msra.mxu0 0
  %79 = vmatprep.subr.bf16.mxu0 0
  %80 = vmatpush1.bf16.msra.mxu0 0
  %81 = vmatprep.subr.bf16.mxu0 0
  %82 = vmatpush1.bf16.msra.mxu0 0
  %83 = vmatprep.subr.bf16.mxu0 0
  %84 = vmatpush1.bf16.msra.mxu0 0
  %85 = vmatprep.subr.bf16.mxu0 0
  %86 = vmatpush1.bf16.msra.mxu0 0
  %87 = vmatprep.subr.bf16.mxu0 0
  %88 = vmatpush1.bf16.msra.mxu0 0
  %89 = vmatprep.subr.bf16.mxu0 0
  %90 = vmatpush1.bf16.msra.mxu0 0
  %91 = vmatprep.subr.bf16.mxu0 0
  %92 = vmatpush1.bf16.msra.mxu0 0
  %93 = vmatprep.subr.bf16.mxu0 0
  %94 = vmatpush1.bf16.msra.mxu0 0
  %95 = vmatprep.subr.bf16.mxu0 0
  %96 = vmatpush1.bf16.msra.mxu0 0
  %97 = vmatprep.mubr.bf16.mxu0 0
  %98 = vmatmul.mubr.bf16.gmra.mrb[0].mxu0 %v63
  %v99 = vpop.f32.mrb[0].mxu0
  %v100 = vadd.f32 %v49, %v99
  %v101 = vpop.f32.mrb[0].mxu0
  %v102 = vadd.f32 %v49, %v101
  %v103 = vpop.f32.mrb[0].mxu0
  %v104 = vadd.f32 %v54, %v103
  %v105 = vpop.f32.mrb[0].mxu0
  %v106 = vadd.f32 %v54, %v105
  %107 = vdwg.mxu0
  %108 = vmatprep.subr.bf16.mxu0 %v37
  %109 = vmatpush1.bf16.msra.mxu0 %v36
  %110 = vmatprep.subr.bf16.mxu0 0
  %111 = vmatpush1.bf16.msra.mxu0 0
  %112 = vmatprep.subr.bf16.mxu0 0
  %113 = vmatpush1.bf16.msra.mxu0 0
  %114 = vmatprep.subr.bf16.mxu0 0
  %115 = vmatpush1.bf16.msra.mxu0 0
  %116 = vmatprep.subr.bf16.mxu0 0
  %117 = vmatpush1.bf16.msra.mxu0 0
  %118 = vmatprep.subr.bf16.mxu0 0
  %119 = vmatpush1.bf16.msra.mxu0 0
  %120 = vmatprep.subr.bf16.mxu0 0
  %121 = vmatpush1.bf16.msra.mxu0 0
  %122 = vmatprep.subr.bf16.mxu0 0
  %123 = vmatpush1.bf16.msra.mxu0 0
  %124 = vmatprep.subr.bf16.mxu0 0
  %125 = vmatpush1.bf16.msra.mxu0 0
  %126 = vmatprep.subr.bf16.mxu0 0
  %127 = vmatpush1.bf16.msra.mxu0 0
  %128 = vmatprep.subr.bf16.mxu0 0
  %129 = vmatpush1.bf16.msra.mxu0 0
  %130 = vmatprep.subr.bf16.mxu0 0
  %131 = vmatpush1.bf16.msra.mxu0 0
  %132 = vmatprep.subr.bf16.mxu0 0
  %133 = vmatpush1.bf16.msra.mxu0 0
  %134 = vmatprep.subr.bf16.mxu0 0
  %135 = vmatpush1.bf16.msra.mxu0 0
  %136 = vmatprep.subr.bf16.mxu0 0
  %137 = vmatpush1.bf16.msra.mxu0 0
  %138 = vmatprep.subr.bf16.mxu0 0
  %139 = vmatpush1.bf16.msra.mxu0 0
  %140 = vmatprep.mubr.bf16.mxu0 0
  %141 = vmatmul.mubr.bf16.gmra.mrb[0].mxu0 %v63
  %v142 = vpop.f32.mrb[0].mxu0
  %v143 = vadd.f32 %v49, %v142
  %v144 = vpop.f32.mrb[0].mxu0
  %v145 = vadd.f32 %v49, %v144
  %v146 = vpop.f32.mrb[0].mxu0
  %v147 = vadd.f32 %v54, %v146
  %v148 = vpop.f32.mrb[0].mxu0
  %v149 = vadd.f32 %v54, %v148
  %150 = vdwg.mxu0
  %151 = vmatprep.subr.bf16.mxu0 %v39
  %152 = vmatpush1.bf16.msra.mxu0 %v38
  %153 = vmatprep.subr.bf16.mxu0 0
  %154 = vmatpush1.bf16.msra.mxu0 0
  %155 = vmatprep.subr.bf16.mxu0 0
  %156 = vmatpush1.bf16.msra.mxu0 0
  %157 = vmatprep.subr.bf16.mxu0 0
  %158 = vmatpush1.bf16.msra.mxu0 0
  %159 = vmatprep.subr.bf16.mxu0 0
  %160 = vmatpush1.bf16.msra.mxu0 0
  %161 = vmatprep.subr.bf16.mxu0 0
  %162 = vmatpush1.bf16.msra.mxu0 0
  %163 = vmatprep.subr.bf16.mxu0 0
  %164 = vmatpush1.bf16.msra.mxu0 0
  %165 = vmatprep.subr.bf16.mxu0 0
  %166 = vmatpush1.bf16.msra.mxu0 0
  %167 = vmatprep.subr.bf16.mxu0 0
  %168 = vmatpush1.bf16.msra.mxu0 0
  %169 = vmatprep.subr.bf16.mxu0 0
  %170 = vmatpush1.bf16.msra.mxu0 0
  %171 = vmatprep.subr.bf16.mxu0 0
  %172 = vmatpush1.bf16.msra.mxu0 0
  %173 = vmatprep.subr.bf16.mxu0 0
  %174 = vmatpush1.bf16.msra.mxu0 0
  %175 = vmatprep.subr.bf16.mxu0 0
  %176 = vmatpush1.bf16.msra.mxu0 0
  %177 = vmatprep.subr.bf16.mxu0 0
  %178 = vmatpush1.bf16.msra.mxu0 0
  %179 = vmatprep.subr.bf16.mxu0 0
  %180 = vmatpush1.bf16.msra.mxu0 0
  %181 = vmatprep.subr.bf16.mxu0 0
  %182 = vmatpush1.bf16.msra.mxu0 0
  %183 = vmatprep.mubr.bf16.mxu0 0
  %184 = vmatmul.mubr.bf16.gmra.mrb[0].mxu0 %v63
  %v185 = vpop.f32.mrb[0].mxu0
  %v186 = vadd.f32 %v49, %v185
  %v187 = vpop.f32.mrb[0].mxu0
  %v188 = vadd.f32 %v49, %v187
  %v189 = vpop.f32.mrb[0].mxu0
  %v190 = vadd.f32 %v54, %v189
  %v191 = vpop.f32.mrb[0].mxu0
  %v192 = vadd.f32 %v54, %v191
  %193 = vdwg.mxu0
  %194 = vmatprep.subr.bf16.mxu0 %v41
  %195 = vmatpush1.bf16.msra.mxu0 %v40
  %196 = vmatprep.subr.bf16.mxu0 0
  %197 = vmatpush1.bf16.msra.mxu0 0
  %198 = vmatprep.subr.bf16.mxu0 0
  %199 = vmatpush1.bf16.msra.mxu0 0
  %200 = vmatprep.subr.bf16.mxu0 0
  %201 = vmatpush1.bf16.msra.mxu0 0
  %202 = vmatprep.subr.bf16.mxu0 0
  %203 = vmatpush1.bf16.msra.mxu0 0
  %204 = vmatprep.subr.bf16.mxu0 0
  %205 = vmatpush1.bf16.msra.mxu0 0
  %206 = vmatprep.subr.bf16.mxu0 0
  %207 = vmatpush1.bf16.msra.mxu0 0
  %208 = vmatprep.subr.bf16.mxu0 0
  %209 = vmatpush1.bf16.msra.mxu0 0
  %210 = vmatprep.subr.bf16.mxu0 0
  %211 = vmatpush1.bf16.msra.mxu0 0
  %212 = vmatprep.subr.bf16.mxu0 0
  %213 = vmatpush1.bf16.msra.mxu0 0
  %214 = vmatprep.subr.bf16.mxu0 0
  %215 = vmatpush1.bf16.msra.mxu0 0
  %216 = vmatprep.subr.bf16.mxu0 0
  %217 = vmatpush1.bf16.msra.mxu0 0
  %218 = vmatprep.subr.bf16.mxu0 0
  %219 = vmatpush1.bf16.msra.mxu0 0
  %220 = vmatprep.subr.bf16.mxu0 0
  %221 = vmatpush1.bf16.msra.mxu0 0
  %222 = vmatprep.subr.bf16.mxu0 0
  %223 = vmatpush1.bf16.msra.mxu0 0
  %224 = vmatprep.subr.bf16.mxu0 0
  %225 = vmatpush1.bf16.msra.mxu0 0
  %226 = vmatprep.mubr.bf16.mxu0 0
  %227 = vmatmul.mubr.bf16.gmra.mrb[0].mxu0 %v63
  %v228 = vpop.f32.mrb[0].mxu0
  %v229 = vadd.f32 %v49, %v228
  %v230 = vpop.f32.mrb[0].mxu0
  %v231 = vadd.f32 %v49, %v230
  %v232 = vpop.f32.mrb[0].mxu0
  %v233 = vadd.f32 %v54, %v232
  %v234 = vpop.f32.mrb[0].mxu0
  %v235 = vadd.f32 %v54, %v234
  %236 = vdwg.mxu0
  %v237 = vld [vmem:[%s1] sm:$0xff]
  %v238 = vld [vmem:[%s1 + $0x8] sm:$0xff]
  %v239 = vld [vmem:[%s1 + $0x10] sm:$0xff]
  %v240 = vld [vmem:[%s1 + $0x18] sm:$0xff]
  %v241 = vld [vmem:[%s1 + $0x20] sm:$0xff]
  %v242 = vld [vmem:[%s1 + $0x28] sm:$0xff]
  %v243 = vld [vmem:[%s1 + $0x30] sm:$0xff]
  %v244 = vld [vmem:[%s1 + $0x38] sm:$0xff]
  %v245 = vld [vmem:[%s1 + $0x40] sm:$0xff]
  %v246 = vld [vmem:[%s1 + $0x48] sm:$0xff]
  %v247 = vld [vmem:[%s1 + $0x50] sm:$0xff]
  %v248 = vld [vmem:[%s1 + $0x58] sm:$0xff]
  %v249 = vld [vmem:[%s1 + $0x60] sm:$0xff]
  %v250 = vld [vmem:[%s1 + $0x68] sm:$0xff]
  %v251 = vld [vmem:[%s1 + $0x70] sm:$0xff]
  %v252 = vld [vmem:[%s1 + $0x78] sm:$0xff]
  %v253 = vadd.f32 %v100, %v237
  %v254 = vadd.f32 %v102, %v238
  %v255 = vadd.f32 %v143, %v239
  %v256 = vadd.f32 %v145, %v240
  %v257 = vadd.f32 %v186, %v241
  %v258 = vadd.f32 %v188, %v242
  %v259 = vadd.f32 %v229, %v243
  %v260 = vadd.f32 %v231, %v244
  %v261 = vadd.f32 %v104, %v245
  %v262 = vadd.f32 %v106, %v246
  %v263 = vadd.f32 %v147, %v247
  %v264 = vadd.f32 %v149, %v248
  %v265 = vadd.f32 %v190, %v249
  %v266 = vadd.f32 %v192, %v250
  %v267 = vadd.f32 %v233, %v251
  %v268 = vadd.f32 %v235, %v252
  %269 = vst [vmem:[%s4] sm:$0xff] %v253
  %270 = vst [vmem:[%s4 + $0x8] sm:$0xff] %v254
  %271 = vst [vmem:[%s4 + $0x10] sm:$0xff] %v255
  %272 = vst [vmem:[%s4 + $0x18] sm:$0xff] %v256
  %273 = vst [vmem:[%s4 + $0x20] sm:$0xff] %v257
  %274 = vst [vmem:[%s4 + $0x28] sm:$0xff] %v258
  %275 = vst [vmem:[%s4 + $0x30] sm:$0xff] %v259
  %276 = vst [vmem:[%s4 + $0x38] sm:$0xff] %v260
  %277 = vst [vmem:[%s4 + $0x40] sm:$0xff] %v261
  %278 = vst [vmem:[%s4 + $0x48] sm:$0xff] %v262
  %279 = vst [vmem:[%s4 + $0x50] sm:$0xff] %v263
  %280 = vst [vmem:[%s4 + $0x58] sm:$0xff] %v264
  %281 = vst [vmem:[%s4 + $0x60] sm:$0xff] %v265
  %282 = vst [vmem:[%s4 + $0x68] sm:$0xff] %v266
  %283 = vst [vmem:[%s4 + $0x70] sm:$0xff] %v267
  %284 = vst [vmem:[%s4 + $0x78] sm:$0xff] %v268
  // Predicated region
  $region18: #{fno3d_forward.18} parent=0 // pred_check
    _
  $region19: #{fno3d_forward.18} parent=0 // pred_check_branch
    %286 = sbr.rel (0) target = $region21
  $region20: #{fno3d_forward.18} parent=0 // pred_region
    _
  $region21: #{fno3d_forward.18} parent=0 // pred_fallthru
    _
  // Predicated region
  $region22: #{fno3d_forward.18} parent=0 // pred_check
    _
  $region23: #{fno3d_forward.18} parent=0 // pred_check_branch
    %288 = sbr.rel (0) target = $region25
  $region24: #{fno3d_forward.18} parent=0 // pred_region
    _
  $region25: #{fno3d_forward.18} parent=0 // pred_fallthru
    _

// kernel: fno3d_forward.19
$region0: #{fno3d_forward.19}
  #allocation0 [shape = 'u32[]', space=smem, size = 0x4, offset = 0x4, fixed_abs, tag = 'smem constant byte address 0x4 - core index']
  #allocation1 [shape = 'u32[144,128]{1,0:T(1,128)}', space=vmem, size = 0x12000, scoped, tag = 'internal scratch']
  %s0 = inlined_call_operand.vmem [shape: f32[16,1024], index: 0, kind: input, shape index: {}]
  %s1 = inlined_call_operand.vmem [shape: bf16[32,16], index: 1, kind: input, shape index: {}]
  %s2 = inlined_call_operand.vmem [shape: f32[32,1], index: 2, kind: input, shape index: {}]
  %s3 = inlined_call_operand.vmem [shape: bf16[5,32], index: 3, kind: input, shape index: {}]
  %s4 = inlined_call_operand.vmem [shape: f32[5,1], index: 4, kind: input, shape index: {}]
  %s5 = inlined_call_operand.vmem [shape: f32[5,1024], index: 5, kind: output, shape index: {}]
  %s6 = sld [smem:[#allocation0]]
  $region30: #{fno3d_forward.19} parent=0
    _
  %s8 = ssub.s32 1, %s6
  %s9 = scalar_select 0, %s8, %s6
  // Predicated region
  $region2: #{fno3d_forward.19} parent=0 // pred_check
    _
  $region3: #{fno3d_forward.19} parent=0 // pred_check_branch
    %11 = sbr.rel (0) target = $region5
  $region4: #{fno3d_forward.19} parent=0 // pred_region
    _
  $region5: #{fno3d_forward.19} parent=0 // pred_fallthru
    _
  // Predicated region
  $region6: #{fno3d_forward.19} parent=0 // pred_check
    _
  $region7: #{fno3d_forward.19} parent=0 // pred_check_branch
    %13 = sbr.rel (0) target = $region9
  $region8: #{fno3d_forward.19} parent=0 // pred_region
    _
  $region9: #{fno3d_forward.19} parent=0 // pred_fallthru
    _
  // Predicated region
  $region10: #{fno3d_forward.19} parent=0 // pred_check
    _
  $region11: #{fno3d_forward.19} parent=0 // pred_check_branch
    %15 = sbr.rel (0) target = $region13
  $region12: #{fno3d_forward.19} parent=0 // pred_region
    _
  $region13: #{fno3d_forward.19} parent=0 // pred_fallthru
    _
  // Predicated region
  $region14: #{fno3d_forward.19} parent=0 // pred_check
    _
  $region15: #{fno3d_forward.19} parent=0 // pred_check_branch
    %17 = sbr.rel (0) target = $region17
  $region16: #{fno3d_forward.19} parent=0 // pred_region
    _
  $region17: #{fno3d_forward.19} parent=0 // pred_fallthru
    _
  // Predicated region
  $region18: #{fno3d_forward.19} parent=0 // pred_check
    _
  $region19: #{fno3d_forward.19} parent=0 // pred_check_branch
    %19 = sbr.rel (0) target = $region21
  $region20: #{fno3d_forward.19} parent=0 // pred_region
    _
  $region21: #{fno3d_forward.19} parent=0 // pred_fallthru
    _
  %v21 = vld [vmem:[%s0] sm:$0xff]
  %v22 = vld [vmem:[%s0 + $0x8] sm:$0xff]
  %v23 = vld [vmem:[%s0 + $0x10] sm:$0xff]
  %v24 = vld [vmem:[%s0 + $0x18] sm:$0xff]
  %v25 = vld [vmem:[%s0 + $0x20] sm:$0xff]
  %v26 = vld [vmem:[%s0 + $0x28] sm:$0xff]
  %v27 = vld [vmem:[%s0 + $0x30] sm:$0xff]
  %v28 = vld [vmem:[%s0 + $0x38] sm:$0xff]
  %v29 = vld [vmem:[%s0 + $0x40] sm:$0xff]
  %v30 = vld [vmem:[%s0 + $0x48] sm:$0xff]
  %v31 = vld [vmem:[%s0 + $0x50] sm:$0xff]
  %v32 = vld [vmem:[%s0 + $0x58] sm:$0xff]
  %v33 = vld [vmem:[%s0 + $0x60] sm:$0xff]
  %v34 = vld [vmem:[%s0 + $0x68] sm:$0xff]
  %v35 = vld [vmem:[%s0 + $0x70] sm:$0xff]
  %v36 = vld [vmem:[%s0 + $0x78] sm:$0xff]
  %v37 = vpack.c.bf16 %v29, %v21
  %v38 = vpack.c.bf16 %v30, %v22
  %v39 = vpack.c.bf16 %v31, %v23
  %v40 = vpack.c.bf16 %v32, %v24
  %v41 = vpack.c.bf16 %v33, %v25
  %v42 = vpack.c.bf16 %v34, %v26
  %v43 = vpack.c.bf16 %v35, %v27
  %v44 = vpack.c.bf16 %v36, %v28
  %v45 = vld [vmem:[%s1] sm:$0xf]
  %v46 = vld [vmem:[%s1 + $0x4] sm:$0xf]
  %v47 = vld [vmem:[%s1 + $0x8] sm:$0xf]
  %v48 = vld [vmem:[%s1 + $0xc] sm:$0xf]
  %v49 = vld [vmem:[%s2] sm:$0xff]
  %v50 = vld [vmem:[%s2 + $0x8] sm:$0xff]
  %v51 = vld [vmem:[%s2 + $0x10] sm:$0xff]
  %v52 = vld [vmem:[%s2 + $0x18] sm:$0xff]
  %54 = vset.pattern.permute.xlu0 0
  %55 = vperm.xlu0 %54, %v49
  %v56 = vpop.permute.xlu0 %55
  %59 = vset.pattern.permute.xlu0 0
  %60 = vperm.xlu0 %59, %v50
  %v61 = vpop.permute.xlu0 %60
  %64 = vset.pattern.permute.xlu0 0
  %65 = vperm.xlu0 %64, %v51
  %v66 = vpop.permute.xlu0 %65
  %69 = vset.pattern.permute.xlu0 0
  %70 = vperm.xlu0 %69, %v52
  %v71 = vpop.permute.xlu0 %70
  %v77 = vunpack.c.l.b16 %v45
  %v78 = vunpack.c.l.b16 %v46
  %v79 = vunpack.c.l.b16 %v47
  %v80 = vunpack.c.l.b16 %v48
  %v81 = vpack.c.b16 %v78, %v77
  %v82 = vpack.c.b16 %v80, %v79
  %vm83 = vcmask 130048
  %v85 = vsel %vm83, %v81, 0
  %v88 = vsel %vm83, %v82, 0
  %90 = vmatprep.subr.bf16.mxu0 %v38
  %91 = vmatpush1.bf16.msra.mxu0 %v37
  %92 = vmatprep.subr.bf16.mxu0 0
  %93 = vmatpush1.bf16.msra.mxu0 0
  %94 = vmatprep.subr.bf16.mxu0 0
  %95 = vmatpush1.bf16.msra.mxu0 0
  %96 = vmatprep.subr.bf16.mxu0 0
  %97 = vmatpush1.bf16.msra.mxu0 0
  %98 = vmatprep.subr.bf16.mxu0 0
  %99 = vmatpush1.bf16.msra.mxu0 0
  %100 = vmatprep.subr.bf16.mxu0 0
  %101 = vmatpush1.bf16.msra.mxu0 0
  %102 = vmatprep.subr.bf16.mxu0 0
  %103 = vmatpush1.bf16.msra.mxu0 0
  %104 = vmatprep.subr.bf16.mxu0 0
  %105 = vmatpush1.bf16.msra.mxu0 0
  %106 = vmatprep.subr.bf16.mxu0 0
  %107 = vmatpush1.bf16.msra.mxu0 0
  %108 = vmatprep.subr.bf16.mxu0 0
  %109 = vmatpush1.bf16.msra.mxu0 0
  %110 = vmatprep.subr.bf16.mxu0 0
  %111 = vmatpush1.bf16.msra.mxu0 0
  %112 = vmatprep.subr.bf16.mxu0 0
  %113 = vmatpush1.bf16.msra.mxu0 0
  %114 = vmatprep.subr.bf16.mxu0 0
  %115 = vmatpush1.bf16.msra.mxu0 0
  %116 = vmatprep.subr.bf16.mxu0 0
  %117 = vmatpush1.bf16.msra.mxu0 0
  %118 = vmatprep.subr.bf16.mxu0 0
  %119 = vmatpush1.bf16.msra.mxu0 0
  %120 = vmatprep.subr.bf16.mxu0 0
  %121 = vmatpush1.bf16.msra.mxu0 0
  %122 = vmatprep.mubr.bf16.mxu0 0
  %123 = vmatmul.mubr.bf16.gmra.mrb[0].mxu0 %v85
  %v124 = vpop.f32.mrb[0].mxu0
  %v125 = vadd.f32 %v56, %v124
  %v126 = vpop.f32.mrb[0].mxu0
  %v127 = vadd.f32 %v56, %v126
  %v128 = vpop.f32.mrb[0].mxu0
  %v129 = vadd.f32 %v61, %v128
  %v130 = vpop.f32.mrb[0].mxu0
  %v131 = vadd.f32 %v61, %v130
  %132 = vmatprep.mubr.bf16.mxu0 0
  %133 = vmatmul.mubr.bf16.gmra.mrb[0].mxu0 %v88
  %v134 = vpop.f32.mrb[0].mxu0
  %v135 = vadd.f32 %v66, %v134
  %v136 = vpop.f32.mrb[0].mxu0
  %v137 = vadd.f32 %v66, %v136
  %v138 = vpop.f32.mrb[0].mxu0
  %v139 = vadd.f32 %v71, %v138
  %v140 = vpop.f32.mrb[0].mxu0
  %v141 = vadd.f32 %v71, %v140
  %142 = vdwg.mxu0
  %143 = vmatprep.subr.bf16.mxu0 %v40
  %144 = vmatpush1.bf16.msra.mxu0 %v39
  %145 = vmatprep.subr.bf16.mxu0 0
  %146 = vmatpush1.bf16.msra.mxu0 0
  %147 = vmatprep.subr.bf16.mxu0 0
  %148 = vmatpush1.bf16.msra.mxu0 0
  %149 = vmatprep.subr.bf16.mxu0 0
  %150 = vmatpush1.bf16.msra.mxu0 0
  %151 = vmatprep.subr.bf16.mxu0 0
  %152 = vmatpush1.bf16.msra.mxu0 0
  %153 = vmatprep.subr.bf16.mxu0 0
  %154 = vmatpush1.bf16.msra.mxu0 0
  %155 = vmatprep.subr.bf16.mxu0 0
  %156 = vmatpush1.bf16.msra.mxu0 0
  %157 = vmatprep.subr.bf16.mxu0 0
  %158 = vmatpush1.bf16.msra.mxu0 0
  %159 = vmatprep.subr.bf16.mxu0 0
  %160 = vmatpush1.bf16.msra.mxu0 0
  %161 = vmatprep.subr.bf16.mxu0 0
  %162 = vmatpush1.bf16.msra.mxu0 0
  %163 = vmatprep.subr.bf16.mxu0 0
  %164 = vmatpush1.bf16.msra.mxu0 0
  %165 = vmatprep.subr.bf16.mxu0 0
  %166 = vmatpush1.bf16.msra.mxu0 0
  %167 = vmatprep.subr.bf16.mxu0 0
  %168 = vmatpush1.bf16.msra.mxu0 0
  %169 = vmatprep.subr.bf16.mxu0 0
  %170 = vmatpush1.bf16.msra.mxu0 0
  %171 = vmatprep.subr.bf16.mxu0 0
  %172 = vmatpush1.bf16.msra.mxu0 0
  %173 = vmatprep.subr.bf16.mxu0 0
  %174 = vmatpush1.bf16.msra.mxu0 0
  %175 = vmatprep.mubr.bf16.mxu0 0
  %176 = vmatmul.mubr.bf16.gmra.mrb[0].mxu0 %v85
  %v177 = vpop.f32.mrb[0].mxu0
  %v178 = vadd.f32 %v56, %v177
  %v179 = vpop.f32.mrb[0].mxu0
  %v180 = vadd.f32 %v56, %v179
  %v181 = vpop.f32.mrb[0].mxu0
  %v182 = vadd.f32 %v61, %v181
  %v183 = vpop.f32.mrb[0].mxu0
  %v184 = vadd.f32 %v61, %v183
  %185 = vmatprep.mubr.bf16.mxu0 0
  %186 = vmatmul.mubr.bf16.gmra.mrb[0].mxu0 %v88
  %v187 = vpop.f32.mrb[0].mxu0
  %v188 = vadd.f32 %v66, %v187
  %v189 = vpop.f32.mrb[0].mxu0
  %v190 = vadd.f32 %v66, %v189
  %v191 = vpop.f32.mrb[0].mxu0
  %v192 = vadd.f32 %v71, %v191
  %v193 = vpop.f32.mrb[0].mxu0
  %v194 = vadd.f32 %v71, %v193
  %195 = vdwg.mxu0
  %196 = vmatprep.subr.bf16.mxu0 %v42
  %197 = vmatpush1.bf16.msra.mxu0 %v41
  %198 = vmatprep.subr.bf16.mxu0 0
  %199 = vmatpush1.bf16.msra.mxu0 0
  %200 = vmatprep.subr.bf16.mxu0 0
  %201 = vmatpush1.bf16.msra.mxu0 0
  %202 = vmatprep.subr.bf16.mxu0 0
  %203 = vmatpush1.bf16.msra.mxu0 0
  %204 = vmatprep.subr.bf16.mxu0 0
  %205 = vmatpush1.bf16.msra.mxu0 0
  %206 = vmatprep.subr.bf16.mxu0 0
  %207 = vmatpush1.bf16.msra.mxu0 0
  %208 = vmatprep.subr.bf16.mxu0 0
  %209 = vmatpush1.bf16.msra.mxu0 0
  %210 = vmatprep.subr.bf16.mxu0 0
  %211 = vmatpush1.bf16.msra.mxu0 0
  %212 = vmatprep.subr.bf16.mxu0 0
  %213 = vmatpush1.bf16.msra.mxu0 0
  %214 = vmatprep.subr.bf16.mxu0 0
  %215 = vmatpush1.bf16.msra.mxu0 0
  %216 = vmatprep.subr.bf16.mxu0 0
  %217 = vmatpush1.bf16.msra.mxu0 0
  %218 = vmatprep.subr.bf16.mxu0 0
  %219 = vmatpush1.bf16.msra.mxu0 0
  %220 = vmatprep.subr.bf16.mxu0 0
  %221 = vmatpush1.bf16.msra.mxu0 0
  %222 = vmatprep.subr.bf16.mxu0 0
  %223 = vmatpush1.bf16.msra.mxu0 0
  %224 = vmatprep.subr.bf16.mxu0 0
  %225 = vmatpush1.bf16.msra.mxu0 0
  %226 = vmatprep.subr.bf16.mxu0 0
  %227 = vmatpush1.bf16.msra.mxu0 0
  %228 = vmatprep.mubr.bf16.mxu0 0
  %229 = vmatmul.mubr.bf16.gmra.mrb[0].mxu0 %v85
  %v230 = vpop.f32.mrb[0].mxu0
  %v231 = vadd.f32 %v56, %v230
  %v232 = vpop.f32.mrb[0].mxu0
  %v233 = vadd.f32 %v56, %v232
  %v234 = vpop.f32.mrb[0].mxu0
  %v235 = vadd.f32 %v61, %v234
  %v236 = vpop.f32.mrb[0].mxu0
  %v237 = vadd.f32 %v61, %v236
  %238 = vmatprep.mubr.bf16.mxu0 0
  %239 = vmatmul.mubr.bf16.gmra.mrb[0].mxu0 %v88
  %v240 = vpop.f32.mrb[0].mxu0
  %v241 = vadd.f32 %v66, %v240
  %v242 = vpop.f32.mrb[0].mxu0
  %v243 = vadd.f32 %v66, %v242
  %v244 = vpop.f32.mrb[0].mxu0
  %v245 = vadd.f32 %v71, %v244
  %v246 = vpop.f32.mrb[0].mxu0
  %v247 = vadd.f32 %v71, %v246
  %248 = vdwg.mxu0
  %249 = vmatprep.subr.bf16.mxu0 %v44
  %250 = vmatpush1.bf16.msra.mxu0 %v43
  %251 = vmatprep.subr.bf16.mxu0 0
  %252 = vmatpush1.bf16.msra.mxu0 0
  %253 = vmatprep.subr.bf16.mxu0 0
  %254 = vmatpush1.bf16.msra.mxu0 0
  %255 = vmatprep.subr.bf16.mxu0 0
  %256 = vmatpush1.bf16.msra.mxu0 0
  %257 = vmatprep.subr.bf16.mxu0 0
  %258 = vmatpush1.bf16.msra.mxu0 0
  %259 = vmatprep.subr.bf16.mxu0 0
  %260 = vmatpush1.bf16.msra.mxu0 0
  %261 = vmatprep.subr.bf16.mxu0 0
  %262 = vmatpush1.bf16.msra.mxu0 0
  %263 = vmatprep.subr.bf16.mxu0 0
  %264 = vmatpush1.bf16.msra.mxu0 0
  %265 = vmatprep.subr.bf16.mxu0 0
  %266 = vmatpush1.bf16.msra.mxu0 0
  %267 = vmatprep.subr.bf16.mxu0 0
  %268 = vmatpush1.bf16.msra.mxu0 0
  %269 = vmatprep.subr.bf16.mxu0 0
  %270 = vmatpush1.bf16.msra.mxu0 0
  %271 = vmatprep.subr.bf16.mxu0 0
  %272 = vmatpush1.bf16.msra.mxu0 0
  %273 = vmatprep.subr.bf16.mxu0 0
  %274 = vmatpush1.bf16.msra.mxu0 0
  %275 = vmatprep.subr.bf16.mxu0 0
  %276 = vmatpush1.bf16.msra.mxu0 0
  %277 = vmatprep.subr.bf16.mxu0 0
  %278 = vmatpush1.bf16.msra.mxu0 0
  %279 = vmatprep.subr.bf16.mxu0 0
  %280 = vmatpush1.bf16.msra.mxu0 0
  %281 = vmatprep.mubr.bf16.mxu0 0
  %282 = vmatmul.mubr.bf16.gmra.mrb[0].mxu0 %v85
  %v283 = vpop.f32.mrb[0].mxu0
  %v284 = vadd.f32 %v56, %v283
  %v285 = vpop.f32.mrb[0].mxu0
  %v286 = vadd.f32 %v56, %v285
  %v287 = vpop.f32.mrb[0].mxu0
  %v288 = vadd.f32 %v61, %v287
  %v289 = vpop.f32.mrb[0].mxu0
  %v290 = vadd.f32 %v61, %v289
  %291 = vmatprep.mubr.bf16.mxu0 0
  %292 = vmatmul.mubr.bf16.gmra.mrb[0].mxu0 %v88
  %v293 = vpop.f32.mrb[0].mxu0
  %v294 = vadd.f32 %v66, %v293
  %v295 = vpop.f32.mrb[0].mxu0
  %v296 = vadd.f32 %v66, %v295
  %v297 = vpop.f32.mrb[0].mxu0
  %v298 = vadd.f32 %v71, %v297
  %v299 = vpop.f32.mrb[0].mxu0
  %v300 = vadd.f32 %v71, %v299
  %301 = vdwg.mxu0
  %v302 = vmul.f32 %v125, %v125
  %v303 = vmul.f32 %v127, %v127
  %v304 = vmul.f32 %v178, %v178
  %v305 = vmul.f32 %v180, %v180
  %v306 = vmul.f32 %v231, %v231
  %v307 = vmul.f32 %v233, %v233
  %v308 = vmul.f32 %v284, %v284
  %v309 = vmul.f32 %v286, %v286
  %v310 = vmul.f32 %v129, %v129
  %v311 = vmul.f32 %v131, %v131
  %v312 = vmul.f32 %v182, %v182
  %v313 = vmul.f32 %v184, %v184
  %v314 = vmul.f32 %v235, %v235
  %v315 = vmul.f32 %v237, %v237
  %v316 = vmul.f32 %v288, %v288
  %v317 = vmul.f32 %v290, %v290
  %v318 = vmul.f32 %v135, %v135
  %v319 = vmul.f32 %v137, %v137
  %v320 = vmul.f32 %v188, %v188
  %v321 = vmul.f32 %v190, %v190
  %v322 = vmul.f32 %v241, %v241
  %v323 = vmul.f32 %v243, %v243
  %v324 = vmul.f32 %v294, %v294
  %v325 = vmul.f32 %v296, %v296
  %v326 = vmul.f32 %v139, %v139
  %v327 = vmul.f32 %v141, %v141
  %v328 = vmul.f32 %v192, %v192
  %v329 = vmul.f32 %v194, %v194
  %v330 = vmul.f32 %v245, %v245
  %v331 = vmul.f32 %v247, %v247
  %v332 = vmul.f32 %v298, %v298
  %v333 = vmul.f32 %v300, %v300
  %v334 = vmul.f32 %v125, %v302
  %v335 = vmul.f32 %v127, %v303
  %v336 = vmul.f32 %v178, %v304
  %v337 = vmul.f32 %v180, %v305
  %v338 = vmul.f32 %v231, %v306
  %v339 = vmul.f32 %v233, %v307
  %v340 = vmul.f32 %v284, %v308
  %v341 = vmul.f32 %v286, %v309
  %v342 = vmul.f32 %v129, %v310
  %v343 = vmul.f32 %v131, %v311
  %v344 = vmul.f32 %v182, %v312
  %v345 = vmul.f32 %v184, %v313
  %v346 = vmul.f32 %v235, %v314
  %v347 = vmul.f32 %v237, %v315
  %v348 = vmul.f32 %v288, %v316
  %v349 = vmul.f32 %v290, %v317
  %v350 = vmul.f32 %v135, %v318
  %v351 = vmul.f32 %v137, %v319
  %v352 = vmul.f32 %v188, %v320
  %v353 = vmul.f32 %v190, %v321
  %v354 = vmul.f32 %v241, %v322
  %v355 = vmul.f32 %v243, %v323
  %v356 = vmul.f32 %v294, %v324
  %v357 = vmul.f32 %v296, %v325
  %v358 = vmul.f32 %v139, %v326
  %v359 = vmul.f32 %v141, %v327
  %v360 = vmul.f32 %v192, %v328
  %v361 = vmul.f32 %v194, %v329
  %v362 = vmul.f32 %v245, %v330
  %v363 = vmul.f32 %v247, %v331
  %v364 = vmul.f32 %v298, %v332
  %v365 = vmul.f32 %v300, %v333
  %v366 = vmul.f32 %v334, 0.044715
  %v367 = vmul.f32 %v335, 0.044715
  %v368 = vmul.f32 %v336, 0.044715
  %v369 = vmul.f32 %v337, 0.044715
  %v370 = vmul.f32 %v338, 0.044715
  %v371 = vmul.f32 %v339, 0.044715
  %v372 = vmul.f32 %v340, 0.044715
  %v373 = vmul.f32 %v341, 0.044715
  %v374 = vmul.f32 %v342, 0.044715
  %v375 = vmul.f32 %v343, 0.044715
  %v376 = vmul.f32 %v344, 0.044715
  %v377 = vmul.f32 %v345, 0.044715
  %v378 = vmul.f32 %v346, 0.044715
  %v379 = vmul.f32 %v347, 0.044715
  %v380 = vmul.f32 %v348, 0.044715
  %v381 = vmul.f32 %v349, 0.044715
  %v382 = vmul.f32 %v350, 0.044715
  %v383 = vmul.f32 %v351, 0.044715
  %v384 = vmul.f32 %v352, 0.044715
  %v385 = vmul.f32 %v353, 0.044715
  %v386 = vmul.f32 %v354, 0.044715
  %v387 = vmul.f32 %v355, 0.044715
  %v388 = vmul.f32 %v356, 0.044715
  %v389 = vmul.f32 %v357, 0.044715
  %v390 = vmul.f32 %v358, 0.044715
  %v391 = vmul.f32 %v359, 0.044715
  %v392 = vmul.f32 %v360, 0.044715
  %v393 = vmul.f32 %v361, 0.044715
  %v394 = vmul.f32 %v362, 0.044715
  %v395 = vmul.f32 %v363, 0.044715
  %v396 = vmul.f32 %v364, 0.044715
  %v397 = vmul.f32 %v365, 0.044715
  %v398 = vadd.f32 %v125, %v366
  %v399 = vadd.f32 %v127, %v367
  %v400 = vadd.f32 %v178, %v368
  %v401 = vadd.f32 %v180, %v369
  %v402 = vadd.f32 %v231, %v370
  %v403 = vadd.f32 %v233, %v371
  %v404 = vadd.f32 %v284, %v372
  %v405 = vadd.f32 %v286, %v373
  %v406 = vadd.f32 %v129, %v374
  %v407 = vadd.f32 %v131, %v375
  %v408 = vadd.f32 %v182, %v376
  %v409 = vadd.f32 %v184, %v377
  %v410 = vadd.f32 %v235, %v378
  %v411 = vadd.f32 %v237, %v379
  %v412 = vadd.f32 %v288, %v380
  %v413 = vadd.f32 %v290, %v381
  %v414 = vadd.f32 %v135, %v382
  %v415 = vadd.f32 %v137, %v383
  %v416 = vadd.f32 %v188, %v384
  %v417 = vadd.f32 %v190, %v385
  %v418 = vadd.f32 %v241, %v386
  %v419 = vadd.f32 %v243, %v387
  %v420 = vadd.f32 %v294, %v388
  %v421 = vadd.f32 %v296, %v389
  %v422 = vadd.f32 %v139, %v390
  %v423 = vadd.f32 %v141, %v391
  %v424 = vadd.f32 %v192, %v392
  %v425 = vadd.f32 %v194, %v393
  %v426 = vadd.f32 %v245, %v394
  %v427 = vadd.f32 %v247, %v395
  %v428 = vadd.f32 %v298, %v396
  %v429 = vadd.f32 %v300, %v397
  %v430 = vmul.f32 %v398, 0.7978846
  %v431 = vmul.f32 %v399, 0.7978846
  %v432 = vmul.f32 %v400, 0.7978846
  %v433 = vmul.f32 %v401, 0.7978846
  %v434 = vmul.f32 %v402, 0.7978846
  %v435 = vmul.f32 %v403, 0.7978846
  %v436 = vmul.f32 %v404, 0.7978846
  %v437 = vmul.f32 %v405, 0.7978846
  %v438 = vmul.f32 %v406, 0.7978846
  %v439 = vmul.f32 %v407, 0.7978846
  %v440 = vmul.f32 %v408, 0.7978846
  %v441 = vmul.f32 %v409, 0.7978846
  %v442 = vmul.f32 %v410, 0.7978846
  %v443 = vmul.f32 %v411, 0.7978846
  %v444 = vmul.f32 %v412, 0.7978846
  %v445 = vmul.f32 %v413, 0.7978846
  %v446 = vmul.f32 %v414, 0.7978846
  %v447 = vmul.f32 %v415, 0.7978846
  %v448 = vmul.f32 %v416, 0.7978846
  %v449 = vmul.f32 %v417, 0.7978846
  %v450 = vmul.f32 %v418, 0.7978846
  %v451 = vmul.f32 %v419, 0.7978846
  %v452 = vmul.f32 %v420, 0.7978846
  %v453 = vmul.f32 %v421, 0.7978846
  %v454 = vmul.f32 %v422, 0.7978846
  %v455 = vmul.f32 %v423, 0.7978846
  %v456 = vmul.f32 %v424, 0.7978846
  %v457 = vmul.f32 %v425, 0.7978846
  %v458 = vmul.f32 %v426, 0.7978846
  %v459 = vmul.f32 %v427, 0.7978846
  %v460 = vmul.f32 %v428, 0.7978846
  %v461 = vmul.f32 %v429, 0.7978846
  %v462 = vtanh.pop %v430
  %v463 = vtanh.pop %v431
  %v464 = vtanh.pop %v432
  %v465 = vtanh.pop %v433
  %v466 = vtanh.pop %v434
  %v467 = vtanh.pop %v435
  %v468 = vtanh.pop %v436
  %v469 = vtanh.pop %v437
  %v470 = vtanh.pop %v438
  %v471 = vtanh.pop %v439
  %v472 = vtanh.pop %v440
  %v473 = vtanh.pop %v441
  %v474 = vtanh.pop %v442
  %v475 = vtanh.pop %v443
  %v476 = vtanh.pop %v444
  %v477 = vtanh.pop %v445
  %v478 = vtanh.pop %v446
  %v479 = vtanh.pop %v447
  %v480 = vtanh.pop %v448
  %v481 = vtanh.pop %v449
  %v482 = vtanh.pop %v450
  %v483 = vtanh.pop %v451
  %v484 = vtanh.pop %v452
  %v485 = vtanh.pop %v453
  %v486 = vtanh.pop %v454
  %v487 = vtanh.pop %v455
  %v488 = vtanh.pop %v456
  %v489 = vtanh.pop %v457
  %v490 = vtanh.pop %v458
  %v491 = vtanh.pop %v459
  %v492 = vtanh.pop %v460
  %v493 = vtanh.pop %v461
  %v494 = vadd.f32 %v462, 1.0
  %v495 = vadd.f32 %v463, 1.0
  %v496 = vadd.f32 %v464, 1.0
  %v497 = vadd.f32 %v465, 1.0
  %v498 = vadd.f32 %v466, 1.0
  %v499 = vadd.f32 %v467, 1.0
  %v500 = vadd.f32 %v468, 1.0
  %v501 = vadd.f32 %v469, 1.0
  %v502 = vadd.f32 %v470, 1.0
  %v503 = vadd.f32 %v471, 1.0
  %v504 = vadd.f32 %v472, 1.0
  %v505 = vadd.f32 %v473, 1.0
  %v506 = vadd.f32 %v474, 1.0
  %v507 = vadd.f32 %v475, 1.0
  %v508 = vadd.f32 %v476, 1.0
  %v509 = vadd.f32 %v477, 1.0
  %v510 = vadd.f32 %v478, 1.0
  %v511 = vadd.f32 %v479, 1.0
  %v512 = vadd.f32 %v480, 1.0
  %v513 = vadd.f32 %v481, 1.0
  %v514 = vadd.f32 %v482, 1.0
  %v515 = vadd.f32 %v483, 1.0
  %v516 = vadd.f32 %v484, 1.0
  %v517 = vadd.f32 %v485, 1.0
  %v518 = vadd.f32 %v486, 1.0
  %v519 = vadd.f32 %v487, 1.0
  %v520 = vadd.f32 %v488, 1.0
  %v521 = vadd.f32 %v489, 1.0
  %v522 = vadd.f32 %v490, 1.0
  %v523 = vadd.f32 %v491, 1.0
  %v524 = vadd.f32 %v492, 1.0
  %v525 = vadd.f32 %v493, 1.0
  %v526 = vmul.f32 %v494, 0.5
  %v527 = vmul.f32 %v495, 0.5
  %v528 = vmul.f32 %v496, 0.5
  %v529 = vmul.f32 %v497, 0.5
  %v530 = vmul.f32 %v498, 0.5
  %v531 = vmul.f32 %v499, 0.5
  %v532 = vmul.f32 %v500, 0.5
  %v533 = vmul.f32 %v501, 0.5
  %v534 = vmul.f32 %v502, 0.5
  %v535 = vmul.f32 %v503, 0.5
  %v536 = vmul.f32 %v504, 0.5
  %v537 = vmul.f32 %v505, 0.5
  %v538 = vmul.f32 %v506, 0.5
  %v539 = vmul.f32 %v507, 0.5
  %v540 = vmul.f32 %v508, 0.5
  %v541 = vmul.f32 %v509, 0.5
  %v542 = vmul.f32 %v510, 0.5
  %v543 = vmul.f32 %v511, 0.5
  %v544 = vmul.f32 %v512, 0.5
  %v545 = vmul.f32 %v513, 0.5
  %v546 = vmul.f32 %v514, 0.5
  %v547 = vmul.f32 %v515, 0.5
  %v548 = vmul.f32 %v516, 0.5
  %v549 = vmul.f32 %v517, 0.5
  %v550 = vmul.f32 %v518, 0.5
  %v551 = vmul.f32 %v519, 0.5
  %v552 = vmul.f32 %v520, 0.5
  %v553 = vmul.f32 %v521, 0.5
  %v554 = vmul.f32 %v522, 0.5
  %v555 = vmul.f32 %v523, 0.5
  %v556 = vmul.f32 %v524, 0.5
  %v557 = vmul.f32 %v525, 0.5
  %v558 = vmul.f32 %v125, %v526
  %v559 = vmul.f32 %v127, %v527
  %v560 = vmul.f32 %v178, %v528
  %v561 = vmul.f32 %v180, %v529
  %v562 = vmul.f32 %v231, %v530
  %v563 = vmul.f32 %v233, %v531
  %v564 = vmul.f32 %v284, %v532
  %v565 = vmul.f32 %v286, %v533
  %v566 = vmul.f32 %v129, %v534
  %v567 = vmul.f32 %v131, %v535
  %v568 = vmul.f32 %v182, %v536
  %v569 = vmul.f32 %v184, %v537
  %v570 = vmul.f32 %v235, %v538
  %v571 = vmul.f32 %v237, %v539
  %v572 = vmul.f32 %v288, %v540
  %v573 = vmul.f32 %v290, %v541
  %v574 = vmul.f32 %v135, %v542
  %v575 = vmul.f32 %v137, %v543
  %v576 = vmul.f32 %v188, %v544
  %v577 = vmul.f32 %v190, %v545
  %v578 = vmul.f32 %v241, %v546
  %v579 = vmul.f32 %v243, %v547
  %v580 = vmul.f32 %v294, %v548
  %v581 = vmul.f32 %v296, %v549
  %v582 = vmul.f32 %v139, %v550
  %v583 = vmul.f32 %v141, %v551
  %v584 = vmul.f32 %v192, %v552
  %v585 = vmul.f32 %v194, %v553
  %v586 = vmul.f32 %v245, %v554
  %v587 = vmul.f32 %v247, %v555
  %v588 = vmul.f32 %v298, %v556
  %v589 = vmul.f32 %v300, %v557
  %v590 = vld [vmem:[%s3] sm:$0x7]
  %v591 = vpack.c.bf16 %v566, %v558
  %v592 = vpack.c.bf16 %v567, %v559
  %v593 = vpack.c.bf16 %v568, %v560
  %v594 = vpack.c.bf16 %v569, %v561
  %v595 = vpack.c.bf16 %v570, %v562
  %v596 = vpack.c.bf16 %v571, %v563
  %v597 = vpack.c.bf16 %v572, %v564
  %v598 = vpack.c.bf16 %v573, %v565
  %v599 = vpack.c.bf16 %v582, %v574
  %v600 = vpack.c.bf16 %v583, %v575
  %v601 = vpack.c.bf16 %v584, %v576
  %v602 = vpack.c.bf16 %v585, %v577
  %v603 = vpack.c.bf16 %v586, %v578
  %v604 = vpack.c.bf16 %v587, %v579
  %v605 = vpack.c.bf16 %v588, %v580
  %v606 = vpack.c.bf16 %v589, %v581
  %v607 = vld [vmem:[%s4] sm:$0x1f]
  %609 = vset.pattern.permute.xlu0 0
  %610 = vperm.xlu0 %609, %v607
  %v611 = vpop.permute.xlu0 %610
  %vm613 = vcmask 261120
  %v615 = vsel %vm613, %v590, 0
  %617 = vmatprep.subr.bf16.mxu0 %v592
  %618 = vmatpush1.bf16.msra.mxu0 %v591
  %619 = vmatprep.subr.bf16.mxu0 %v600
  %620 = vmatpush1.bf16.msra.mxu0 %v599
  %621 = vmatprep.subr.bf16.mxu0 0
  %622 = vmatpush1.bf16.msra.mxu0 0
  %623 = vmatprep.subr.bf16.mxu0 0
  %624 = vmatpush1.bf16.msra.mxu0 0
  %625 = vmatprep.subr.bf16.mxu0 0
  %626 = vmatpush1.bf16.msra.mxu0 0
  %627 = vmatprep.subr.bf16.mxu0 0
  %628 = vmatpush1.bf16.msra.mxu0 0
  %629 = vmatprep.subr.bf16.mxu0 0
  %630 = vmatpush1.bf16.msra.mxu0 0
  %631 = vmatprep.subr.bf16.mxu0 0
  %632 = vmatpush1.bf16.msra.mxu0 0
  %633 = vmatprep.subr.bf16.mxu0 0
  %634 = vmatpush1.bf16.msra.mxu0 0
  %635 = vmatprep.subr.bf16.mxu0 0
  %636 = vmatpush1.bf16.msra.mxu0 0
  %637 = vmatprep.subr.bf16.mxu0 0
  %638 = vmatpush1.bf16.msra.mxu0 0
  %639 = vmatprep.subr.bf16.mxu0 0
  %640 = vmatpush1.bf16.msra.mxu0 0
  %641 = vmatprep.subr.bf16.mxu0 0
  %642 = vmatpush1.bf16.msra.mxu0 0
  %643 = vmatprep.subr.bf16.mxu0 0
  %644 = vmatpush1.bf16.msra.mxu0 0
  %645 = vmatprep.subr.bf16.mxu0 0
  %646 = vmatpush1.bf16.msra.mxu0 0
  %647 = vmatprep.subr.bf16.mxu0 0
  %648 = vmatpush1.bf16.msra.mxu0 0
  %649 = vmatprep.mubr.bf16.mxu0 0
  %650 = vmatmul.mubr.bf16.gmra.mrb[0].mxu0 %v615
  %v651 = vpop.f32.mrb[0].mxu0
  %v652 = vadd.f32 %v611, %v651
  %v653 = vpop.f32.mrb[0].mxu0
  %v654 = vadd.f32 %v611, %v653
  %v655 = vpop.f32.mrb[0].mxu0
  %v656 = vpop.f32.mrb[0].mxu0
  %657 = vdwg.mxu0
  %658 = vmatprep.subr.bf16.mxu0 %v594
  %659 = vmatpush1.bf16.msra.mxu0 %v593
  %660 = vmatprep.subr.bf16.mxu0 %v602
  %661 = vmatpush1.bf16.msra.mxu0 %v601
  %662 = vmatprep.subr.bf16.mxu0 0
  %663 = vmatpush1.bf16.msra.mxu0 0
  %664 = vmatprep.subr.bf16.mxu0 0
  %665 = vmatpush1.bf16.msra.mxu0 0
  %666 = vmatprep.subr.bf16.mxu0 0
  %667 = vmatpush1.bf16.msra.mxu0 0
  %668 = vmatprep.subr.bf16.mxu0 0
  %669 = vmatpush1.bf16.msra.mxu0 0
  %670 = vmatprep.subr.bf16.mxu0 0
  %671 = vmatpush1.bf16.msra.mxu0 0
  %672 = vmatprep.subr.bf16.mxu0 0
  %673 = vmatpush1.bf16.msra.mxu0 0
  %674 = vmatprep.subr.bf16.mxu0 0
  %675 = vmatpush1.bf16.msra.mxu0 0
  %676 = vmatprep.subr.bf16.mxu0 0
  %677 = vmatpush1.bf16.msra.mxu0 0
  %678 = vmatprep.subr.bf16.mxu0 0
  %679 = vmatpush1.bf16.msra.mxu0 0
  %680 = vmatprep.subr.bf16.mxu0 0
  %681 = vmatpush1.bf16.msra.mxu0 0
  %682 = vmatprep.subr.bf16.mxu0 0
  %683 = vmatpush1.bf16.msra.mxu0 0
  %684 = vmatprep.subr.bf16.mxu0 0
  %685 = vmatpush1.bf16.msra.mxu0 0
  %686 = vmatprep.subr.bf16.mxu0 0
  %687 = vmatpush1.bf16.msra.mxu0 0
  %688 = vmatprep.subr.bf16.mxu0 0
  %689 = vmatpush1.bf16.msra.mxu0 0
  %690 = vmatprep.mubr.bf16.mxu0 0
  %691 = vmatmul.mubr.bf16.gmra.mrb[0].mxu0 %v615
  %v692 = vpop.f32.mrb[0].mxu0
  %v693 = vadd.f32 %v611, %v692
  %v694 = vpop.f32.mrb[0].mxu0
  %v695 = vadd.f32 %v611, %v694
  %v696 = vpop.f32.mrb[0].mxu0
  %v697 = vpop.f32.mrb[0].mxu0
  %698 = vdwg.mxu0
  %699 = vmatprep.subr.bf16.mxu0 %v596
  %700 = vmatpush1.bf16.msra.mxu0 %v595
  %701 = vmatprep.subr.bf16.mxu0 %v604
  %702 = vmatpush1.bf16.msra.mxu0 %v603
  %703 = vmatprep.subr.bf16.mxu0 0
  %704 = vmatpush1.bf16.msra.mxu0 0
  %705 = vmatprep.subr.bf16.mxu0 0
  %706 = vmatpush1.bf16.msra.mxu0 0
  %707 = vmatprep.subr.bf16.mxu0 0
  %708 = vmatpush1.bf16.msra.mxu0 0
  %709 = vmatprep.subr.bf16.mxu0 0
  %710 = vmatpush1.bf16.msra.mxu0 0
  %711 = vmatprep.subr.bf16.mxu0 0
  %712 = vmatpush1.bf16.msra.mxu0 0
  %713 = vmatprep.subr.bf16.mxu0 0
  %714 = vmatpush1.bf16.msra.mxu0 0
  %715 = vmatprep.subr.bf16.mxu0 0
  %716 = vmatpush1.bf16.msra.mxu0 0
  %717 = vmatprep.subr.bf16.mxu0 0
  %718 = vmatpush1.bf16.msra.mxu0 0
  %719 = vmatprep.subr.bf16.mxu0 0
  %720 = vmatpush1.bf16.msra.mxu0 0
  %721 = vmatprep.subr.bf16.mxu0 0
  %722 = vmatpush1.bf16.msra.mxu0 0
  %723 = vmatprep.subr.bf16.mxu0 0
  %724 = vmatpush1.bf16.msra.mxu0 0
  %725 = vmatprep.subr.bf16.mxu0 0
  %726 = vmatpush1.bf16.msra.mxu0 0
  %727 = vmatprep.subr.bf16.mxu0 0
  %728 = vmatpush1.bf16.msra.mxu0 0
  %729 = vmatprep.subr.bf16.mxu0 0
  %730 = vmatpush1.bf16.msra.mxu0 0
  %731 = vmatprep.mubr.bf16.mxu0 0
  %732 = vmatmul.mubr.bf16.gmra.mrb[0].mxu0 %v615
  %v733 = vpop.f32.mrb[0].mxu0
  %v734 = vadd.f32 %v611, %v733
  %v735 = vpop.f32.mrb[0].mxu0
  %v736 = vadd.f32 %v611, %v735
  %v737 = vpop.f32.mrb[0].mxu0
  %v738 = vpop.f32.mrb[0].mxu0
  %739 = vdwg.mxu0
  %740 = vmatprep.subr.bf16.mxu0 %v598
  %741 = vmatpush1.bf16.msra.mxu0 %v597
  %742 = vmatprep.subr.bf16.mxu0 %v606
  %743 = vmatpush1.bf16.msra.mxu0 %v605
  %744 = vmatprep.subr.bf16.mxu0 0
  %745 = vmatpush1.bf16.msra.mxu0 0
  %746 = vmatprep.subr.bf16.mxu0 0
  %747 = vmatpush1.bf16.msra.mxu0 0
  %748 = vmatprep.subr.bf16.mxu0 0
  %749 = vmatpush1.bf16.msra.mxu0 0
  %750 = vmatprep.subr.bf16.mxu0 0
  %751 = vmatpush1.bf16.msra.mxu0 0
  %752 = vmatprep.subr.bf16.mxu0 0
  %753 = vmatpush1.bf16.msra.mxu0 0
  %754 = vmatprep.subr.bf16.mxu0 0
  %755 = vmatpush1.bf16.msra.mxu0 0
  %756 = vmatprep.subr.bf16.mxu0 0
  %757 = vmatpush1.bf16.msra.mxu0 0
  %758 = vmatprep.subr.bf16.mxu0 0
  %759 = vmatpush1.bf16.msra.mxu0 0
  %760 = vmatprep.subr.bf16.mxu0 0
  %761 = vmatpush1.bf16.msra.mxu0 0
  %762 = vmatprep.subr.bf16.mxu0 0
  %763 = vmatpush1.bf16.msra.mxu0 0
  %764 = vmatprep.subr.bf16.mxu0 0
  %765 = vmatpush1.bf16.msra.mxu0 0
  %766 = vmatprep.subr.bf16.mxu0 0
  %767 = vmatpush1.bf16.msra.mxu0 0
  %768 = vmatprep.subr.bf16.mxu0 0
  %769 = vmatpush1.bf16.msra.mxu0 0
  %770 = vmatprep.subr.bf16.mxu0 0
  %771 = vmatpush1.bf16.msra.mxu0 0
  %772 = vmatprep.mubr.bf16.mxu0 0
  %773 = vmatmul.mubr.bf16.gmra.mrb[0].mxu0 %v615
  %v774 = vpop.f32.mrb[0].mxu0
  %v775 = vadd.f32 %v611, %v774
  %v776 = vpop.f32.mrb[0].mxu0
  %v777 = vadd.f32 %v611, %v776
  %v778 = vpop.f32.mrb[0].mxu0
  %v779 = vpop.f32.mrb[0].mxu0
  %780 = vdwg.mxu0
  %781 = vst [vmem:[%s5] sm:$0x1f] %v652
  %782 = vst [vmem:[%s5 + $0x8] sm:$0x1f] %v654
  %783 = vst [vmem:[%s5 + $0x10] sm:$0x1f] %v693
  %784 = vst [vmem:[%s5 + $0x18] sm:$0x1f] %v695
  %785 = vst [vmem:[%s5 + $0x20] sm:$0x1f] %v734
  %786 = vst [vmem:[%s5 + $0x28] sm:$0x1f] %v736
  %787 = vst [vmem:[%s5 + $0x30] sm:$0x1f] %v775
  %788 = vst [vmem:[%s5 + $0x38] sm:$0x1f] %v777
  // Predicated region
  $region22: #{fno3d_forward.19} parent=0 // pred_check
    _
  $region23: #{fno3d_forward.19} parent=0 // pred_check_branch
    %790 = sbr.rel (0) target = $region25
  $region24: #{fno3d_forward.19} parent=0 // pred_region
    _
  $region25: #{fno3d_forward.19} parent=0 // pred_fallthru
    _
  // Predicated region
  $region26: #{fno3d_forward.19} parent=0 // pred_check
    _
  $region27: #{fno3d_forward.19} parent=0 // pred_check_branch
    %792 = sbr.rel (0) target = $region29
  $region28: #{fno3d_forward.19} parent=0 // pred_region
    _
  $region29: #{fno3d_forward.19} parent=0 // pred_fallthru
    _

</llo_original>
